<compile_context>
chip_gen: v7x
topology: tpu7x:2x2x1
jax: 0.10.0
libtpu: 0.0.40
codegen_flags: <defaults>
</compile_context>

<pallas_src>
import functools

import jax
import jax.numpy as jnp
from jax.experimental import pallas as pl
from jax.experimental.pallas import tpu as pltpu


def _round_up(x, m):
    return (x + m - 1) // m * m


def _vmem_budget_bytes():
    """VMEM budget derived from the actual chip (64 MiB v7x vs 128 MiB v5e/v6e)."""
    cap = 64 << 20
    try:
        info = pltpu.get_tpu_info()
        cap = int(getattr(info, "vmem_capacity_bytes", cap))
    except Exception:
        pass
    return int(cap * 0.7)


def _pick_tile_h(h, w, c, bt, f_pad, weight_bytes, budget):
    """Largest row tile (divisor of H) whose per-step footprint fits the VMEM budget."""
    for th in range(h, 0, -1):
        if h % th:
            continue
        p = bt * th * w
        x_bytes = 2 * p * 9 * c * 2          # double-buffered bf16 im2col tile
        pool_bytes = 2 * bt * p * 4          # double-buffered f32 pooling selector
        conv_bytes = 2 * p * f_pad * 4       # f32 conv intermediate (+ headroom)
        if weight_bytes + x_bytes + pool_bytes + conv_bytes <= budget:
            return th
    return 1


# ------------------------------ fused kernel --------------------------------


def _mmfe_kernel(
    x_ref,        # (Bt*P, 9*C)     bf16  im2col patches for this (batch block, row tile)
    wconv_ref,    # (9*C, F_PAD)    bf16  3x3 conv weights, taps interleaved along K
    bconv_ref,    # (1, F_PAD)      f32
    pool_ref,     # (Bt, Bt*P)      f32   block-diagonal per-image pooling selector
    wproj_ref,    # (F_PAD, D_IMG)  bf16
    bproj_ref,    # (1, D_IMG)      f32
    counts_ref,   # (Bt, V_PAD)     f32   per-example token counts
    wtxt_ref,     # (V_PAD, D_TXT)  f32   fused tok_emb @ txt_proj_w
    btxt_ref,     # (1, D_TXT)      f32
    img_out_ref,  # (Bt, D_IMG)     f32
    txt_out_ref,  # (Bt, D_TXT)     f32
    acc_ref,      # (Bt, F_PAD)     f32   running global-average-pool sum (scratch)
    *, inv_hw, inv_s,
):
    t = pl.program_id(1)

    @pl.when(t == 0)
    def _init():
        acc_ref[...] = jnp.zeros_like(acc_ref)

    # 3x3 conv as ONE im2col matmul: M = Bt*P, K = 9*C, N = F_PAD (single MXU push
    # per tile instead of 9 K=C pushes).
    conv = jnp.dot(x_ref[...], wconv_ref[...], preferred_element_type=jnp.float32)
    conv = jnp.maximum(conv + bconv_ref[...], 0.0)          # bias + ReLU in f32 (VPU)

    # Per-image spatial pooling on the MXU (block-diagonal selector), f32 accumulate.
    acc_ref[...] += jnp.dot(pool_ref[...], conv, preferred_element_type=jnp.float32)

    @pl.when(t == pl.num_programs(1) - 1)
    def _finalize():
        # image head: fold the 1/(H*W) mean, then project; (Bt, 128) lane-dense store.
        pooled = (acc_ref[...] * inv_hw).astype(jnp.bfloat16)
        img = jnp.dot(pooled, wproj_ref[...], preferred_element_type=jnp.float32)
        img_out_ref[...] = img + bproj_ref[...]

        # text head: mean-pool + embed + project fused into counts @ fused_w (M = Bt).
        txt = jnp.dot(counts_ref[...], wtxt_ref[...], preferred_element_type=jnp.float32)
        txt = txt * inv_s + btxt_ref[...]
        ssq = jnp.sum(txt * txt, axis=-1, keepdims=True)
        # torch.nn.functional.normalize: x / max(||x||, eps), eps = 1e-12
        txt_out_ref[...] = txt * jax.lax.rsqrt(jnp.maximum(ssq, 1e-24))


# ------------------------------ weight preparation ---------------------------


def prepare_params(params):
    """One-time weight prep (outside the per-call path): padding, tap interleave,
    and tok_emb @ txt_proj_w fusion."""
    f = params["conv_w"].shape[0]
    c = params["conv_w"].shape[1]
    d_img = params["img_proj_w"].shape[1]
    d_txt = params["txt_proj_w"].shape[1]
    vocab = params["tok_emb"].shape[0]
    f_pad = _round_up(max(f, 128), 128)      # lane-dense conv feature dim
    v_pad = _round_up(max(vocab, 128), 128)  # lane-aligned text contraction dim

    # (F, C, 3, 3) -> (3, 3, C, F) -> (9*C, F_pad); K index = (di*3 + dj)*C + c.
    wconv = jnp.transpose(params["conv_w"], (2, 3, 1, 0)).reshape(9 * c, f)
    wconv = jnp.pad(wconv, ((0, 0), (0, f_pad - f))).astype(jnp.bfloat16)
    bconv = jnp.pad(params["conv_b"], (0, f_pad - f)).reshape(1, f_pad).astype(jnp.float32)
    wproj = jnp.pad(params["img_proj_w"], ((0, f_pad - f), (0, 0))).astype(jnp.bfloat16)
    bproj = params["img_proj_b"].reshape(1, d_img).astype(jnp.float32)

    # text: embedding + projection fused; kept f32 (exact vs the reference path).
    fused_w = params["tok_emb"].astype(jnp.float32) @ params["txt_proj_w"].astype(jnp.float32)
    fused_w = jnp.pad(fused_w, ((0, v_pad - vocab), (0, 0))).astype(jnp.float32)
    btxt = params["txt_proj_b"].reshape(1, d_txt).astype(jnp.float32)

    return {
        "wconv": wconv, "bconv": bconv, "wproj": wproj, "bproj": bproj,
        "fused_w": fused_w, "btxt": btxt,
        "c_in": c, "f_pad": f_pad, "v_pad": v_pad,
        "d_img": d_img, "d_txt": d_txt, "vocab": vocab,
    }


# ------------------------------ JAX wrapper ----------------------------------


def multimodal_feature_extractor(texts, images, prepped, *, batch_tile=8):
    """Forward pass of MultiModalFeatureExtractor: returns (image_features, text_features)."""
    b, c, h, w = images.shape
    s = texts.shape[1]
    assert c == prepped["c_in"]
    f_pad, v_pad = prepped["f_pad"], prepped["v_pad"]
    d_img, d_txt = prepped["d_img"], prepped["d_txt"]
    k9c = 9 * c

    bt = batch_tile                          # >= 8: full (8, 128) sublane tiles everywhere
    b_pad = _round_up(max(b, bt), bt)
    nb = b_pad // bt

    # resident weights (double-buffered by the pipeline) for the VMEM accounting
    weight_bytes = 2 * (
        prepped["wconv"].size * 2 + prepped["wproj"].size * 2
        + prepped["fused_w"].size * 4
        + (prepped["bconv"].size + prepped["bproj"].size + prepped["btxt"].size) * 4
    )
    budget = _vmem_budget_bytes()
    tile_h = _pick_tile_h(h, w, c, bt, f_pad, weight_bytes, budget)
    nt = h // tile_h
    tile_p = tile_h * w

    # ---- image glue: NCHW -> NHWC, halo pad, 9-tap im2col (K = 9*C), batch-block layout ----
    x = jnp.transpose(images, (0, 2, 3, 1))                          # (B, H, W, C)
    x = jnp.pad(x, ((0, b_pad - b), (1, 1), (1, 1), (0, 0)))         # pad batch + spatial halo
    taps = [x[:, di:di + h, dj:dj + w, :] for di in range(3) for dj in range(3)]
    patches = jnp.concatenate(taps, axis=-1).astype(jnp.bfloat16)    # (B_pad, H, W, 9C)
    patches = patches.reshape(nb, bt, nt, tile_h, w, k9c)
    patches = jnp.transpose(patches, (0, 2, 1, 3, 4, 5))
    patches = patches.reshape(nb, nt, bt * tile_p, k9c)              # (NB, NT, Bt*P, 9C)

    # block-diagonal pooling selector: pool[i, j] = 1 iff flattened position j belongs to image i
    pool = (jnp.arange(bt)[:, None] == (jnp.arange(bt * tile_p) // tile_p)[None, :])
    pool = pool.astype(jnp.float32)

    # ---- text glue: token counts via scatter-add (no B*S*vocab one-hot materialization) ----
    counts = jnp.zeros((b_pad, v_pad), jnp.float32)
    counts = counts.at[jnp.arange(b)[:, None], texts].add(1.0)

    kernel = functools.partial(_mmfe_kernel, inv_hw=1.0 / (h * w), inv_s=1.0 / s)

    img_feat, txt_feat = pl.pallas_call(
        kernel,
        out_shape=(
            jax.ShapeDtypeStruct((b_pad, d_img), jnp.float32),
            jax.ShapeDtypeStruct((b_pad, d_txt), jnp.float32),
        ),
        grid=(nb, nt),          # batch blocks parallel, row tiles = pooling reduction (last)
        in_specs=[
            pl.BlockSpec((None, None, bt * tile_p, k9c), lambda i, t: (i, t, 0, 0)),
            pl.BlockSpec((k9c, f_pad), lambda i, t: (0, 0)),
            pl.BlockSpec((1, f_pad), lambda i, t: (0, 0)),
            pl.BlockSpec((bt, bt * tile_p), lambda i, t: (0, 0)),
            pl.BlockSpec((f_pad, d_img), lambda i, t: (0, 0)),
            pl.BlockSpec((1, d_img), lambda i, t: (0, 0)),
            pl.BlockSpec((bt, v_pad), lambda i, t: (i, 0)),
            pl.BlockSpec((v_pad, d_txt), lambda i, t: (0, 0)),
            pl.BlockSpec((1, d_txt), lambda i, t: (0, 0)),
        ],
        out_specs=(
            pl.BlockSpec((bt, d_img), lambda i, t: (i, 0)),
            pl.BlockSpec((bt, d_txt), lambda i, t: (i, 0)),
        ),
        scratch_shapes=[pltpu.VMEM((bt, f_pad), jnp.float32)],
        compiler_params=pltpu.CompilerParams(
            dimension_semantics=("parallel", "arbitrary"),
            vmem_limit_bytes=budget,
        ),
    )(patches, prepped["wconv"], prepped["bconv"], pool,
      prepped["wproj"], prepped["bproj"], counts, prepped["fused_w"], prepped["btxt"])

    return img_feat[:b], txt_feat[:b]


# ------------------------------ parameter init / reference -------------------


def init_params(key, *, c_in=4, conv_f=32, d_img=128, vocab=100, h_txt=32, d_txt=128):
    ks = jax.random.split(key, 6)
    return {
        # image branch
        "conv_w": 0.05 * jax.random.normal(ks[0], (conv_f, c_in, 3, 3), jnp.float32),
        "conv_b": 0.01 * jax.random.normal(ks[1], (conv_f,), jnp.float32),
        "img_proj_w": 0.05 * jax.random.normal(ks[2], (conv_f, d_img), jnp.float32),
        "img_proj_b": 0.01 * jax.random.normal(ks[3], (d_img,), jnp.float32),
        # text branch
        "tok_emb": 0.05 * jax.random.normal(ks[4], (vocab, h_txt), jnp.float32),
        "txt_proj_w": 0.05 * jax.random.normal(ks[5], (h_txt, d_txt), jnp.float32),
        "txt_proj_b": jnp.zeros((d_txt,), jnp.float32),
    }


def _reference(texts, images, params):
    """Pure-JAX f32 reference of the same forward structure."""
    conv = jax.lax.conv_general_dilated(
        images, params["conv_w"], window_strides=(1, 1), padding=((1, 1), (1, 1)),
        dimension_numbers=("NCHW", "OIHW", "NCHW"), precision=jax.lax.Precision.HIGHEST)
    conv = jnp.maximum(conv + params["conv_b"][None, :, None, None], 0.0)
    pooled = conv.mean(axis=(2, 3))
    img = pooled @ params["img_proj_w"] + params["img_proj_b"]
    txt = params["tok_emb"][texts].mean(axis=1) @ params["txt_proj_w"] + params["txt_proj_b"]
    nrm = jnp.maximum(jnp.linalg.norm(txt, axis=-1, keepdims=True), 1e-12)
    return img, txt / nrm


# TODO(synk): real InceptionV3 / SentenceTransformer weights are external checkpoints;
# deterministic synthetic weights with the same forward structure are used instead.


if __name__ == "__main__":
    key = jax.random.PRNGKey(0)
    k_params, k_img, k_txt = jax.random.split(key, 3)

    B, C, H, W = 2, 4, 16, 16
    S = 8

    params = init_params(k_params, c_in=C)
    prepped = prepare_params(params)                               # one-time weight prep

    images = jax.random.normal(k_img, (B, C, H, W), jnp.float32)   # NCHW, PyTorch-style
    texts = jax.random.randint(k_txt, (B, S), 0, 100, jnp.int32)   # token ids

    img_feat, txt_feat = multimodal_feature_extractor(texts, images, prepped)
    jax.block_until_ready((img_feat, txt_feat))

    assert img_feat.shape == (B, 128) and txt_feat.shape == (B, 128)

    img_ref, txt_ref = _reference(texts, images, params)
    err_img = float(jnp.max(jnp.abs(img_feat - img_ref)))
    err_txt = float(jnp.max(jnp.abs(txt_feat - txt_ref)))
    assert err_img < 5e-2, f"image feature mismatch: max abs err {err_img}"
    assert err_txt < 1e-2, f"text feature mismatch: max abs err {err_txt}"

    print("KERNEL_OK")
</pallas_src>

<mosaic_0001>
module attributes {stable_mosaic.version = 11 : i64} {
  func.func @_mmfe_kernel(%arg0: i32, %arg1: i32, %arg2: memref<1x1x2048x36xbf16, #tpu.memory_space<vmem>>, %arg3: memref<36x128xbf16, #tpu.memory_space<vmem>>, %arg4: memref<1x128xf32, #tpu.memory_space<vmem>>, %arg5: memref<8x2048xf32, #tpu.memory_space<vmem>>, %arg6: memref<128x128xbf16, #tpu.memory_space<vmem>>, %arg7: memref<1x128xf32, #tpu.memory_space<vmem>>, %arg8: memref<8x128xf32, #tpu.memory_space<vmem>>, %arg9: memref<128x128xf32, #tpu.memory_space<vmem>>, %arg10: memref<1x128xf32, #tpu.memory_space<vmem>>, %arg11: memref<8x128xf32, #tpu.memory_space<vmem>>, %arg12: memref<8x128xf32, #tpu.memory_space<vmem>>, %arg13: memref<8x128xf32, #tpu.memory_space<vmem>>) attributes {dimension_semantics = [#tpu.dimension_semantics<parallel>, #tpu.dimension_semantics<arbitrary>], iteration_bounds = array<i64: 1, 1>, scalar_prefetch = 0 : i64, scratch_operands = 1 : i64, tpu.core_type = #tpu.core_type<tc>, window_params = [{transform_indices = @transform_0, window_bounds = array<i64: 1, 1, 2048, 36>}, {pipeline_mode = #tpu.pipeline_mode<synchronous>, transform_indices = @transform_1, window_bounds = array<i64: 36, 128>}, {pipeline_mode = #tpu.pipeline_mode<synchronous>, transform_indices = @transform_2, window_bounds = array<i64: 1, 128>}, {pipeline_mode = #tpu.pipeline_mode<synchronous>, transform_indices = @transform_3, window_bounds = array<i64: 8, 2048>}, {pipeline_mode = #tpu.pipeline_mode<synchronous>, transform_indices = @transform_4, window_bounds = array<i64: 128, 128>}, {pipeline_mode = #tpu.pipeline_mode<synchronous>, transform_indices = @transform_5, window_bounds = array<i64: 1, 128>}, {transform_indices = @transform_6, window_bounds = array<i64: 8, 128>}, {pipeline_mode = #tpu.pipeline_mode<synchronous>, transform_indices = @transform_7, window_bounds = array<i64: 128, 128>}, {pipeline_mode = #tpu.pipeline_mode<synchronous>, transform_indices = @transform_8, window_bounds = array<i64: 1, 128>}, {transform_indices = @transform_9, window_bounds = array<i64: 8, 128>}, {transform_indices = @transform_10, window_bounds = array<i64: 8, 128>}]} {
    %c0_i32 = arith.constant 0 : i32
    %0 = arith.cmpi eq, %arg1, %c0_i32 : i32
    %1 = arith.extui %0 : i1 to i32
    %c0_i32_0 = arith.constant 0 : i32
    %2 = arith.cmpi ne, %1, %c0_i32_0 : i32
    scf.if %2 {
      %cst_18 = arith.constant 0.000000e+00 : f32
      %20 = vector.broadcast %cst_18 : f32 to vector<8x128xf32>
      %c0_19 = arith.constant 0 : index
      %c0_20 = arith.constant 0 : index
      %21 = vector.load %arg13[%c0_19, %c0_20] : memref<8x128xf32, #tpu.memory_space<vmem>>, vector<8x128xf32>
      tpu.vector_store %arg13[%c0_19, %c0_20], %20 {strides = array<i32>} : memref<8x128xf32, #tpu.memory_space<vmem>>, vector<8x128xf32>,
    } else {
    }
    %c0 = arith.constant 0 : index
    %c0_1 = arith.constant 0 : index
    %c0_2 = arith.constant 0 : index
    %c0_3 = arith.constant 0 : index
    %3 = vector.load %arg2[%c0, %c0_1, %c0_2, %c0_3] : memref<1x1x2048x36xbf16, #tpu.memory_space<vmem>>, vector<1x1x2048x36xbf16>
    %4 = vector.shape_cast %3 : vector<1x1x2048x36xbf16> to vector<2048x36xbf16>
    %c0_4 = arith.constant 0 : index
    %c0_5 = arith.constant 0 : index
    %5 = vector.load %arg3[%c0_4, %c0_5] : memref<36x128xbf16, #tpu.memory_space<vmem>>, vector<36x128xbf16>
    %cst = arith.constant dense<0.000000e+00> : vector<2048x128xf32>
    %6 = tpu.matmul %4, %5, %cst {dimension_numbers = #tpu.dot_dimension_numbers<[1], [0], [0], [1], [0, 0, 1, 1], [], []>} : vector<2048x36xbf16>, vector<36x128xbf16>, vector<2048x128xf32> -> vector<2048x128xf32>
    %c0_6 = arith.constant 0 : index
    %c0_7 = arith.constant 0 : index
    %7 = vector.load %arg4[%c0_6, %c0_7] : memref<1x128xf32, #tpu.memory_space<vmem>>, vector<1x128xf32>
    %8 = vector.broadcast %7 : vector<1x128xf32> to vector<2048x128xf32>
    %9 = arith.addf %6, %8 : vector<2048x128xf32>
    %cst_8 = arith.constant 0.000000e+00 : f32
    %10 = vector.broadcast %cst_8 : f32 to vector<2048x128xf32>
    %11 = arith.maximumf %9, %10 : vector<2048x128xf32>
    %c0_9 = arith.constant 0 : index
    %c0_10 = arith.constant 0 : index
    %12 = vector.load %arg13[%c0_9, %c0_10] : memref<8x128xf32, #tpu.memory_space<vmem>>, vector<8x128xf32>
    %c0_11 = arith.constant 0 : index
    %c0_12 = arith.constant 0 : index
    %13 = vector.load %arg5[%c0_11, %c0_12] : memref<8x2048xf32, #tpu.memory_space<vmem>>, vector<8x2048xf32>
    %cst_13 = arith.constant dense<0.000000e+00> : vector<8x128xf32>
    %14 = tpu.matmul %13, %11, %cst_13 {dimension_numbers = #tpu.dot_dimension_numbers<[1], [0], [0], [1], [0, 0, 1, 1], [], []>} : vector<8x2048xf32>, vector<2048x128xf32>, vector<8x128xf32> -> vector<8x128xf32>
    %15 = arith.addf %12, %14 : vector<8x128xf32>
    %c0_14 = arith.constant 0 : index
    %c0_15 = arith.constant 0 : index
    %16 = vector.load %arg13[%c0_14, %c0_15] : memref<8x128xf32, #tpu.memory_space<vmem>>, vector<8x128xf32>
    tpu.vector_store %arg13[%c0_14, %c0_15], %15 {strides = array<i32>} : memref<8x128xf32, #tpu.memory_space<vmem>>, vector<8x128xf32>,
    %c0_i32_16 = arith.constant 0 : i32
    %17 = arith.cmpi eq, %arg1, %c0_i32_16 : i32
    %18 = arith.extui %17 : i1 to i32
    %c0_i32_17 = arith.constant 0 : i32
    %19 = arith.cmpi ne, %18, %c0_i32_17 : i32
    scf.if %19 {
      %c0_18 = arith.constant 0 : index
      %c0_19 = arith.constant 0 : index
      %20 = vector.load %arg13[%c0_18, %c0_19] : memref<8x128xf32, #tpu.memory_space<vmem>>, vector<8x128xf32>
      %cst_20 = arith.constant 3.906250e-03 : f32
      %21 = vector.broadcast %cst_20 : f32 to vector<8x128xf32>
      %22 = arith.mulf %20, %21 : vector<8x128xf32>
      %23 = arith.truncf %22 : vector<8x128xf32> to vector<8x128xbf16>
      %c0_21 = arith.constant 0 : index
      %c0_22 = arith.constant 0 : index
      %24 = vector.load %arg6[%c0_21, %c0_22] : memref<128x128xbf16, #tpu.memory_space<vmem>>, vector<128x128xbf16>
      %cst_23 = arith.constant dense<0.000000e+00> : vector<8x128xf32>
      %25 = tpu.matmul %23, %24, %cst_23 {dimension_numbers = #tpu.dot_dimension_numbers<[1], [0], [0], [1], [0, 0, 1, 1], [], []>} : vector<8x128xbf16>, vector<128x128xbf16>, vector<8x128xf32> -> vector<8x128xf32>
      %c0_24 = arith.constant 0 : index
      %c0_25 = arith.constant 0 : index
      %26 = vector.load %arg7[%c0_24, %c0_25] : memref<1x128xf32, #tpu.memory_space<vmem>>, vector<1x128xf32>
      %27 = vector.broadcast %26 : vector<1x128xf32> to vector<8x128xf32>
      %28 = arith.addf %25, %27 : vector<8x128xf32>
      %c0_26 = arith.constant 0 : index
      %c0_27 = arith.constant 0 : index
      %29 = vector.load %arg11[%c0_26, %c0_27] : memref<8x128xf32, #tpu.memory_space<vmem>>, vector<8x128xf32>
      tpu.vector_store %arg11[%c0_26, %c0_27], %28 {strides = array<i32>} : memref<8x128xf32, #tpu.memory_space<vmem>>, vector<8x128xf32>,
      %c0_28 = arith.constant 0 : index
      %c0_29 = arith.constant 0 : index
      %30 = vector.load %arg8[%c0_28, %c0_29] : memref<8x128xf32, #tpu.memory_space<vmem>>, vector<8x128xf32>
      %c0_30 = arith.constant 0 : index
      %c0_31 = arith.constant 0 : index
      %31 = vector.load %arg9[%c0_30, %c0_31] : memref<128x128xf32, #tpu.memory_space<vmem>>, vector<128x128xf32>
      %cst_32 = arith.constant dense<0.000000e+00> : vector<8x128xf32>
      %32 = tpu.matmul %30, %31, %cst_32 {dimension_numbers = #tpu.dot_dimension_numbers<[1], [0], [0], [1], [0, 0, 1, 1], [], []>} : vector<8x128xf32>, vector<128x128xf32>, vector<8x128xf32> -> vector<8x128xf32>
      %cst_33 = arith.constant 1.250000e-01 : f32
      %33 = vector.broadcast %cst_33 : f32 to vector<8x128xf32>
      %34 = arith.mulf %32, %33 : vector<8x128xf32>
      %c0_34 = arith.constant 0 : index
      %c0_35 = arith.constant 0 : index
      %35 = vector.load %arg10[%c0_34, %c0_35] : memref<1x128xf32, #tpu.memory_space<vmem>>, vector<1x128xf32>
      %36 = vector.broadcast %35 : vector<1x128xf32> to vector<8x128xf32>
      %37 = arith.addf %34, %36 : vector<8x128xf32>
      %38 = arith.mulf %37, %37 : vector<8x128xf32>
      %cst_36 = arith.constant dense<0.000000e+00> : vector<8xf32>
      %39 = vector.multi_reduction <add>, %38, %cst_36 [1] : vector<8x128xf32> to vector<8xf32>
      %40 = vector.shape_cast %39 : vector<8xf32> to vector<8x1xf32>
      %cst_37 = arith.constant 1.000000e-24 : f32
      %41 = vector.broadcast %cst_37 : f32 to vector<8x1xf32>
      %42 = arith.maximumf %40, %41 : vector<8x1xf32>
      %43 = math.rsqrt %42 : vector<8x1xf32>
      %44 = vector.broadcast %43 : vector<8x1xf32> to vector<8x128xf32>
      %45 = arith.mulf %37, %44 : vector<8x128xf32>
      %c0_38 = arith.constant 0 : index
      %c0_39 = arith.constant 0 : index
      %46 = vector.load %arg12[%c0_38, %c0_39] : memref<8x128xf32, #tpu.memory_space<vmem>>, vector<8x128xf32>
      tpu.vector_store %arg12[%c0_38, %c0_39], %45 {strides = array<i32>} : memref<8x128xf32, #tpu.memory_space<vmem>>, vector<8x128xf32>,
    } else {
    }
    return
  }
  func.func @transform_0(%arg0: i32, %arg1: i32) -> (i32, i32, i32, i32) {
    %c0_i32 = arith.constant 0 : i32
    %c0_i32_0 = arith.constant 0 : i32
    %c0_i32_1 = arith.constant 0 : i32
    return %arg0, %arg1, %c0_i32, %c0_i32_0 : i32, i32, i32, i32
  }
  func.func @transform_1(%arg0: i32, %arg1: i32) -> (i32, i32) {
    %c0_i32 = arith.constant 0 : i32
    %c0_i32_0 = arith.constant 0 : i32
    %c0_i32_1 = arith.constant 0 : i32
    return %c0_i32, %c0_i32_0 : i32, i32
  }
  func.func @transform_2(%arg0: i32, %arg1: i32) -> (i32, i32) {
    %c0_i32 = arith.constant 0 : i32
    %c0_i32_0 = arith.constant 0 : i32
    %c0_i32_1 = arith.constant 0 : i32
    return %c0_i32, %c0_i32_0 : i32, i32
  }
  func.func @transform_3(%arg0: i32, %arg1: i32) -> (i32, i32) {
    %c0_i32 = arith.constant 0 : i32
    %c0_i32_0 = arith.constant 0 : i32
    %c0_i32_1 = arith.constant 0 : i32
    return %c0_i32, %c0_i32_0 : i32, i32
  }
  func.func @transform_4(%arg0: i32, %arg1: i32) -> (i32, i32) {
    %c0_i32 = arith.constant 0 : i32
    %c0_i32_0 = arith.constant 0 : i32
    %c0_i32_1 = arith.constant 0 : i32
    return %c0_i32, %c0_i32_0 : i32, i32
  }
  func.func @transform_5(%arg0: i32, %arg1: i32) -> (i32, i32) {
    %c0_i32 = arith.constant 0 : i32
    %c0_i32_0 = arith.constant 0 : i32
    %c0_i32_1 = arith.constant 0 : i32
    return %c0_i32, %c0_i32_0 : i32, i32
  }
  func.func @transform_6(%arg0: i32, %arg1: i32) -> (i32, i32) {
    %c0_i32 = arith.constant 0 : i32
    %c0_i32_0 = arith.constant 0 : i32
    return %arg0, %c0_i32 : i32, i32
  }
  func.func @transform_7(%arg0: i32, %arg1: i32) -> (i32, i32) {
    %c0_i32 = arith.constant 0 : i32
    %c0_i32_0 = arith.constant 0 : i32
    %c0_i32_1 = arith.constant 0 : i32
    return %c0_i32, %c0_i32_0 : i32, i32
  }
  func.func @transform_8(%arg0: i32, %arg1: i32) -> (i32, i32) {
    %c0_i32 = arith.constant 0 : i32
    %c0_i32_0 = arith.constant 0 : i32
    %c0_i32_1 = arith.constant 0 : i32
    return %c0_i32, %c0_i32_0 : i32, i32
  }
  func.func @transform_9(%arg0: i32, %arg1: i32) -> (i32, i32) {
    %c0_i32 = arith.constant 0 : i32
    %c0_i32_0 = arith.constant 0 : i32
    return %arg0, %c0_i32 : i32, i32
  }
  func.func @transform_10(%arg0: i32, %arg1: i32) -> (i32, i32) {
    %c0_i32 = arith.constant 0 : i32
    %c0_i32_0 = arith.constant 0 : i32
    return %arg0, %c0_i32 : i32, i32
  }
}

</mosaic_0001>

<llo_original>
// kernel: tpu_custom_call.1
$region0: #{tpu_custom_call.1}
  #allocation0 [shape = 'u32[]', space=smem, size = 0x4, offset = 0x4, fixed_abs, tag = 'smem constant byte address 0x4 - core index']
  #allocation1 [shape = 'u32[144,128]{1,0:T(1,128)}', space=vmem, size = 0x12000, scoped, tag = 'internal scratch']
  #allocation2 [shape = 'f32[8,128]{1,0:T(8,128)}', space=vmem, size = 0x1000, scoped, tag = 'scratch operand']
  %s0 = inlined_call_operand.vmem [shape: bf16[1,1,2048,36], index: 0, kind: input, shape index: {}]
  %s1 = inlined_call_operand.vmem [shape: bf16[36,128], index: 1, kind: input, shape index: {}]
  %s2 = inlined_call_operand.vmem [shape: f32[1,128], index: 2, kind: input, shape index: {}]
  %s3 = inlined_call_operand.vmem [shape: f32[8,2048], index: 3, kind: input, shape index: {}]
  %s4 = inlined_call_operand.vmem [shape: bf16[128,128], index: 4, kind: input, shape index: {}]
  %s5 = inlined_call_operand.vmem [shape: f32[1,128], index: 5, kind: input, shape index: {}]
  %s6 = inlined_call_operand.vmem [shape: f32[8,128], index: 6, kind: input, shape index: {}]
  %s7 = inlined_call_operand.vmem [shape: f32[128,128], index: 7, kind: input, shape index: {}]
  %s8 = inlined_call_operand.vmem [shape: f32[1,128], index: 8, kind: input, shape index: {}]
  %s9 = inlined_call_operand.hbm [shape: f32[8,128], index: 9, kind: output, shape index: {0}]
  %s10 = inlined_call_operand.hbm [shape: f32[8,128], index: 10, kind: output, shape index: {1}]
  %11 = xla_tuple %s9, %s10
  %s12 = sld [smem:[#allocation0]]
  $region62: #{tpu_custom_call.1} parent=0
    _
  %s14 = ssub.s32 1, %s12
  %s15 = scalar_select 0, %s14, %s12
  $region1: #{tpu_custom_call.1} parent=0
    #allocation3 [shape = 'u8[4096]{0}', space=vmem, size = 0x1000, scoped, tag = 'output window, operand 0, single buffered']
    #allocation4 [shape = 's32[1]{0}', space=sflag, size = 0x4, scoped, tag = 'scoped memory for tpu_custom_call.1']
    #allocation5 [shape = 'u8[4096]{0}', space=vmem, size = 0x1000, scoped, tag = 'output window, operand 1, single buffered']
    #allocation6 [shape = 's32[1]{0}', space=sflag, size = 0x4, scoped, tag = 'scoped memory for tpu_custom_call.1']
    %16 = vsyncpa [#allocation4], 0
    %17 = vsyncpa [#allocation6], 0
    // Predicated region
    $region2: #{tpu_custom_call.1} parent=1 // pred_check
      _
    $region3: #{tpu_custom_call.1} parent=1 // pred_check_branch
      %19 = sbr.rel (0) target = $region5
    $region4: #{tpu_custom_call.1} parent=1 // pred_region
      _
    $region5: #{tpu_custom_call.1} parent=1 // pred_fallthru
      _
    // Predicated region
    $region6: #{tpu_custom_call.1} parent=1 // pred_check
      _
    $region7: #{tpu_custom_call.1} parent=1 // pred_check_branch
      %21 = sbr.rel (0) target = $region9
    $region8: #{tpu_custom_call.1} parent=1 // pred_region
      _
    $region9: #{tpu_custom_call.1} parent=1 // pred_fallthru
      _
    // Predicated region
    $region10: #{tpu_custom_call.1} parent=1 // pred_check
      _
    $region11: #{tpu_custom_call.1} parent=1 // pred_check_branch
      %23 = sbr.rel (0) target = $region13
    $region12: #{tpu_custom_call.1} parent=1 // pred_region
      _
    $region13: #{tpu_custom_call.1} parent=1 // pred_fallthru
      _
    // Predicated region
    $region14: #{tpu_custom_call.1} parent=1 // pred_check
      _
    $region15: #{tpu_custom_call.1} parent=1 // pred_check_branch
      %25 = sbr.rel (0) target = $region17
    $region16: #{tpu_custom_call.1} parent=1 // pred_region
      _
    $region17: #{tpu_custom_call.1} parent=1 // pred_fallthru
      _
    // Predicated region
    $region18: #{tpu_custom_call.1} parent=1 // pred_check
      _
    $region19: #{tpu_custom_call.1} parent=1 // pred_check_branch
      %27 = sbr.rel (0) target = $region21
    $region20: #{tpu_custom_call.1} parent=1 // pred_region
      _
    $region21: #{tpu_custom_call.1} parent=1 // pred_fallthru
      _
    // Predicated region
    $region22: #{tpu_custom_call.1} parent=1 // pred_check
      _
    $region23: #{tpu_custom_call.1} parent=1 // pred_check_branch
      %29 = sbr.rel (0) target = $region25
    $region24: #{tpu_custom_call.1} parent=1 // pred_region
      _
    $region25: #{tpu_custom_call.1} parent=1 // pred_fallthru
      _
    // Predicated region
    $region26: #{tpu_custom_call.1} parent=1 // pred_check
      _
    $region27: #{tpu_custom_call.1} parent=1 // pred_check_branch
      %31 = sbr.rel (0) target = $region29
    $region28: #{tpu_custom_call.1} parent=1 // pred_region
      _
    $region29: #{tpu_custom_call.1} parent=1 // pred_fallthru
      _
    // Predicated region
    $region30: #{tpu_custom_call.1} parent=1 // pred_check
      _
    $region31: #{tpu_custom_call.1} parent=1 // pred_check_branch
      %33 = sbr.rel (0) target = $region33
    $region32: #{tpu_custom_call.1} parent=1 // pred_region
      _
    $region33: #{tpu_custom_call.1} parent=1 // pred_fallthru
      _
    // Predicated region
    $region34: #{tpu_custom_call.1} parent=1 // pred_check
      _
    $region35: #{tpu_custom_call.1} parent=1 // pred_check_branch
      %35 = sbr.rel (0) target = $region37
    $region36: #{tpu_custom_call.1} parent=1 // pred_region
      _
    $region37: #{tpu_custom_call.1} parent=1 // pred_fallthru
      _
    %p37 = scmp.eq.s32.totalorder 0, 0
    // Predicated region
    $region38: #{tpu_custom_call.1} parent=1 // pred_check
      %p38 = pneg %p37
    $region39: #{tpu_custom_call.1} parent=1 // pred_check_branch
      %40 = sbr.rel (%p38) target = $region41
    $region40: #{tpu_custom_call.1} parent=1 // pred_region
      %41 = vst [vmem:[#allocation2] sm:$0xff] 0.0
    $region41: #{tpu_custom_call.1} parent=1 // pred_fallthru
      _
    %v42 = vld [vmem:[%s0] sm:$0xf]
    %v43 = vld [vmem:[%s0 + $0x4] sm:$0xf]
    %v44 = vld [vmem:[%s0 + $0x8] sm:$0xf]
    %v45 = vld [vmem:[%s0 + $0xc] sm:$0xf]
    %v46 = vld [vmem:[%s0 + $0x10] sm:$0xf]
    %v47 = vld [vmem:[%s0 + $0x14] sm:$0xf]
    %v48 = vld [vmem:[%s0 + $0x18] sm:$0xf]
    %v49 = vld [vmem:[%s0 + $0x1c] sm:$0xf]
    %v50 = vld [vmem:[%s0 + $0x20] sm:$0xf]
    %v51 = vld [vmem:[%s0 + $0x24] sm:$0xf]
    %v52 = vld [vmem:[%s0 + $0x28] sm:$0xf]
    %v53 = vld [vmem:[%s0 + $0x2c] sm:$0xf]
    %v54 = vld [vmem:[%s0 + $0x30] sm:$0xf]
    %v55 = vld [vmem:[%s0 + $0x34] sm:$0xf]
    %v56 = vld [vmem:[%s0 + $0x38] sm:$0xf]
    %v57 = vld [vmem:[%s0 + $0x3c] sm:$0xf]
    %v58 = vld [vmem:[%s0 + $0x40] sm:$0xf]
    %v59 = vld [vmem:[%s0 + $0x44] sm:$0xf]
    %v60 = vld [vmem:[%s0 + $0x48] sm:$0xf]
    %v61 = vld [vmem:[%s0 + $0x4c] sm:$0xf]
    %v62 = vld [vmem:[%s0 + $0x50] sm:$0xf]
    %v63 = vld [vmem:[%s0 + $0x54] sm:$0xf]
    %v64 = vld [vmem:[%s0 + $0x58] sm:$0xf]
    %v65 = vld [vmem:[%s0 + $0x5c] sm:$0xf]
    %v66 = vld [vmem:[%s0 + $0x60] sm:$0xf]
    %v67 = vld [vmem:[%s0 + $0x64] sm:$0xf]
    %v68 = vld [vmem:[%s0 + $0x68] sm:$0xf]
    %v69 = vld [vmem:[%s0 + $0x6c] sm:$0xf]
    %v70 = vld [vmem:[%s0 + $0x70] sm:$0xf]
    %v71 = vld [vmem:[%s0 + $0x74] sm:$0xf]
    %v72 = vld [vmem:[%s0 + $0x78] sm:$0xf]
    %v73 = vld [vmem:[%s0 + $0x7c] sm:$0xf]
    %v74 = vld [vmem:[%s0 + $0x80] sm:$0xf]
    %v75 = vld [vmem:[%s0 + $0x84] sm:$0xf]
    %v76 = vld [vmem:[%s0 + $0x88] sm:$0xf]
    %v77 = vld [vmem:[%s0 + $0x8c] sm:$0xf]
    %v78 = vld [vmem:[%s0 + $0x90] sm:$0xf]
    %v79 = vld [vmem:[%s0 + $0x94] sm:$0xf]
    %v80 = vld [vmem:[%s0 + $0x98] sm:$0xf]
    %v81 = vld [vmem:[%s0 + $0x9c] sm:$0xf]
    %v82 = vld [vmem:[%s0 + $0xa0] sm:$0xf]
    %v83 = vld [vmem:[%s0 + $0xa4] sm:$0xf]
    %v84 = vld [vmem:[%s0 + $0xa8] sm:$0xf]
    %v85 = vld [vmem:[%s0 + $0xac] sm:$0xf]
    %v86 = vld [vmem:[%s0 + $0xb0] sm:$0xf]
    %v87 = vld [vmem:[%s0 + $0xb4] sm:$0xf]
    %v88 = vld [vmem:[%s0 + $0xb8] sm:$0xf]
    %v89 = vld [vmem:[%s0 + $0xbc] sm:$0xf]
    %v90 = vld [vmem:[%s0 + $0xc0] sm:$0xf]
    %v91 = vld [vmem:[%s0 + $0xc4] sm:$0xf]
    %v92 = vld [vmem:[%s0 + $0xc8] sm:$0xf]
    %v93 = vld [vmem:[%s0 + $0xcc] sm:$0xf]
    %v94 = vld [vmem:[%s0 + $0xd0] sm:$0xf]
    %v95 = vld [vmem:[%s0 + $0xd4] sm:$0xf]
    %v96 = vld [vmem:[%s0 + $0xd8] sm:$0xf]
    %v97 = vld [vmem:[%s0 + $0xdc] sm:$0xf]
    %v98 = vld [vmem:[%s0 + $0xe0] sm:$0xf]
    %v99 = vld [vmem:[%s0 + $0xe4] sm:$0xf]
    %v100 = vld [vmem:[%s0 + $0xe8] sm:$0xf]
    %v101 = vld [vmem:[%s0 + $0xec] sm:$0xf]
    %v102 = vld [vmem:[%s0 + $0xf0] sm:$0xf]
    %v103 = vld [vmem:[%s0 + $0xf4] sm:$0xf]
    %v104 = vld [vmem:[%s0 + $0xf8] sm:$0xf]
    %v105 = vld [vmem:[%s0 + $0xfc] sm:$0xf]
    %v106 = vld [vmem:[%s0 + $0x100] sm:$0xf]
    %v107 = vld [vmem:[%s0 + $0x104] sm:$0xf]
    %v108 = vld [vmem:[%s0 + $0x108] sm:$0xf]
    %v109 = vld [vmem:[%s0 + $0x10c] sm:$0xf]
    %v110 = vld [vmem:[%s0 + $0x110] sm:$0xf]
    %v111 = vld [vmem:[%s0 + $0x114] sm:$0xf]
    %v112 = vld [vmem:[%s0 + $0x118] sm:$0xf]
    %v113 = vld [vmem:[%s0 + $0x11c] sm:$0xf]
    %v114 = vld [vmem:[%s0 + $0x120] sm:$0xf]
    %v115 = vld [vmem:[%s0 + $0x124] sm:$0xf]
    %v116 = vld [vmem:[%s0 + $0x128] sm:$0xf]
    %v117 = vld [vmem:[%s0 + $0x12c] sm:$0xf]
    %v118 = vld [vmem:[%s0 + $0x130] sm:$0xf]
    %v119 = vld [vmem:[%s0 + $0x134] sm:$0xf]
    %v120 = vld [vmem:[%s0 + $0x138] sm:$0xf]
    %v121 = vld [vmem:[%s0 + $0x13c] sm:$0xf]
    %v122 = vld [vmem:[%s0 + $0x140] sm:$0xf]
    %v123 = vld [vmem:[%s0 + $0x144] sm:$0xf]
    %v124 = vld [vmem:[%s0 + $0x148] sm:$0xf]
    %v125 = vld [vmem:[%s0 + $0x14c] sm:$0xf]
    %v126 = vld [vmem:[%s0 + $0x150] sm:$0xf]
    %v127 = vld [vmem:[%s0 + $0x154] sm:$0xf]
    %v128 = vld [vmem:[%s0 + $0x158] sm:$0xf]
    %v129 = vld [vmem:[%s0 + $0x15c] sm:$0xf]
    %v130 = vld [vmem:[%s0 + $0x160] sm:$0xf]
    %v131 = vld [vmem:[%s0 + $0x164] sm:$0xf]
    %v132 = vld [vmem:[%s0 + $0x168] sm:$0xf]
    %v133 = vld [vmem:[%s0 + $0x16c] sm:$0xf]
    %v134 = vld [vmem:[%s0 + $0x170] sm:$0xf]
    %v135 = vld [vmem:[%s0 + $0x174] sm:$0xf]
    %v136 = vld [vmem:[%s0 + $0x178] sm:$0xf]
    %v137 = vld [vmem:[%s0 + $0x17c] sm:$0xf]
    %v138 = vld [vmem:[%s0 + $0x180] sm:$0xf]
    %v139 = vld [vmem:[%s0 + $0x184] sm:$0xf]
    %v140 = vld [vmem:[%s0 + $0x188] sm:$0xf]
    %v141 = vld [vmem:[%s0 + $0x18c] sm:$0xf]
    %v142 = vld [vmem:[%s0 + $0x190] sm:$0xf]
    %v143 = vld [vmem:[%s0 + $0x194] sm:$0xf]
    %v144 = vld [vmem:[%s0 + $0x198] sm:$0xf]
    %v145 = vld [vmem:[%s0 + $0x19c] sm:$0xf]
    %v146 = vld [vmem:[%s0 + $0x1a0] sm:$0xf]
    %v147 = vld [vmem:[%s0 + $0x1a4] sm:$0xf]
    %v148 = vld [vmem:[%s0 + $0x1a8] sm:$0xf]
    %v149 = vld [vmem:[%s0 + $0x1ac] sm:$0xf]
    %v150 = vld [vmem:[%s0 + $0x1b0] sm:$0xf]
    %v151 = vld [vmem:[%s0 + $0x1b4] sm:$0xf]
    %v152 = vld [vmem:[%s0 + $0x1b8] sm:$0xf]
    %v153 = vld [vmem:[%s0 + $0x1bc] sm:$0xf]
    %v154 = vld [vmem:[%s0 + $0x1c0] sm:$0xf]
    %v155 = vld [vmem:[%s0 + $0x1c4] sm:$0xf]
    %v156 = vld [vmem:[%s0 + $0x1c8] sm:$0xf]
    %v157 = vld [vmem:[%s0 + $0x1cc] sm:$0xf]
    %v158 = vld [vmem:[%s0 + $0x1d0] sm:$0xf]
    %v159 = vld [vmem:[%s0 + $0x1d4] sm:$0xf]
    %v160 = vld [vmem:[%s0 + $0x1d8] sm:$0xf]
    %v161 = vld [vmem:[%s0 + $0x1dc] sm:$0xf]
    %v162 = vld [vmem:[%s0 + $0x1e0] sm:$0xf]
    %v163 = vld [vmem:[%s0 + $0x1e4] sm:$0xf]
    %v164 = vld [vmem:[%s0 + $0x1e8] sm:$0xf]
    %v165 = vld [vmem:[%s0 + $0x1ec] sm:$0xf]
    %v166 = vld [vmem:[%s0 + $0x1f0] sm:$0xf]
    %v167 = vld [vmem:[%s0 + $0x1f4] sm:$0xf]
    %v168 = vld [vmem:[%s0 + $0x1f8] sm:$0xf]
    %v169 = vld [vmem:[%s0 + $0x1fc] sm:$0xf]
    %v170 = vld [vmem:[%s0 + $0x200] sm:$0xf]
    %v171 = vld [vmem:[%s0 + $0x204] sm:$0xf]
    %v172 = vld [vmem:[%s0 + $0x208] sm:$0xf]
    %v173 = vld [vmem:[%s0 + $0x20c] sm:$0xf]
    %v174 = vld [vmem:[%s0 + $0x210] sm:$0xf]
    %v175 = vld [vmem:[%s0 + $0x214] sm:$0xf]
    %v176 = vld [vmem:[%s0 + $0x218] sm:$0xf]
    %v177 = vld [vmem:[%s0 + $0x21c] sm:$0xf]
    %v178 = vld [vmem:[%s0 + $0x220] sm:$0xf]
    %v179 = vld [vmem:[%s0 + $0x224] sm:$0xf]
    %v180 = vld [vmem:[%s0 + $0x228] sm:$0xf]
    %v181 = vld [vmem:[%s0 + $0x22c] sm:$0xf]
    %v182 = vld [vmem:[%s0 + $0x230] sm:$0xf]
    %v183 = vld [vmem:[%s0 + $0x234] sm:$0xf]
    %v184 = vld [vmem:[%s0 + $0x238] sm:$0xf]
    %v185 = vld [vmem:[%s0 + $0x23c] sm:$0xf]
    %v186 = vld [vmem:[%s0 + $0x240] sm:$0xf]
    %v187 = vld [vmem:[%s0 + $0x244] sm:$0xf]
    %v188 = vld [vmem:[%s0 + $0x248] sm:$0xf]
    %v189 = vld [vmem:[%s0 + $0x24c] sm:$0xf]
    %v190 = vld [vmem:[%s0 + $0x250] sm:$0xf]
    %v191 = vld [vmem:[%s0 + $0x254] sm:$0xf]
    %v192 = vld [vmem:[%s0 + $0x258] sm:$0xf]
    %v193 = vld [vmem:[%s0 + $0x25c] sm:$0xf]
    %v194 = vld [vmem:[%s0 + $0x260] sm:$0xf]
    %v195 = vld [vmem:[%s0 + $0x264] sm:$0xf]
    %v196 = vld [vmem:[%s0 + $0x268] sm:$0xf]
    %v197 = vld [vmem:[%s0 + $0x26c] sm:$0xf]
    %v198 = vld [vmem:[%s0 + $0x270] sm:$0xf]
    %v199 = vld [vmem:[%s0 + $0x274] sm:$0xf]
    %v200 = vld [vmem:[%s0 + $0x278] sm:$0xf]
    %v201 = vld [vmem:[%s0 + $0x27c] sm:$0xf]
    %v202 = vld [vmem:[%s0 + $0x280] sm:$0xf]
    %v203 = vld [vmem:[%s0 + $0x284] sm:$0xf]
    %v204 = vld [vmem:[%s0 + $0x288] sm:$0xf]
    %v205 = vld [vmem:[%s0 + $0x28c] sm:$0xf]
    %v206 = vld [vmem:[%s0 + $0x290] sm:$0xf]
    %v207 = vld [vmem:[%s0 + $0x294] sm:$0xf]
    %v208 = vld [vmem:[%s0 + $0x298] sm:$0xf]
    %v209 = vld [vmem:[%s0 + $0x29c] sm:$0xf]
    %v210 = vld [vmem:[%s0 + $0x2a0] sm:$0xf]
    %v211 = vld [vmem:[%s0 + $0x2a4] sm:$0xf]
    %v212 = vld [vmem:[%s0 + $0x2a8] sm:$0xf]
    %v213 = vld [vmem:[%s0 + $0x2ac] sm:$0xf]
    %v214 = vld [vmem:[%s0 + $0x2b0] sm:$0xf]
    %v215 = vld [vmem:[%s0 + $0x2b4] sm:$0xf]
    %v216 = vld [vmem:[%s0 + $0x2b8] sm:$0xf]
    %v217 = vld [vmem:[%s0 + $0x2bc] sm:$0xf]
    %v218 = vld [vmem:[%s0 + $0x2c0] sm:$0xf]
    %v219 = vld [vmem:[%s0 + $0x2c4] sm:$0xf]
    %v220 = vld [vmem:[%s0 + $0x2c8] sm:$0xf]
    %v221 = vld [vmem:[%s0 + $0x2cc] sm:$0xf]
    %v222 = vld [vmem:[%s0 + $0x2d0] sm:$0xf]
    %v223 = vld [vmem:[%s0 + $0x2d4] sm:$0xf]
    %v224 = vld [vmem:[%s0 + $0x2d8] sm:$0xf]
    %v225 = vld [vmem:[%s0 + $0x2dc] sm:$0xf]
    %v226 = vld [vmem:[%s0 + $0x2e0] sm:$0xf]
    %v227 = vld [vmem:[%s0 + $0x2e4] sm:$0xf]
    %v228 = vld [vmem:[%s0 + $0x2e8] sm:$0xf]
    %v229 = vld [vmem:[%s0 + $0x2ec] sm:$0xf]
    %v230 = vld [vmem:[%s0 + $0x2f0] sm:$0xf]
    %v231 = vld [vmem:[%s0 + $0x2f4] sm:$0xf]
    %v232 = vld [vmem:[%s0 + $0x2f8] sm:$0xf]
    %v233 = vld [vmem:[%s0 + $0x2fc] sm:$0xf]
    %v234 = vld [vmem:[%s0 + $0x300] sm:$0xf]
    %v235 = vld [vmem:[%s0 + $0x304] sm:$0xf]
    %v236 = vld [vmem:[%s0 + $0x308] sm:$0xf]
    %v237 = vld [vmem:[%s0 + $0x30c] sm:$0xf]
    %v238 = vld [vmem:[%s0 + $0x310] sm:$0xf]
    %v239 = vld [vmem:[%s0 + $0x314] sm:$0xf]
    %v240 = vld [vmem:[%s0 + $0x318] sm:$0xf]
    %v241 = vld [vmem:[%s0 + $0x31c] sm:$0xf]
    %v242 = vld [vmem:[%s0 + $0x320] sm:$0xf]
    %v243 = vld [vmem:[%s0 + $0x324] sm:$0xf]
    %v244 = vld [vmem:[%s0 + $0x328] sm:$0xf]
    %v245 = vld [vmem:[%s0 + $0x32c] sm:$0xf]
    %v246 = vld [vmem:[%s0 + $0x330] sm:$0xf]
    %v247 = vld [vmem:[%s0 + $0x334] sm:$0xf]
    %v248 = vld [vmem:[%s0 + $0x338] sm:$0xf]
    %v249 = vld [vmem:[%s0 + $0x33c] sm:$0xf]
    %v250 = vld [vmem:[%s0 + $0x340] sm:$0xf]
    %v251 = vld [vmem:[%s0 + $0x344] sm:$0xf]
    %v252 = vld [vmem:[%s0 + $0x348] sm:$0xf]
    %v253 = vld [vmem:[%s0 + $0x34c] sm:$0xf]
    %v254 = vld [vmem:[%s0 + $0x350] sm:$0xf]
    %v255 = vld [vmem:[%s0 + $0x354] sm:$0xf]
    %v256 = vld [vmem:[%s0 + $0x358] sm:$0xf]
    %v257 = vld [vmem:[%s0 + $0x35c] sm:$0xf]
    %v258 = vld [vmem:[%s0 + $0x360] sm:$0xf]
    %v259 = vld [vmem:[%s0 + $0x364] sm:$0xf]
    %v260 = vld [vmem:[%s0 + $0x368] sm:$0xf]
    %v261 = vld [vmem:[%s0 + $0x36c] sm:$0xf]
    %v262 = vld [vmem:[%s0 + $0x370] sm:$0xf]
    %v263 = vld [vmem:[%s0 + $0x374] sm:$0xf]
    %v264 = vld [vmem:[%s0 + $0x378] sm:$0xf]
    %v265 = vld [vmem:[%s0 + $0x37c] sm:$0xf]
    %v266 = vld [vmem:[%s0 + $0x380] sm:$0xf]
    %v267 = vld [vmem:[%s0 + $0x384] sm:$0xf]
    %v268 = vld [vmem:[%s0 + $0x388] sm:$0xf]
    %v269 = vld [vmem:[%s0 + $0x38c] sm:$0xf]
    %v270 = vld [vmem:[%s0 + $0x390] sm:$0xf]
    %v271 = vld [vmem:[%s0 + $0x394] sm:$0xf]
    %v272 = vld [vmem:[%s0 + $0x398] sm:$0xf]
    %v273 = vld [vmem:[%s0 + $0x39c] sm:$0xf]
    %v274 = vld [vmem:[%s0 + $0x3a0] sm:$0xf]
    %v275 = vld [vmem:[%s0 + $0x3a4] sm:$0xf]
    %v276 = vld [vmem:[%s0 + $0x3a8] sm:$0xf]
    %v277 = vld [vmem:[%s0 + $0x3ac] sm:$0xf]
    %v278 = vld [vmem:[%s0 + $0x3b0] sm:$0xf]
    %v279 = vld [vmem:[%s0 + $0x3b4] sm:$0xf]
    %v280 = vld [vmem:[%s0 + $0x3b8] sm:$0xf]
    %v281 = vld [vmem:[%s0 + $0x3bc] sm:$0xf]
    %v282 = vld [vmem:[%s0 + $0x3c0] sm:$0xf]
    %v283 = vld [vmem:[%s0 + $0x3c4] sm:$0xf]
    %v284 = vld [vmem:[%s0 + $0x3c8] sm:$0xf]
    %v285 = vld [vmem:[%s0 + $0x3cc] sm:$0xf]
    %v286 = vld [vmem:[%s0 + $0x3d0] sm:$0xf]
    %v287 = vld [vmem:[%s0 + $0x3d4] sm:$0xf]
    %v288 = vld [vmem:[%s0 + $0x3d8] sm:$0xf]
    %v289 = vld [vmem:[%s0 + $0x3dc] sm:$0xf]
    %v290 = vld [vmem:[%s0 + $0x3e0] sm:$0xf]
    %v291 = vld [vmem:[%s0 + $0x3e4] sm:$0xf]
    %v292 = vld [vmem:[%s0 + $0x3e8] sm:$0xf]
    %v293 = vld [vmem:[%s0 + $0x3ec] sm:$0xf]
    %v294 = vld [vmem:[%s0 + $0x3f0] sm:$0xf]
    %v295 = vld [vmem:[%s0 + $0x3f4] sm:$0xf]
    %v296 = vld [vmem:[%s0 + $0x3f8] sm:$0xf]
    %v297 = vld [vmem:[%s0 + $0x3fc] sm:$0xf]
    %v298 = vld [vmem:[%s1] sm:$0xf]
    %v299 = vld [vmem:[%s1 + $0x4] sm:$0xf]
    %v300 = vld [vmem:[%s1 + $0x8] sm:$0xf]
    %v301 = vld [vmem:[%s1 + $0xc] sm:$0xf]
    %v302 = vld [vmem:[%s1 + $0x10] sm:$0x3]
    %v303 = vld [vmem:[%s2] sm:$0x1]
    %v305 = vlaneseq
    %v306 = vshrl.u32 %v305, 7
    %v307 = vsub.s32 0, %v306
    %v308 = vrot.slane %v303, %v307
    %v566 = vunpack.c.l.b16 %v42
    %v567 = vunpack.c.l.b16 %v43
    %v568 = vunpack.c.l.b16 %v44
    %v569 = vunpack.c.l.b16 %v45
    %v570 = vunpack.c.l.b16 %v46
    %v571 = vunpack.c.l.b16 %v47
    %v572 = vunpack.c.l.b16 %v48
    %v573 = vunpack.c.l.b16 %v49
    %v574 = vunpack.c.l.b16 %v50
    %v575 = vunpack.c.l.b16 %v51
    %v576 = vunpack.c.l.b16 %v52
    %v577 = vunpack.c.l.b16 %v53
    %v578 = vunpack.c.l.b16 %v54
    %v579 = vunpack.c.l.b16 %v55
    %v580 = vunpack.c.l.b16 %v56
    %v581 = vunpack.c.l.b16 %v57
    %v582 = vunpack.c.l.b16 %v58
    %v583 = vunpack.c.l.b16 %v59
    %v584 = vunpack.c.l.b16 %v60
    %v585 = vunpack.c.l.b16 %v61
    %v586 = vunpack.c.l.b16 %v62
    %v587 = vunpack.c.l.b16 %v63
    %v588 = vunpack.c.l.b16 %v64
    %v589 = vunpack.c.l.b16 %v65
    %v590 = vunpack.c.l.b16 %v66
    %v591 = vunpack.c.l.b16 %v67
    %v592 = vunpack.c.l.b16 %v68
    %v593 = vunpack.c.l.b16 %v69
    %v594 = vunpack.c.l.b16 %v70
    %v595 = vunpack.c.l.b16 %v71
    %v596 = vunpack.c.l.b16 %v72
    %v597 = vunpack.c.l.b16 %v73
    %v598 = vunpack.c.l.b16 %v74
    %v599 = vunpack.c.l.b16 %v75
    %v600 = vunpack.c.l.b16 %v76
    %v601 = vunpack.c.l.b16 %v77
    %v602 = vunpack.c.l.b16 %v78
    %v603 = vunpack.c.l.b16 %v79
    %v604 = vunpack.c.l.b16 %v80
    %v605 = vunpack.c.l.b16 %v81
    %v606 = vunpack.c.l.b16 %v82
    %v607 = vunpack.c.l.b16 %v83
    %v608 = vunpack.c.l.b16 %v84
    %v609 = vunpack.c.l.b16 %v85
    %v610 = vunpack.c.l.b16 %v86
    %v611 = vunpack.c.l.b16 %v87
    %v612 = vunpack.c.l.b16 %v88
    %v613 = vunpack.c.l.b16 %v89
    %v614 = vunpack.c.l.b16 %v90
    %v615 = vunpack.c.l.b16 %v91
    %v616 = vunpack.c.l.b16 %v92
    %v617 = vunpack.c.l.b16 %v93
    %v618 = vunpack.c.l.b16 %v94
    %v619 = vunpack.c.l.b16 %v95
    %v620 = vunpack.c.l.b16 %v96
    %v621 = vunpack.c.l.b16 %v97
    %v622 = vunpack.c.l.b16 %v98
    %v623 = vunpack.c.l.b16 %v99
    %v624 = vunpack.c.l.b16 %v100
    %v625 = vunpack.c.l.b16 %v101
    %v626 = vunpack.c.l.b16 %v102
    %v627 = vunpack.c.l.b16 %v103
    %v628 = vunpack.c.l.b16 %v104
    %v629 = vunpack.c.l.b16 %v105
    %v630 = vunpack.c.l.b16 %v106
    %v631 = vunpack.c.l.b16 %v107
    %v632 = vunpack.c.l.b16 %v108
    %v633 = vunpack.c.l.b16 %v109
    %v634 = vunpack.c.l.b16 %v110
    %v635 = vunpack.c.l.b16 %v111
    %v636 = vunpack.c.l.b16 %v112
    %v637 = vunpack.c.l.b16 %v113
    %v638 = vunpack.c.l.b16 %v114
    %v639 = vunpack.c.l.b16 %v115
    %v640 = vunpack.c.l.b16 %v116
    %v641 = vunpack.c.l.b16 %v117
    %v642 = vunpack.c.l.b16 %v118
    %v643 = vunpack.c.l.b16 %v119
    %v644 = vunpack.c.l.b16 %v120
    %v645 = vunpack.c.l.b16 %v121
    %v646 = vunpack.c.l.b16 %v122
    %v647 = vunpack.c.l.b16 %v123
    %v648 = vunpack.c.l.b16 %v124
    %v649 = vunpack.c.l.b16 %v125
    %v650 = vunpack.c.l.b16 %v126
    %v651 = vunpack.c.l.b16 %v127
    %v652 = vunpack.c.l.b16 %v128
    %v653 = vunpack.c.l.b16 %v129
    %v654 = vunpack.c.l.b16 %v130
    %v655 = vunpack.c.l.b16 %v131
    %v656 = vunpack.c.l.b16 %v132
    %v657 = vunpack.c.l.b16 %v133
    %v658 = vunpack.c.l.b16 %v134
    %v659 = vunpack.c.l.b16 %v135
    %v660 = vunpack.c.l.b16 %v136
    %v661 = vunpack.c.l.b16 %v137
    %v662 = vunpack.c.l.b16 %v138
    %v663 = vunpack.c.l.b16 %v139
    %v664 = vunpack.c.l.b16 %v140
    %v665 = vunpack.c.l.b16 %v141
    %v666 = vunpack.c.l.b16 %v142
    %v667 = vunpack.c.l.b16 %v143
    %v668 = vunpack.c.l.b16 %v144
    %v669 = vunpack.c.l.b16 %v145
    %v670 = vunpack.c.l.b16 %v146
    %v671 = vunpack.c.l.b16 %v147
    %v672 = vunpack.c.l.b16 %v148
    %v673 = vunpack.c.l.b16 %v149
    %v674 = vunpack.c.l.b16 %v150
    %v675 = vunpack.c.l.b16 %v151
    %v676 = vunpack.c.l.b16 %v152
    %v677 = vunpack.c.l.b16 %v153
    %v678 = vunpack.c.l.b16 %v154
    %v679 = vunpack.c.l.b16 %v155
    %v680 = vunpack.c.l.b16 %v156
    %v681 = vunpack.c.l.b16 %v157
    %v682 = vunpack.c.l.b16 %v158
    %v683 = vunpack.c.l.b16 %v159
    %v684 = vunpack.c.l.b16 %v160
    %v685 = vunpack.c.l.b16 %v161
    %v686 = vunpack.c.l.b16 %v162
    %v687 = vunpack.c.l.b16 %v163
    %v688 = vunpack.c.l.b16 %v164
    %v689 = vunpack.c.l.b16 %v165
    %v690 = vunpack.c.l.b16 %v166
    %v691 = vunpack.c.l.b16 %v167
    %v692 = vunpack.c.l.b16 %v168
    %v693 = vunpack.c.l.b16 %v169
    %v694 = vunpack.c.l.b16 %v170
    %v695 = vunpack.c.l.b16 %v171
    %v696 = vunpack.c.l.b16 %v172
    %v697 = vunpack.c.l.b16 %v173
    %v698 = vunpack.c.l.b16 %v174
    %v699 = vunpack.c.l.b16 %v175
    %v700 = vunpack.c.l.b16 %v176
    %v701 = vunpack.c.l.b16 %v177
    %v702 = vunpack.c.l.b16 %v178
    %v703 = vunpack.c.l.b16 %v179
    %v704 = vunpack.c.l.b16 %v180
    %v705 = vunpack.c.l.b16 %v181
    %v706 = vunpack.c.l.b16 %v182
    %v707 = vunpack.c.l.b16 %v183
    %v708 = vunpack.c.l.b16 %v184
    %v709 = vunpack.c.l.b16 %v185
    %v710 = vunpack.c.l.b16 %v186
    %v711 = vunpack.c.l.b16 %v187
    %v712 = vunpack.c.l.b16 %v188
    %v713 = vunpack.c.l.b16 %v189
    %v714 = vunpack.c.l.b16 %v190
    %v715 = vunpack.c.l.b16 %v191
    %v716 = vunpack.c.l.b16 %v192
    %v717 = vunpack.c.l.b16 %v193
    %v718 = vunpack.c.l.b16 %v194
    %v719 = vunpack.c.l.b16 %v195
    %v720 = vunpack.c.l.b16 %v196
    %v721 = vunpack.c.l.b16 %v197
    %v722 = vunpack.c.l.b16 %v198
    %v723 = vunpack.c.l.b16 %v199
    %v724 = vunpack.c.l.b16 %v200
    %v725 = vunpack.c.l.b16 %v201
    %v726 = vunpack.c.l.b16 %v202
    %v727 = vunpack.c.l.b16 %v203
    %v728 = vunpack.c.l.b16 %v204
    %v729 = vunpack.c.l.b16 %v205
    %v730 = vunpack.c.l.b16 %v206
    %v731 = vunpack.c.l.b16 %v207
    %v732 = vunpack.c.l.b16 %v208
    %v733 = vunpack.c.l.b16 %v209
    %v734 = vunpack.c.l.b16 %v210
    %v735 = vunpack.c.l.b16 %v211
    %v736 = vunpack.c.l.b16 %v212
    %v737 = vunpack.c.l.b16 %v213
    %v738 = vunpack.c.l.b16 %v214
    %v739 = vunpack.c.l.b16 %v215
    %v740 = vunpack.c.l.b16 %v216
    %v741 = vunpack.c.l.b16 %v217
    %v742 = vunpack.c.l.b16 %v218
    %v743 = vunpack.c.l.b16 %v219
    %v744 = vunpack.c.l.b16 %v220
    %v745 = vunpack.c.l.b16 %v221
    %v746 = vunpack.c.l.b16 %v222
    %v747 = vunpack.c.l.b16 %v223
    %v748 = vunpack.c.l.b16 %v224
    %v749 = vunpack.c.l.b16 %v225
    %v750 = vunpack.c.l.b16 %v226
    %v751 = vunpack.c.l.b16 %v227
    %v752 = vunpack.c.l.b16 %v228
    %v753 = vunpack.c.l.b16 %v229
    %v754 = vunpack.c.l.b16 %v230
    %v755 = vunpack.c.l.b16 %v231
    %v756 = vunpack.c.l.b16 %v232
    %v757 = vunpack.c.l.b16 %v233
    %v758 = vunpack.c.l.b16 %v234
    %v759 = vunpack.c.l.b16 %v235
    %v760 = vunpack.c.l.b16 %v236
    %v761 = vunpack.c.l.b16 %v237
    %v762 = vunpack.c.l.b16 %v238
    %v763 = vunpack.c.l.b16 %v239
    %v764 = vunpack.c.l.b16 %v240
    %v765 = vunpack.c.l.b16 %v241
    %v766 = vunpack.c.l.b16 %v242
    %v767 = vunpack.c.l.b16 %v243
    %v768 = vunpack.c.l.b16 %v244
    %v769 = vunpack.c.l.b16 %v245
    %v770 = vunpack.c.l.b16 %v246
    %v771 = vunpack.c.l.b16 %v247
    %v772 = vunpack.c.l.b16 %v248
    %v773 = vunpack.c.l.b16 %v249
    %v774 = vunpack.c.l.b16 %v250
    %v775 = vunpack.c.l.b16 %v251
    %v776 = vunpack.c.l.b16 %v252
    %v777 = vunpack.c.l.b16 %v253
    %v778 = vunpack.c.l.b16 %v254
    %v779 = vunpack.c.l.b16 %v255
    %v780 = vunpack.c.l.b16 %v256
    %v781 = vunpack.c.l.b16 %v257
    %v782 = vunpack.c.l.b16 %v258
    %v783 = vunpack.c.l.b16 %v259
    %v784 = vunpack.c.l.b16 %v260
    %v785 = vunpack.c.l.b16 %v261
    %v786 = vunpack.c.l.b16 %v262
    %v787 = vunpack.c.l.b16 %v263
    %v788 = vunpack.c.l.b16 %v264
    %v789 = vunpack.c.l.b16 %v265
    %v790 = vunpack.c.l.b16 %v266
    %v791 = vunpack.c.l.b16 %v267
    %v792 = vunpack.c.l.b16 %v268
    %v793 = vunpack.c.l.b16 %v269
    %v794 = vunpack.c.l.b16 %v270
    %v795 = vunpack.c.l.b16 %v271
    %v796 = vunpack.c.l.b16 %v272
    %v797 = vunpack.c.l.b16 %v273
    %v798 = vunpack.c.l.b16 %v274
    %v799 = vunpack.c.l.b16 %v275
    %v800 = vunpack.c.l.b16 %v276
    %v801 = vunpack.c.l.b16 %v277
    %v802 = vunpack.c.l.b16 %v278
    %v803 = vunpack.c.l.b16 %v279
    %v804 = vunpack.c.l.b16 %v280
    %v805 = vunpack.c.l.b16 %v281
    %v806 = vunpack.c.l.b16 %v282
    %v807 = vunpack.c.l.b16 %v283
    %v808 = vunpack.c.l.b16 %v284
    %v809 = vunpack.c.l.b16 %v285
    %v810 = vunpack.c.l.b16 %v286
    %v811 = vunpack.c.l.b16 %v287
    %v812 = vunpack.c.l.b16 %v288
    %v813 = vunpack.c.l.b16 %v289
    %v814 = vunpack.c.l.b16 %v290
    %v815 = vunpack.c.l.b16 %v291
    %v816 = vunpack.c.l.b16 %v292
    %v817 = vunpack.c.l.b16 %v293
    %v818 = vunpack.c.l.b16 %v294
    %v819 = vunpack.c.l.b16 %v295
    %v820 = vunpack.c.l.b16 %v296
    %v821 = vunpack.c.l.b16 %v297
    %v822 = vpack.c.b16 %v567, %v566
    %v823 = vpack.c.b16 %v569, %v568
    %v824 = vpack.c.b16 %v571, %v570
    %v825 = vpack.c.b16 %v573, %v572
    %v826 = vpack.c.b16 %v575, %v574
    %v827 = vpack.c.b16 %v577, %v576
    %v828 = vpack.c.b16 %v579, %v578
    %v829 = vpack.c.b16 %v581, %v580
    %v830 = vpack.c.b16 %v583, %v582
    %v831 = vpack.c.b16 %v585, %v584
    %v832 = vpack.c.b16 %v587, %v586
    %v833 = vpack.c.b16 %v589, %v588
    %v834 = vpack.c.b16 %v591, %v590
    %v835 = vpack.c.b16 %v593, %v592
    %v836 = vpack.c.b16 %v595, %v594
    %v837 = vpack.c.b16 %v597, %v596
    %v838 = vpack.c.b16 %v599, %v598
    %v839 = vpack.c.b16 %v601, %v600
    %v840 = vpack.c.b16 %v603, %v602
    %v841 = vpack.c.b16 %v605, %v604
    %v842 = vpack.c.b16 %v607, %v606
    %v843 = vpack.c.b16 %v609, %v608
    %v844 = vpack.c.b16 %v611, %v610
    %v845 = vpack.c.b16 %v613, %v612
    %v846 = vpack.c.b16 %v615, %v614
    %v847 = vpack.c.b16 %v617, %v616
    %v848 = vpack.c.b16 %v619, %v618
    %v849 = vpack.c.b16 %v621, %v620
    %v850 = vpack.c.b16 %v623, %v622
    %v851 = vpack.c.b16 %v625, %v624
    %v852 = vpack.c.b16 %v627, %v626
    %v853 = vpack.c.b16 %v629, %v628
    %v854 = vpack.c.b16 %v631, %v630
    %v855 = vpack.c.b16 %v633, %v632
    %v856 = vpack.c.b16 %v635, %v634
    %v857 = vpack.c.b16 %v637, %v636
    %v858 = vpack.c.b16 %v639, %v638
    %v859 = vpack.c.b16 %v641, %v640
    %v860 = vpack.c.b16 %v643, %v642
    %v861 = vpack.c.b16 %v645, %v644
    %v862 = vpack.c.b16 %v647, %v646
    %v863 = vpack.c.b16 %v649, %v648
    %v864 = vpack.c.b16 %v651, %v650
    %v865 = vpack.c.b16 %v653, %v652
    %v866 = vpack.c.b16 %v655, %v654
    %v867 = vpack.c.b16 %v657, %v656
    %v868 = vpack.c.b16 %v659, %v658
    %v869 = vpack.c.b16 %v661, %v660
    %v870 = vpack.c.b16 %v663, %v662
    %v871 = vpack.c.b16 %v665, %v664
    %v872 = vpack.c.b16 %v667, %v666
    %v873 = vpack.c.b16 %v669, %v668
    %v874 = vpack.c.b16 %v671, %v670
    %v875 = vpack.c.b16 %v673, %v672
    %v876 = vpack.c.b16 %v675, %v674
    %v877 = vpack.c.b16 %v677, %v676
    %v878 = vpack.c.b16 %v679, %v678
    %v879 = vpack.c.b16 %v681, %v680
    %v880 = vpack.c.b16 %v683, %v682
    %v881 = vpack.c.b16 %v685, %v684
    %v882 = vpack.c.b16 %v687, %v686
    %v883 = vpack.c.b16 %v689, %v688
    %v884 = vpack.c.b16 %v691, %v690
    %v885 = vpack.c.b16 %v693, %v692
    %v886 = vpack.c.b16 %v695, %v694
    %v887 = vpack.c.b16 %v697, %v696
    %v888 = vpack.c.b16 %v699, %v698
    %v889 = vpack.c.b16 %v701, %v700
    %v890 = vpack.c.b16 %v703, %v702
    %v891 = vpack.c.b16 %v705, %v704
    %v892 = vpack.c.b16 %v707, %v706
    %v893 = vpack.c.b16 %v709, %v708
    %v894 = vpack.c.b16 %v711, %v710
    %v895 = vpack.c.b16 %v713, %v712
    %v896 = vpack.c.b16 %v715, %v714
    %v897 = vpack.c.b16 %v717, %v716
    %v898 = vpack.c.b16 %v719, %v718
    %v899 = vpack.c.b16 %v721, %v720
    %v900 = vpack.c.b16 %v723, %v722
    %v901 = vpack.c.b16 %v725, %v724
    %v902 = vpack.c.b16 %v727, %v726
    %v903 = vpack.c.b16 %v729, %v728
    %v904 = vpack.c.b16 %v731, %v730
    %v905 = vpack.c.b16 %v733, %v732
    %v906 = vpack.c.b16 %v735, %v734
    %v907 = vpack.c.b16 %v737, %v736
    %v908 = vpack.c.b16 %v739, %v738
    %v909 = vpack.c.b16 %v741, %v740
    %v910 = vpack.c.b16 %v743, %v742
    %v911 = vpack.c.b16 %v745, %v744
    %v912 = vpack.c.b16 %v747, %v746
    %v913 = vpack.c.b16 %v749, %v748
    %v914 = vpack.c.b16 %v751, %v750
    %v915 = vpack.c.b16 %v753, %v752
    %v916 = vpack.c.b16 %v755, %v754
    %v917 = vpack.c.b16 %v757, %v756
    %v918 = vpack.c.b16 %v759, %v758
    %v919 = vpack.c.b16 %v761, %v760
    %v920 = vpack.c.b16 %v763, %v762
    %v921 = vpack.c.b16 %v765, %v764
    %v922 = vpack.c.b16 %v767, %v766
    %v923 = vpack.c.b16 %v769, %v768
    %v924 = vpack.c.b16 %v771, %v770
    %v925 = vpack.c.b16 %v773, %v772
    %v926 = vpack.c.b16 %v775, %v774
    %v927 = vpack.c.b16 %v777, %v776
    %v928 = vpack.c.b16 %v779, %v778
    %v929 = vpack.c.b16 %v781, %v780
    %v930 = vpack.c.b16 %v783, %v782
    %v931 = vpack.c.b16 %v785, %v784
    %v932 = vpack.c.b16 %v787, %v786
    %v933 = vpack.c.b16 %v789, %v788
    %v934 = vpack.c.b16 %v791, %v790
    %v935 = vpack.c.b16 %v793, %v792
    %v936 = vpack.c.b16 %v795, %v794
    %v937 = vpack.c.b16 %v797, %v796
    %v938 = vpack.c.b16 %v799, %v798
    %v939 = vpack.c.b16 %v801, %v800
    %v940 = vpack.c.b16 %v803, %v802
    %v941 = vpack.c.b16 %v805, %v804
    %v942 = vpack.c.b16 %v807, %v806
    %v943 = vpack.c.b16 %v809, %v808
    %v944 = vpack.c.b16 %v811, %v810
    %v945 = vpack.c.b16 %v813, %v812
    %v946 = vpack.c.b16 %v815, %v814
    %v947 = vpack.c.b16 %v817, %v816
    %v948 = vpack.c.b16 %v819, %v818
    %v949 = vpack.c.b16 %v821, %v820
    %v955 = vunpack.c.l.b16 %v298
    %v956 = vunpack.c.l.b16 %v299
    %v957 = vunpack.c.l.b16 %v300
    %v958 = vunpack.c.l.b16 %v301
    %v959 = vunpack.c.l.b16 %v302
    %v960 = vpack.c.b16 %v956, %v955
    %v961 = vpack.c.b16 %v958, %v957
    %v962 = vpack.c.b16 %v959, %v959
    %vm965 = vcmask 293888
    %v967 = vsel %vm965, %v822, 0
    %v970 = vsel %vm965, %v823, 0
    %v973 = vsel %vm965, %v824, 0
    %v976 = vsel %vm965, %v825, 0
    %v979 = vsel %vm965, %v826, 0
    %v982 = vsel %vm965, %v827, 0
    %v985 = vsel %vm965, %v828, 0
    %v988 = vsel %vm965, %v829, 0
    %v991 = vsel %vm965, %v830, 0
    %v994 = vsel %vm965, %v831, 0
    %v997 = vsel %vm965, %v832, 0
    %v1000 = vsel %vm965, %v833, 0
    %v1003 = vsel %vm965, %v834, 0
    %v1006 = vsel %vm965, %v835, 0
    %v1009 = vsel %vm965, %v836, 0
    %v1012 = vsel %vm965, %v837, 0
    %v1015 = vsel %vm965, %v838, 0
    %v1018 = vsel %vm965, %v839, 0
    %v1021 = vsel %vm965, %v840, 0
    %v1024 = vsel %vm965, %v841, 0
    %v1027 = vsel %vm965, %v842, 0
    %v1030 = vsel %vm965, %v843, 0
    %v1033 = vsel %vm965, %v844, 0
    %v1036 = vsel %vm965, %v845, 0
    %v1039 = vsel %vm965, %v846, 0
    %v1042 = vsel %vm965, %v847, 0
    %v1045 = vsel %vm965, %v848, 0
    %v1048 = vsel %vm965, %v849, 0
    %v1051 = vsel %vm965, %v850, 0
    %v1054 = vsel %vm965, %v851, 0
    %v1057 = vsel %vm965, %v852, 0
    %v1060 = vsel %vm965, %v853, 0
    %v1063 = vsel %vm965, %v854, 0
    %v1066 = vsel %vm965, %v855, 0
    %v1069 = vsel %vm965, %v856, 0
    %v1072 = vsel %vm965, %v857, 0
    %v1075 = vsel %vm965, %v858, 0
    %v1078 = vsel %vm965, %v859, 0
    %v1081 = vsel %vm965, %v860, 0
    %v1084 = vsel %vm965, %v861, 0
    %v1087 = vsel %vm965, %v862, 0
    %v1090 = vsel %vm965, %v863, 0
    %v1093 = vsel %vm965, %v864, 0
    %v1096 = vsel %vm965, %v865, 0
    %v1099 = vsel %vm965, %v866, 0
    %v1102 = vsel %vm965, %v867, 0
    %v1105 = vsel %vm965, %v868, 0
    %v1108 = vsel %vm965, %v869, 0
    %v1111 = vsel %vm965, %v870, 0
    %v1114 = vsel %vm965, %v871, 0
    %v1117 = vsel %vm965, %v872, 0
    %v1120 = vsel %vm965, %v873, 0
    %v1123 = vsel %vm965, %v874, 0
    %v1126 = vsel %vm965, %v875, 0
    %v1129 = vsel %vm965, %v876, 0
    %v1132 = vsel %vm965, %v877, 0
    %v1135 = vsel %vm965, %v878, 0
    %v1138 = vsel %vm965, %v879, 0
    %v1141 = vsel %vm965, %v880, 0
    %v1144 = vsel %vm965, %v881, 0
    %v1147 = vsel %vm965, %v882, 0
    %v1150 = vsel %vm965, %v883, 0
    %v1153 = vsel %vm965, %v884, 0
    %v1156 = vsel %vm965, %v885, 0
    %v1159 = vsel %vm965, %v886, 0
    %v1162 = vsel %vm965, %v887, 0
    %v1165 = vsel %vm965, %v888, 0
    %v1168 = vsel %vm965, %v889, 0
    %v1171 = vsel %vm965, %v890, 0
    %v1174 = vsel %vm965, %v891, 0
    %v1177 = vsel %vm965, %v892, 0
    %v1180 = vsel %vm965, %v893, 0
    %v1183 = vsel %vm965, %v894, 0
    %v1186 = vsel %vm965, %v895, 0
    %v1189 = vsel %vm965, %v896, 0
    %v1192 = vsel %vm965, %v897, 0
    %v1195 = vsel %vm965, %v898, 0
    %v1198 = vsel %vm965, %v899, 0
    %v1201 = vsel %vm965, %v900, 0
    %v1204 = vsel %vm965, %v901, 0
    %v1207 = vsel %vm965, %v902, 0
    %v1210 = vsel %vm965, %v903, 0
    %v1213 = vsel %vm965, %v904, 0
    %v1216 = vsel %vm965, %v905, 0
    %v1219 = vsel %vm965, %v906, 0
    %v1222 = vsel %vm965, %v907, 0
    %v1225 = vsel %vm965, %v908, 0
    %v1228 = vsel %vm965, %v909, 0
    %v1231 = vsel %vm965, %v910, 0
    %v1234 = vsel %vm965, %v911, 0
    %v1237 = vsel %vm965, %v912, 0
    %v1240 = vsel %vm965, %v913, 0
    %v1243 = vsel %vm965, %v914, 0
    %v1246 = vsel %vm965, %v915, 0
    %v1249 = vsel %vm965, %v916, 0
    %v1252 = vsel %vm965, %v917, 0
    %v1255 = vsel %vm965, %v918, 0
    %v1258 = vsel %vm965, %v919, 0
    %v1261 = vsel %vm965, %v920, 0
    %v1264 = vsel %vm965, %v921, 0
    %v1267 = vsel %vm965, %v922, 0
    %v1270 = vsel %vm965, %v923, 0
    %v1273 = vsel %vm965, %v924, 0
    %v1276 = vsel %vm965, %v925, 0
    %v1279 = vsel %vm965, %v926, 0
    %v1282 = vsel %vm965, %v927, 0
    %v1285 = vsel %vm965, %v928, 0
    %v1288 = vsel %vm965, %v929, 0
    %v1291 = vsel %vm965, %v930, 0
    %v1294 = vsel %vm965, %v931, 0
    %v1297 = vsel %vm965, %v932, 0
    %v1300 = vsel %vm965, %v933, 0
    %v1303 = vsel %vm965, %v934, 0
    %v1306 = vsel %vm965, %v935, 0
    %v1309 = vsel %vm965, %v936, 0
    %v1312 = vsel %vm965, %v937, 0
    %v1315 = vsel %vm965, %v938, 0
    %v1318 = vsel %vm965, %v939, 0
    %v1321 = vsel %vm965, %v940, 0
    %v1324 = vsel %vm965, %v941, 0
    %v1327 = vsel %vm965, %v942, 0
    %v1330 = vsel %vm965, %v943, 0
    %v1333 = vsel %vm965, %v944, 0
    %v1336 = vsel %vm965, %v945, 0
    %v1339 = vsel %vm965, %v946, 0
    %v1342 = vsel %vm965, %v947, 0
    %v1345 = vsel %vm965, %v948, 0
    %v1348 = vsel %vm965, %v949, 0
    %vm1350 = vcmask 1041408
    %v1352 = vsel %vm1350, %v962, 0
    %1354 = vmatprep.subr.bf16.mxu0 0
    %1355 = vmatpush1.bf16.msra.mxu0 %v960
    %1356 = vmatprep.subr.bf16.mxu0 0
    %1357 = vmatpush1.bf16.msra.mxu0 %v961
    %1358 = vmatprep.subr.bf16.mxu0 0
    %1359 = vmatpush1.bf16.msra.mxu0 %v1352
    %1360 = vmatprep.subr.bf16.mxu0 0
    %1361 = vmatpush1.bf16.msra.mxu0 0
    %1362 = vmatprep.subr.bf16.mxu0 0
    %1363 = vmatpush1.bf16.msra.mxu0 0
    %1364 = vmatprep.subr.bf16.mxu0 0
    %1365 = vmatpush1.bf16.msra.mxu0 0
    %1366 = vmatprep.subr.bf16.mxu0 0
    %1367 = vmatpush1.bf16.msra.mxu0 0
    %1368 = vmatprep.subr.bf16.mxu0 0
    %1369 = vmatpush1.bf16.msra.mxu0 0
    %1370 = vmatprep.subr.bf16.mxu0 0
    %1371 = vmatpush1.bf16.msra.mxu0 0
    %1372 = vmatprep.subr.bf16.mxu0 0
    %1373 = vmatpush1.bf16.msra.mxu0 0
    %1374 = vmatprep.subr.bf16.mxu0 0
    %1375 = vmatpush1.bf16.msra.mxu0 0
    %1376 = vmatprep.subr.bf16.mxu0 0
    %1377 = vmatpush1.bf16.msra.mxu0 0
    %1378 = vmatprep.subr.bf16.mxu0 0
    %1379 = vmatpush1.bf16.msra.mxu0 0
    %1380 = vmatprep.subr.bf16.mxu0 0
    %1381 = vmatpush1.bf16.msra.mxu0 0
    %1382 = vmatprep.subr.bf16.mxu0 0
    %1383 = vmatpush1.bf16.msra.mxu0 0
    %1384 = vmatprep.subr.bf16.mxu0 0
    %1385 = vmatpush1.bf16.msra.mxu0 0
    %1386 = vmatprep.mubr.bf16.mxu0 0
    %1387 = vmatmul.mubr.bf16.gmra.mrb[0].mxu0 %v967
    %v1388 = vpop.f32.mrb[0].mxu0
    %v1389 = vadd.f32 %v308, %v1388
    %v1390 = vpop.f32.mrb[0].mxu0
    %v1391 = vpop.f32.mrb[0].mxu0
    %v1392 = vadd.f32 %v308, %v1391
    %v1393 = vpop.f32.mrb[0].mxu0
    %1394 = vmatprep.mubr.bf16.mxu0 0
    %1395 = vmatmul.mubr.bf16.gmra.mrb[0].mxu0 %v970
    %v1396 = vpop.f32.mrb[0].mxu0
    %v1397 = vadd.f32 %v308, %v1396
    %v1398 = vpop.f32.mrb[0].mxu0
    %v1399 = vpop.f32.mrb[0].mxu0
    %v1400 = vadd.f32 %v308, %v1399
    %v1401 = vpop.f32.mrb[0].mxu0
    %1402 = vmatprep.mubr.bf16.mxu0 0
    %1403 = vmatmul.mubr.bf16.gmra.mrb[0].mxu0 %v973
    %v1404 = vpop.f32.mrb[0].mxu0
    %v1405 = vadd.f32 %v308, %v1404
    %v1406 = vpop.f32.mrb[0].mxu0
    %v1407 = vpop.f32.mrb[0].mxu0
    %v1408 = vadd.f32 %v308, %v1407
    %v1409 = vpop.f32.mrb[0].mxu0
    %1410 = vmatprep.mubr.bf16.mxu0 0
    %1411 = vmatmul.mubr.bf16.gmra.mrb[0].mxu0 %v976
    %v1412 = vpop.f32.mrb[0].mxu0
    %v1413 = vadd.f32 %v308, %v1412
    %v1414 = vpop.f32.mrb[0].mxu0
    %v1415 = vpop.f32.mrb[0].mxu0
    %v1416 = vadd.f32 %v308, %v1415
    %v1417 = vpop.f32.mrb[0].mxu0
    %1418 = vmatprep.mubr.bf16.mxu0 0
    %1419 = vmatmul.mubr.bf16.gmra.mrb[0].mxu0 %v979
    %v1420 = vpop.f32.mrb[0].mxu0
    %v1421 = vadd.f32 %v308, %v1420
    %v1422 = vpop.f32.mrb[0].mxu0
    %v1423 = vpop.f32.mrb[0].mxu0
    %v1424 = vadd.f32 %v308, %v1423
    %v1425 = vpop.f32.mrb[0].mxu0
    %1426 = vmatprep.mubr.bf16.mxu0 0
    %1427 = vmatmul.mubr.bf16.gmra.mrb[0].mxu0 %v982
    %v1428 = vpop.f32.mrb[0].mxu0
    %v1429 = vadd.f32 %v308, %v1428
    %v1430 = vpop.f32.mrb[0].mxu0
    %v1431 = vpop.f32.mrb[0].mxu0
    %v1432 = vadd.f32 %v308, %v1431
    %v1433 = vpop.f32.mrb[0].mxu0
    %1434 = vmatprep.mubr.bf16.mxu0 0
    %1435 = vmatmul.mubr.bf16.gmra.mrb[0].mxu0 %v985
    %v1436 = vpop.f32.mrb[0].mxu0
    %v1437 = vadd.f32 %v308, %v1436
    %v1438 = vpop.f32.mrb[0].mxu0
    %v1439 = vpop.f32.mrb[0].mxu0
    %v1440 = vadd.f32 %v308, %v1439
    %v1441 = vpop.f32.mrb[0].mxu0
    %1442 = vmatprep.mubr.bf16.mxu0 0
    %1443 = vmatmul.mubr.bf16.gmra.mrb[0].mxu0 %v988
    %v1444 = vpop.f32.mrb[0].mxu0
    %v1445 = vadd.f32 %v308, %v1444
    %v1446 = vpop.f32.mrb[0].mxu0
    %v1447 = vpop.f32.mrb[0].mxu0
    %v1448 = vadd.f32 %v308, %v1447
    %v1449 = vpop.f32.mrb[0].mxu0
    %1450 = vmatprep.mubr.bf16.mxu0 0
    %1451 = vmatmul.mubr.bf16.gmra.mrb[0].mxu0 %v991
    %v1452 = vpop.f32.mrb[0].mxu0
    %v1453 = vadd.f32 %v308, %v1452
    %v1454 = vpop.f32.mrb[0].mxu0
    %v1455 = vpop.f32.mrb[0].mxu0
    %v1456 = vadd.f32 %v308, %v1455
    %v1457 = vpop.f32.mrb[0].mxu0
    %1458 = vmatprep.mubr.bf16.mxu0 0
    %1459 = vmatmul.mubr.bf16.gmra.mrb[0].mxu0 %v994
    %v1460 = vpop.f32.mrb[0].mxu0
    %v1461 = vadd.f32 %v308, %v1460
    %v1462 = vpop.f32.mrb[0].mxu0
    %v1463 = vpop.f32.mrb[0].mxu0
    %v1464 = vadd.f32 %v308, %v1463
    %v1465 = vpop.f32.mrb[0].mxu0
    %1466 = vmatprep.mubr.bf16.mxu0 0
    %1467 = vmatmul.mubr.bf16.gmra.mrb[0].mxu0 %v997
    %v1468 = vpop.f32.mrb[0].mxu0
    %v1469 = vadd.f32 %v308, %v1468
    %v1470 = vpop.f32.mrb[0].mxu0
    %v1471 = vpop.f32.mrb[0].mxu0
    %v1472 = vadd.f32 %v308, %v1471
    %v1473 = vpop.f32.mrb[0].mxu0
    %1474 = vmatprep.mubr.bf16.mxu0 0
    %1475 = vmatmul.mubr.bf16.gmra.mrb[0].mxu0 %v1000
    %v1476 = vpop.f32.mrb[0].mxu0
    %v1477 = vadd.f32 %v308, %v1476
    %v1478 = vpop.f32.mrb[0].mxu0
    %v1479 = vpop.f32.mrb[0].mxu0
    %v1480 = vadd.f32 %v308, %v1479
    %v1481 = vpop.f32.mrb[0].mxu0
    %1482 = vmatprep.mubr.bf16.mxu0 0
    %1483 = vmatmul.mubr.bf16.gmra.mrb[0].mxu0 %v1003
    %v1484 = vpop.f32.mrb[0].mxu0
    %v1485 = vadd.f32 %v308, %v1484
    %v1486 = vpop.f32.mrb[0].mxu0
    %v1487 = vpop.f32.mrb[0].mxu0
    %v1488 = vadd.f32 %v308, %v1487
    %v1489 = vpop.f32.mrb[0].mxu0
    %1490 = vmatprep.mubr.bf16.mxu0 0
    %1491 = vmatmul.mubr.bf16.gmra.mrb[0].mxu0 %v1006
    %v1492 = vpop.f32.mrb[0].mxu0
    %v1493 = vadd.f32 %v308, %v1492
    %v1494 = vpop.f32.mrb[0].mxu0
    %v1495 = vpop.f32.mrb[0].mxu0
    %v1496 = vadd.f32 %v308, %v1495
    %v1497 = vpop.f32.mrb[0].mxu0
    %1498 = vmatprep.mubr.bf16.mxu0 0
    %1499 = vmatmul.mubr.bf16.gmra.mrb[0].mxu0 %v1009
    %v1500 = vpop.f32.mrb[0].mxu0
    %v1501 = vadd.f32 %v308, %v1500
    %v1502 = vpop.f32.mrb[0].mxu0
    %v1503 = vpop.f32.mrb[0].mxu0
    %v1504 = vadd.f32 %v308, %v1503
    %v1505 = vpop.f32.mrb[0].mxu0
    %1506 = vmatprep.mubr.bf16.mxu0 0
    %1507 = vmatmul.mubr.bf16.gmra.mrb[0].mxu0 %v1012
    %v1508 = vpop.f32.mrb[0].mxu0
    %v1509 = vadd.f32 %v308, %v1508
    %v1510 = vpop.f32.mrb[0].mxu0
    %v1511 = vpop.f32.mrb[0].mxu0
    %v1512 = vadd.f32 %v308, %v1511
    %v1513 = vpop.f32.mrb[0].mxu0
    %1514 = vmatprep.mubr.bf16.mxu0 0
    %1515 = vmatmul.mubr.bf16.gmra.mrb[0].mxu0 %v1015
    %v1516 = vpop.f32.mrb[0].mxu0
    %v1517 = vadd.f32 %v308, %v1516
    %v1518 = vpop.f32.mrb[0].mxu0
    %v1519 = vpop.f32.mrb[0].mxu0
    %v1520 = vadd.f32 %v308, %v1519
    %v1521 = vpop.f32.mrb[0].mxu0
    %1522 = vmatprep.mubr.bf16.mxu0 0
    %1523 = vmatmul.mubr.bf16.gmra.mrb[0].mxu0 %v1018
    %v1524 = vpop.f32.mrb[0].mxu0
    %v1525 = vadd.f32 %v308, %v1524
    %v1526 = vpop.f32.mrb[0].mxu0
    %v1527 = vpop.f32.mrb[0].mxu0
    %v1528 = vadd.f32 %v308, %v1527
    %v1529 = vpop.f32.mrb[0].mxu0
    %1530 = vmatprep.mubr.bf16.mxu0 0
    %1531 = vmatmul.mubr.bf16.gmra.mrb[0].mxu0 %v1021
    %v1532 = vpop.f32.mrb[0].mxu0
    %v1533 = vadd.f32 %v308, %v1532
    %v1534 = vpop.f32.mrb[0].mxu0
    %v1535 = vpop.f32.mrb[0].mxu0
    %v1536 = vadd.f32 %v308, %v1535
    %v1537 = vpop.f32.mrb[0].mxu0
    %1538 = vmatprep.mubr.bf16.mxu0 0
    %1539 = vmatmul.mubr.bf16.gmra.mrb[0].mxu0 %v1024
    %v1540 = vpop.f32.mrb[0].mxu0
    %v1541 = vadd.f32 %v308, %v1540
    %v1542 = vpop.f32.mrb[0].mxu0
    %v1543 = vpop.f32.mrb[0].mxu0
    %v1544 = vadd.f32 %v308, %v1543
    %v1545 = vpop.f32.mrb[0].mxu0
    %1546 = vmatprep.mubr.bf16.mxu0 0
    %1547 = vmatmul.mubr.bf16.gmra.mrb[0].mxu0 %v1027
    %v1548 = vpop.f32.mrb[0].mxu0
    %v1549 = vadd.f32 %v308, %v1548
    %v1550 = vpop.f32.mrb[0].mxu0
    %v1551 = vpop.f32.mrb[0].mxu0
    %v1552 = vadd.f32 %v308, %v1551
    %v1553 = vpop.f32.mrb[0].mxu0
    %1554 = vmatprep.mubr.bf16.mxu0 0
    %1555 = vmatmul.mubr.bf16.gmra.mrb[0].mxu0 %v1030
    %v1556 = vpop.f32.mrb[0].mxu0
    %v1557 = vadd.f32 %v308, %v1556
    %v1558 = vpop.f32.mrb[0].mxu0
    %v1559 = vpop.f32.mrb[0].mxu0
    %v1560 = vadd.f32 %v308, %v1559
    %v1561 = vpop.f32.mrb[0].mxu0
    %1562 = vmatprep.mubr.bf16.mxu0 0
    %1563 = vmatmul.mubr.bf16.gmra.mrb[0].mxu0 %v1033
    %v1564 = vpop.f32.mrb[0].mxu0
    %v1565 = vadd.f32 %v308, %v1564
    %v1566 = vpop.f32.mrb[0].mxu0
    %v1567 = vpop.f32.mrb[0].mxu0
    %v1568 = vadd.f32 %v308, %v1567
    %v1569 = vpop.f32.mrb[0].mxu0
    %1570 = vmatprep.mubr.bf16.mxu0 0
    %1571 = vmatmul.mubr.bf16.gmra.mrb[0].mxu0 %v1036
    %v1572 = vpop.f32.mrb[0].mxu0
    %v1573 = vadd.f32 %v308, %v1572
    %v1574 = vpop.f32.mrb[0].mxu0
    %v1575 = vpop.f32.mrb[0].mxu0
    %v1576 = vadd.f32 %v308, %v1575
    %v1577 = vpop.f32.mrb[0].mxu0
    %1578 = vmatprep.mubr.bf16.mxu0 0
    %1579 = vmatmul.mubr.bf16.gmra.mrb[0].mxu0 %v1039
    %v1580 = vpop.f32.mrb[0].mxu0
    %v1581 = vadd.f32 %v308, %v1580
    %v1582 = vpop.f32.mrb[0].mxu0
    %v1583 = vpop.f32.mrb[0].mxu0
    %v1584 = vadd.f32 %v308, %v1583
    %v1585 = vpop.f32.mrb[0].mxu0
    %1586 = vmatprep.mubr.bf16.mxu0 0
    %1587 = vmatmul.mubr.bf16.gmra.mrb[0].mxu0 %v1042
    %v1588 = vpop.f32.mrb[0].mxu0
    %v1589 = vadd.f32 %v308, %v1588
    %v1590 = vpop.f32.mrb[0].mxu0
    %v1591 = vpop.f32.mrb[0].mxu0
    %v1592 = vadd.f32 %v308, %v1591
    %v1593 = vpop.f32.mrb[0].mxu0
    %1594 = vmatprep.mubr.bf16.mxu0 0
    %1595 = vmatmul.mubr.bf16.gmra.mrb[0].mxu0 %v1045
    %v1596 = vpop.f32.mrb[0].mxu0
    %v1597 = vadd.f32 %v308, %v1596
    %v1598 = vpop.f32.mrb[0].mxu0
    %v1599 = vpop.f32.mrb[0].mxu0
    %v1600 = vadd.f32 %v308, %v1599
    %v1601 = vpop.f32.mrb[0].mxu0
    %1602 = vmatprep.mubr.bf16.mxu0 0
    %1603 = vmatmul.mubr.bf16.gmra.mrb[0].mxu0 %v1048
    %v1604 = vpop.f32.mrb[0].mxu0
    %v1605 = vadd.f32 %v308, %v1604
    %v1606 = vpop.f32.mrb[0].mxu0
    %v1607 = vpop.f32.mrb[0].mxu0
    %v1608 = vadd.f32 %v308, %v1607
    %v1609 = vpop.f32.mrb[0].mxu0
    %1610 = vmatprep.mubr.bf16.mxu0 0
    %1611 = vmatmul.mubr.bf16.gmra.mrb[0].mxu0 %v1051
    %v1612 = vpop.f32.mrb[0].mxu0
    %v1613 = vadd.f32 %v308, %v1612
    %v1614 = vpop.f32.mrb[0].mxu0
    %v1615 = vpop.f32.mrb[0].mxu0
    %v1616 = vadd.f32 %v308, %v1615
    %v1617 = vpop.f32.mrb[0].mxu0
    %1618 = vmatprep.mubr.bf16.mxu0 0
    %1619 = vmatmul.mubr.bf16.gmra.mrb[0].mxu0 %v1054
    %v1620 = vpop.f32.mrb[0].mxu0
    %v1621 = vadd.f32 %v308, %v1620
    %v1622 = vpop.f32.mrb[0].mxu0
    %v1623 = vpop.f32.mrb[0].mxu0
    %v1624 = vadd.f32 %v308, %v1623
    %v1625 = vpop.f32.mrb[0].mxu0
    %1626 = vmatprep.mubr.bf16.mxu0 0
    %1627 = vmatmul.mubr.bf16.gmra.mrb[0].mxu0 %v1057
    %v1628 = vpop.f32.mrb[0].mxu0
    %v1629 = vadd.f32 %v308, %v1628
    %v1630 = vpop.f32.mrb[0].mxu0
    %v1631 = vpop.f32.mrb[0].mxu0
    %v1632 = vadd.f32 %v308, %v1631
    %v1633 = vpop.f32.mrb[0].mxu0
    %1634 = vmatprep.mubr.bf16.mxu0 0
    %1635 = vmatmul.mubr.bf16.gmra.mrb[0].mxu0 %v1060
    %v1636 = vpop.f32.mrb[0].mxu0
    %v1637 = vadd.f32 %v308, %v1636
    %v1638 = vpop.f32.mrb[0].mxu0
    %v1639 = vpop.f32.mrb[0].mxu0
    %v1640 = vadd.f32 %v308, %v1639
    %v1641 = vpop.f32.mrb[0].mxu0
    %1642 = vmatprep.mubr.bf16.mxu0 0
    %1643 = vmatmul.mubr.bf16.gmra.mrb[0].mxu0 %v1063
    %v1644 = vpop.f32.mrb[0].mxu0
    %v1645 = vadd.f32 %v308, %v1644
    %v1646 = vpop.f32.mrb[0].mxu0
    %v1647 = vpop.f32.mrb[0].mxu0
    %v1648 = vadd.f32 %v308, %v1647
    %v1649 = vpop.f32.mrb[0].mxu0
    %1650 = vmatprep.mubr.bf16.mxu0 0
    %1651 = vmatmul.mubr.bf16.gmra.mrb[0].mxu0 %v1066
    %v1652 = vpop.f32.mrb[0].mxu0
    %v1653 = vadd.f32 %v308, %v1652
    %v1654 = vpop.f32.mrb[0].mxu0
    %v1655 = vpop.f32.mrb[0].mxu0
    %v1656 = vadd.f32 %v308, %v1655
    %v1657 = vpop.f32.mrb[0].mxu0
    %1658 = vmatprep.mubr.bf16.mxu0 0
    %1659 = vmatmul.mubr.bf16.gmra.mrb[0].mxu0 %v1069
    %v1660 = vpop.f32.mrb[0].mxu0
    %v1661 = vadd.f32 %v308, %v1660
    %v1662 = vpop.f32.mrb[0].mxu0
    %v1663 = vpop.f32.mrb[0].mxu0
    %v1664 = vadd.f32 %v308, %v1663
    %v1665 = vpop.f32.mrb[0].mxu0
    %1666 = vmatprep.mubr.bf16.mxu0 0
    %1667 = vmatmul.mubr.bf16.gmra.mrb[0].mxu0 %v1072
    %v1668 = vpop.f32.mrb[0].mxu0
    %v1669 = vadd.f32 %v308, %v1668
    %v1670 = vpop.f32.mrb[0].mxu0
    %v1671 = vpop.f32.mrb[0].mxu0
    %v1672 = vadd.f32 %v308, %v1671
    %v1673 = vpop.f32.mrb[0].mxu0
    %1674 = vmatprep.mubr.bf16.mxu0 0
    %1675 = vmatmul.mubr.bf16.gmra.mrb[0].mxu0 %v1075
    %v1676 = vpop.f32.mrb[0].mxu0
    %v1677 = vadd.f32 %v308, %v1676
    %v1678 = vpop.f32.mrb[0].mxu0
    %v1679 = vpop.f32.mrb[0].mxu0
    %v1680 = vadd.f32 %v308, %v1679
    %v1681 = vpop.f32.mrb[0].mxu0
    %1682 = vmatprep.mubr.bf16.mxu0 0
    %1683 = vmatmul.mubr.bf16.gmra.mrb[0].mxu0 %v1078
    %v1684 = vpop.f32.mrb[0].mxu0
    %v1685 = vadd.f32 %v308, %v1684
    %v1686 = vpop.f32.mrb[0].mxu0
    %v1687 = vpop.f32.mrb[0].mxu0
    %v1688 = vadd.f32 %v308, %v1687
    %v1689 = vpop.f32.mrb[0].mxu0
    %1690 = vmatprep.mubr.bf16.mxu0 0
    %1691 = vmatmul.mubr.bf16.gmra.mrb[0].mxu0 %v1081
    %v1692 = vpop.f32.mrb[0].mxu0
    %v1693 = vadd.f32 %v308, %v1692
    %v1694 = vpop.f32.mrb[0].mxu0
    %v1695 = vpop.f32.mrb[0].mxu0
    %v1696 = vadd.f32 %v308, %v1695
    %v1697 = vpop.f32.mrb[0].mxu0
    %1698 = vmatprep.mubr.bf16.mxu0 0
    %1699 = vmatmul.mubr.bf16.gmra.mrb[0].mxu0 %v1084
    %v1700 = vpop.f32.mrb[0].mxu0
    %v1701 = vadd.f32 %v308, %v1700
    %v1702 = vpop.f32.mrb[0].mxu0
    %v1703 = vpop.f32.mrb[0].mxu0
    %v1704 = vadd.f32 %v308, %v1703
    %v1705 = vpop.f32.mrb[0].mxu0
    %1706 = vmatprep.mubr.bf16.mxu0 0
    %1707 = vmatmul.mubr.bf16.gmra.mrb[0].mxu0 %v1087
    %v1708 = vpop.f32.mrb[0].mxu0
    %v1709 = vadd.f32 %v308, %v1708
    %v1710 = vpop.f32.mrb[0].mxu0
    %v1711 = vpop.f32.mrb[0].mxu0
    %v1712 = vadd.f32 %v308, %v1711
    %v1713 = vpop.f32.mrb[0].mxu0
    %1714 = vmatprep.mubr.bf16.mxu0 0
    %1715 = vmatmul.mubr.bf16.gmra.mrb[0].mxu0 %v1090
    %v1716 = vpop.f32.mrb[0].mxu0
    %v1717 = vadd.f32 %v308, %v1716
    %v1718 = vpop.f32.mrb[0].mxu0
    %v1719 = vpop.f32.mrb[0].mxu0
    %v1720 = vadd.f32 %v308, %v1719
    %v1721 = vpop.f32.mrb[0].mxu0
    %1722 = vmatprep.mubr.bf16.mxu0 0
    %1723 = vmatmul.mubr.bf16.gmra.mrb[0].mxu0 %v1093
    %v1724 = vpop.f32.mrb[0].mxu0
    %v1725 = vadd.f32 %v308, %v1724
    %v1726 = vpop.f32.mrb[0].mxu0
    %v1727 = vpop.f32.mrb[0].mxu0
    %v1728 = vadd.f32 %v308, %v1727
    %v1729 = vpop.f32.mrb[0].mxu0
    %1730 = vmatprep.mubr.bf16.mxu0 0
    %1731 = vmatmul.mubr.bf16.gmra.mrb[0].mxu0 %v1096
    %v1732 = vpop.f32.mrb[0].mxu0
    %v1733 = vadd.f32 %v308, %v1732
    %v1734 = vpop.f32.mrb[0].mxu0
    %v1735 = vpop.f32.mrb[0].mxu0
    %v1736 = vadd.f32 %v308, %v1735
    %v1737 = vpop.f32.mrb[0].mxu0
    %1738 = vmatprep.mubr.bf16.mxu0 0
    %1739 = vmatmul.mubr.bf16.gmra.mrb[0].mxu0 %v1099
    %v1740 = vpop.f32.mrb[0].mxu0
    %v1741 = vadd.f32 %v308, %v1740
    %v1742 = vpop.f32.mrb[0].mxu0
    %v1743 = vpop.f32.mrb[0].mxu0
    %v1744 = vadd.f32 %v308, %v1743
    %v1745 = vpop.f32.mrb[0].mxu0
    %1746 = vmatprep.mubr.bf16.mxu0 0
    %1747 = vmatmul.mubr.bf16.gmra.mrb[0].mxu0 %v1102
    %v1748 = vpop.f32.mrb[0].mxu0
    %v1749 = vadd.f32 %v308, %v1748
    %v1750 = vpop.f32.mrb[0].mxu0
    %v1751 = vpop.f32.mrb[0].mxu0
    %v1752 = vadd.f32 %v308, %v1751
    %v1753 = vpop.f32.mrb[0].mxu0
    %1754 = vmatprep.mubr.bf16.mxu0 0
    %1755 = vmatmul.mubr.bf16.gmra.mrb[0].mxu0 %v1105
    %v1756 = vpop.f32.mrb[0].mxu0
    %v1757 = vadd.f32 %v308, %v1756
    %v1758 = vpop.f32.mrb[0].mxu0
    %v1759 = vpop.f32.mrb[0].mxu0
    %v1760 = vadd.f32 %v308, %v1759
    %v1761 = vpop.f32.mrb[0].mxu0
    %1762 = vmatprep.mubr.bf16.mxu0 0
    %1763 = vmatmul.mubr.bf16.gmra.mrb[0].mxu0 %v1108
    %v1764 = vpop.f32.mrb[0].mxu0
    %v1765 = vadd.f32 %v308, %v1764
    %v1766 = vpop.f32.mrb[0].mxu0
    %v1767 = vpop.f32.mrb[0].mxu0
    %v1768 = vadd.f32 %v308, %v1767
    %v1769 = vpop.f32.mrb[0].mxu0
    %1770 = vmatprep.mubr.bf16.mxu0 0
    %1771 = vmatmul.mubr.bf16.gmra.mrb[0].mxu0 %v1111
    %v1772 = vpop.f32.mrb[0].mxu0
    %v1773 = vadd.f32 %v308, %v1772
    %v1774 = vpop.f32.mrb[0].mxu0
    %v1775 = vpop.f32.mrb[0].mxu0
    %v1776 = vadd.f32 %v308, %v1775
    %v1777 = vpop.f32.mrb[0].mxu0
    %1778 = vmatprep.mubr.bf16.mxu0 0
    %1779 = vmatmul.mubr.bf16.gmra.mrb[0].mxu0 %v1114
    %v1780 = vpop.f32.mrb[0].mxu0
    %v1781 = vadd.f32 %v308, %v1780
    %v1782 = vpop.f32.mrb[0].mxu0
    %v1783 = vpop.f32.mrb[0].mxu0
    %v1784 = vadd.f32 %v308, %v1783
    %v1785 = vpop.f32.mrb[0].mxu0
    %1786 = vmatprep.mubr.bf16.mxu0 0
    %1787 = vmatmul.mubr.bf16.gmra.mrb[0].mxu0 %v1117
    %v1788 = vpop.f32.mrb[0].mxu0
    %v1789 = vadd.f32 %v308, %v1788
    %v1790 = vpop.f32.mrb[0].mxu0
    %v1791 = vpop.f32.mrb[0].mxu0
    %v1792 = vadd.f32 %v308, %v1791
    %v1793 = vpop.f32.mrb[0].mxu0
    %1794 = vmatprep.mubr.bf16.mxu0 0
    %1795 = vmatmul.mubr.bf16.gmra.mrb[0].mxu0 %v1120
    %v1796 = vpop.f32.mrb[0].mxu0
    %v1797 = vadd.f32 %v308, %v1796
    %v1798 = vpop.f32.mrb[0].mxu0
    %v1799 = vpop.f32.mrb[0].mxu0
    %v1800 = vadd.f32 %v308, %v1799
    %v1801 = vpop.f32.mrb[0].mxu0
    %1802 = vmatprep.mubr.bf16.mxu0 0
    %1803 = vmatmul.mubr.bf16.gmra.mrb[0].mxu0 %v1123
    %v1804 = vpop.f32.mrb[0].mxu0
    %v1805 = vadd.f32 %v308, %v1804
    %v1806 = vpop.f32.mrb[0].mxu0
    %v1807 = vpop.f32.mrb[0].mxu0
    %v1808 = vadd.f32 %v308, %v1807
    %v1809 = vpop.f32.mrb[0].mxu0
    %1810 = vmatprep.mubr.bf16.mxu0 0
    %1811 = vmatmul.mubr.bf16.gmra.mrb[0].mxu0 %v1126
    %v1812 = vpop.f32.mrb[0].mxu0
    %v1813 = vadd.f32 %v308, %v1812
    %v1814 = vpop.f32.mrb[0].mxu0
    %v1815 = vpop.f32.mrb[0].mxu0
    %v1816 = vadd.f32 %v308, %v1815
    %v1817 = vpop.f32.mrb[0].mxu0
    %1818 = vmatprep.mubr.bf16.mxu0 0
    %1819 = vmatmul.mubr.bf16.gmra.mrb[0].mxu0 %v1129
    %v1820 = vpop.f32.mrb[0].mxu0
    %v1821 = vadd.f32 %v308, %v1820
    %v1822 = vpop.f32.mrb[0].mxu0
    %v1823 = vpop.f32.mrb[0].mxu0
    %v1824 = vadd.f32 %v308, %v1823
    %v1825 = vpop.f32.mrb[0].mxu0
    %1826 = vmatprep.mubr.bf16.mxu0 0
    %1827 = vmatmul.mubr.bf16.gmra.mrb[0].mxu0 %v1132
    %v1828 = vpop.f32.mrb[0].mxu0
    %v1829 = vadd.f32 %v308, %v1828
    %v1830 = vpop.f32.mrb[0].mxu0
    %v1831 = vpop.f32.mrb[0].mxu0
    %v1832 = vadd.f32 %v308, %v1831
    %v1833 = vpop.f32.mrb[0].mxu0
    %1834 = vmatprep.mubr.bf16.mxu0 0
    %1835 = vmatmul.mubr.bf16.gmra.mrb[0].mxu0 %v1135
    %v1836 = vpop.f32.mrb[0].mxu0
    %v1837 = vadd.f32 %v308, %v1836
    %v1838 = vpop.f32.mrb[0].mxu0
    %v1839 = vpop.f32.mrb[0].mxu0
    %v1840 = vadd.f32 %v308, %v1839
    %v1841 = vpop.f32.mrb[0].mxu0
    %1842 = vmatprep.mubr.bf16.mxu0 0
    %1843 = vmatmul.mubr.bf16.gmra.mrb[0].mxu0 %v1138
    %v1844 = vpop.f32.mrb[0].mxu0
    %v1845 = vadd.f32 %v308, %v1844
    %v1846 = vpop.f32.mrb[0].mxu0
    %v1847 = vpop.f32.mrb[0].mxu0
    %v1848 = vadd.f32 %v308, %v1847
    %v1849 = vpop.f32.mrb[0].mxu0
    %1850 = vmatprep.mubr.bf16.mxu0 0
    %1851 = vmatmul.mubr.bf16.gmra.mrb[0].mxu0 %v1141
    %v1852 = vpop.f32.mrb[0].mxu0
    %v1853 = vadd.f32 %v308, %v1852
    %v1854 = vpop.f32.mrb[0].mxu0
    %v1855 = vpop.f32.mrb[0].mxu0
    %v1856 = vadd.f32 %v308, %v1855
    %v1857 = vpop.f32.mrb[0].mxu0
    %1858 = vmatprep.mubr.bf16.mxu0 0
    %1859 = vmatmul.mubr.bf16.gmra.mrb[0].mxu0 %v1144
    %v1860 = vpop.f32.mrb[0].mxu0
    %v1861 = vadd.f32 %v308, %v1860
    %v1862 = vpop.f32.mrb[0].mxu0
    %v1863 = vpop.f32.mrb[0].mxu0
    %v1864 = vadd.f32 %v308, %v1863
    %v1865 = vpop.f32.mrb[0].mxu0
    %1866 = vmatprep.mubr.bf16.mxu0 0
    %1867 = vmatmul.mubr.bf16.gmra.mrb[0].mxu0 %v1147
    %v1868 = vpop.f32.mrb[0].mxu0
    %v1869 = vadd.f32 %v308, %v1868
    %v1870 = vpop.f32.mrb[0].mxu0
    %v1871 = vpop.f32.mrb[0].mxu0
    %v1872 = vadd.f32 %v308, %v1871
    %v1873 = vpop.f32.mrb[0].mxu0
    %1874 = vmatprep.mubr.bf16.mxu0 0
    %1875 = vmatmul.mubr.bf16.gmra.mrb[0].mxu0 %v1150
    %v1876 = vpop.f32.mrb[0].mxu0
    %v1877 = vadd.f32 %v308, %v1876
    %v1878 = vpop.f32.mrb[0].mxu0
    %v1879 = vpop.f32.mrb[0].mxu0
    %v1880 = vadd.f32 %v308, %v1879
    %v1881 = vpop.f32.mrb[0].mxu0
    %1882 = vmatprep.mubr.bf16.mxu0 0
    %1883 = vmatmul.mubr.bf16.gmra.mrb[0].mxu0 %v1153
    %v1884 = vpop.f32.mrb[0].mxu0
    %v1885 = vadd.f32 %v308, %v1884
    %v1886 = vpop.f32.mrb[0].mxu0
    %v1887 = vpop.f32.mrb[0].mxu0
    %v1888 = vadd.f32 %v308, %v1887
    %v1889 = vpop.f32.mrb[0].mxu0
    %1890 = vmatprep.mubr.bf16.mxu0 0
    %1891 = vmatmul.mubr.bf16.gmra.mrb[0].mxu0 %v1156
    %v1892 = vpop.f32.mrb[0].mxu0
    %v1893 = vadd.f32 %v308, %v1892
    %v1894 = vpop.f32.mrb[0].mxu0
    %v1895 = vpop.f32.mrb[0].mxu0
    %v1896 = vadd.f32 %v308, %v1895
    %v1897 = vpop.f32.mrb[0].mxu0
    %1898 = vmatprep.mubr.bf16.mxu0 0
    %1899 = vmatmul.mubr.bf16.gmra.mrb[0].mxu0 %v1159
    %v1900 = vpop.f32.mrb[0].mxu0
    %v1901 = vadd.f32 %v308, %v1900
    %v1902 = vpop.f32.mrb[0].mxu0
    %v1903 = vpop.f32.mrb[0].mxu0
    %v1904 = vadd.f32 %v308, %v1903
    %v1905 = vpop.f32.mrb[0].mxu0
    %1906 = vmatprep.mubr.bf16.mxu0 0
    %1907 = vmatmul.mubr.bf16.gmra.mrb[0].mxu0 %v1162
    %v1908 = vpop.f32.mrb[0].mxu0
    %v1909 = vadd.f32 %v308, %v1908
    %v1910 = vpop.f32.mrb[0].mxu0
    %v1911 = vpop.f32.mrb[0].mxu0
    %v1912 = vadd.f32 %v308, %v1911
    %v1913 = vpop.f32.mrb[0].mxu0
    %1914 = vmatprep.mubr.bf16.mxu0 0
    %1915 = vmatmul.mubr.bf16.gmra.mrb[0].mxu0 %v1165
    %v1916 = vpop.f32.mrb[0].mxu0
    %v1917 = vadd.f32 %v308, %v1916
    %v1918 = vpop.f32.mrb[0].mxu0
    %v1919 = vpop.f32.mrb[0].mxu0
    %v1920 = vadd.f32 %v308, %v1919
    %v1921 = vpop.f32.mrb[0].mxu0
    %1922 = vmatprep.mubr.bf16.mxu0 0
    %1923 = vmatmul.mubr.bf16.gmra.mrb[0].mxu0 %v1168
    %v1924 = vpop.f32.mrb[0].mxu0
    %v1925 = vadd.f32 %v308, %v1924
    %v1926 = vpop.f32.mrb[0].mxu0
    %v1927 = vpop.f32.mrb[0].mxu0
    %v1928 = vadd.f32 %v308, %v1927
    %v1929 = vpop.f32.mrb[0].mxu0
    %1930 = vmatprep.mubr.bf16.mxu0 0
    %1931 = vmatmul.mubr.bf16.gmra.mrb[0].mxu0 %v1171
    %v1932 = vpop.f32.mrb[0].mxu0
    %v1933 = vadd.f32 %v308, %v1932
    %v1934 = vpop.f32.mrb[0].mxu0
    %v1935 = vpop.f32.mrb[0].mxu0
    %v1936 = vadd.f32 %v308, %v1935
    %v1937 = vpop.f32.mrb[0].mxu0
    %1938 = vmatprep.mubr.bf16.mxu0 0
    %1939 = vmatmul.mubr.bf16.gmra.mrb[0].mxu0 %v1174
    %v1940 = vpop.f32.mrb[0].mxu0
    %v1941 = vadd.f32 %v308, %v1940
    %v1942 = vpop.f32.mrb[0].mxu0
    %v1943 = vpop.f32.mrb[0].mxu0
    %v1944 = vadd.f32 %v308, %v1943
    %v1945 = vpop.f32.mrb[0].mxu0
    %1946 = vmatprep.mubr.bf16.mxu0 0
    %1947 = vmatmul.mubr.bf16.gmra.mrb[0].mxu0 %v1177
    %v1948 = vpop.f32.mrb[0].mxu0
    %v1949 = vadd.f32 %v308, %v1948
    %v1950 = vpop.f32.mrb[0].mxu0
    %v1951 = vpop.f32.mrb[0].mxu0
    %v1952 = vadd.f32 %v308, %v1951
    %v1953 = vpop.f32.mrb[0].mxu0
    %1954 = vmatprep.mubr.bf16.mxu0 0
    %1955 = vmatmul.mubr.bf16.gmra.mrb[0].mxu0 %v1180
    %v1956 = vpop.f32.mrb[0].mxu0
    %v1957 = vadd.f32 %v308, %v1956
    %v1958 = vpop.f32.mrb[0].mxu0
    %v1959 = vpop.f32.mrb[0].mxu0
    %v1960 = vadd.f32 %v308, %v1959
    %v1961 = vpop.f32.mrb[0].mxu0
    %1962 = vmatprep.mubr.bf16.mxu0 0
    %1963 = vmatmul.mubr.bf16.gmra.mrb[0].mxu0 %v1183
    %v1964 = vpop.f32.mrb[0].mxu0
    %v1965 = vadd.f32 %v308, %v1964
    %v1966 = vpop.f32.mrb[0].mxu0
    %v1967 = vpop.f32.mrb[0].mxu0
    %v1968 = vadd.f32 %v308, %v1967
    %v1969 = vpop.f32.mrb[0].mxu0
    %1970 = vmatprep.mubr.bf16.mxu0 0
    %1971 = vmatmul.mubr.bf16.gmra.mrb[0].mxu0 %v1186
    %v1972 = vpop.f32.mrb[0].mxu0
    %v1973 = vadd.f32 %v308, %v1972
    %v1974 = vpop.f32.mrb[0].mxu0
    %v1975 = vpop.f32.mrb[0].mxu0
    %v1976 = vadd.f32 %v308, %v1975
    %v1977 = vpop.f32.mrb[0].mxu0
    %1978 = vmatprep.mubr.bf16.mxu0 0
    %1979 = vmatmul.mubr.bf16.gmra.mrb[0].mxu0 %v1189
    %v1980 = vpop.f32.mrb[0].mxu0
    %v1981 = vadd.f32 %v308, %v1980
    %v1982 = vpop.f32.mrb[0].mxu0
    %v1983 = vpop.f32.mrb[0].mxu0
    %v1984 = vadd.f32 %v308, %v1983
    %v1985 = vpop.f32.mrb[0].mxu0
    %1986 = vmatprep.mubr.bf16.mxu0 0
    %1987 = vmatmul.mubr.bf16.gmra.mrb[0].mxu0 %v1192
    %v1988 = vpop.f32.mrb[0].mxu0
    %v1989 = vadd.f32 %v308, %v1988
    %v1990 = vpop.f32.mrb[0].mxu0
    %v1991 = vpop.f32.mrb[0].mxu0
    %v1992 = vadd.f32 %v308, %v1991
    %v1993 = vpop.f32.mrb[0].mxu0
    %1994 = vmatprep.mubr.bf16.mxu0 0
    %1995 = vmatmul.mubr.bf16.gmra.mrb[0].mxu0 %v1195
    %v1996 = vpop.f32.mrb[0].mxu0
    %v1997 = vadd.f32 %v308, %v1996
    %v1998 = vpop.f32.mrb[0].mxu0
    %v1999 = vpop.f32.mrb[0].mxu0
    %v2000 = vadd.f32 %v308, %v1999
    %v2001 = vpop.f32.mrb[0].mxu0
    %2002 = vmatprep.mubr.bf16.mxu0 0
    %2003 = vmatmul.mubr.bf16.gmra.mrb[0].mxu0 %v1198
    %v2004 = vpop.f32.mrb[0].mxu0
    %v2005 = vadd.f32 %v308, %v2004
    %v2006 = vpop.f32.mrb[0].mxu0
    %v2007 = vpop.f32.mrb[0].mxu0
    %v2008 = vadd.f32 %v308, %v2007
    %v2009 = vpop.f32.mrb[0].mxu0
    %2010 = vmatprep.mubr.bf16.mxu0 0
    %2011 = vmatmul.mubr.bf16.gmra.mrb[0].mxu0 %v1201
    %v2012 = vpop.f32.mrb[0].mxu0
    %v2013 = vadd.f32 %v308, %v2012
    %v2014 = vpop.f32.mrb[0].mxu0
    %v2015 = vpop.f32.mrb[0].mxu0
    %v2016 = vadd.f32 %v308, %v2015
    %v2017 = vpop.f32.mrb[0].mxu0
    %2018 = vmatprep.mubr.bf16.mxu0 0
    %2019 = vmatmul.mubr.bf16.gmra.mrb[0].mxu0 %v1204
    %v2020 = vpop.f32.mrb[0].mxu0
    %v2021 = vadd.f32 %v308, %v2020
    %v2022 = vpop.f32.mrb[0].mxu0
    %v2023 = vpop.f32.mrb[0].mxu0
    %v2024 = vadd.f32 %v308, %v2023
    %v2025 = vpop.f32.mrb[0].mxu0
    %2026 = vmatprep.mubr.bf16.mxu0 0
    %2027 = vmatmul.mubr.bf16.gmra.mrb[0].mxu0 %v1207
    %v2028 = vpop.f32.mrb[0].mxu0
    %v2029 = vadd.f32 %v308, %v2028
    %v2030 = vpop.f32.mrb[0].mxu0
    %v2031 = vpop.f32.mrb[0].mxu0
    %v2032 = vadd.f32 %v308, %v2031
    %v2033 = vpop.f32.mrb[0].mxu0
    %2034 = vmatprep.mubr.bf16.mxu0 0
    %2035 = vmatmul.mubr.bf16.gmra.mrb[0].mxu0 %v1210
    %v2036 = vpop.f32.mrb[0].mxu0
    %v2037 = vadd.f32 %v308, %v2036
    %v2038 = vpop.f32.mrb[0].mxu0
    %v2039 = vpop.f32.mrb[0].mxu0
    %v2040 = vadd.f32 %v308, %v2039
    %v2041 = vpop.f32.mrb[0].mxu0
    %2042 = vmatprep.mubr.bf16.mxu0 0
    %2043 = vmatmul.mubr.bf16.gmra.mrb[0].mxu0 %v1213
    %v2044 = vpop.f32.mrb[0].mxu0
    %v2045 = vadd.f32 %v308, %v2044
    %v2046 = vpop.f32.mrb[0].mxu0
    %v2047 = vpop.f32.mrb[0].mxu0
    %v2048 = vadd.f32 %v308, %v2047
    %v2049 = vpop.f32.mrb[0].mxu0
    %2050 = vmatprep.mubr.bf16.mxu0 0
    %2051 = vmatmul.mubr.bf16.gmra.mrb[0].mxu0 %v1216
    %v2052 = vpop.f32.mrb[0].mxu0
    %v2053 = vadd.f32 %v308, %v2052
    %v2054 = vpop.f32.mrb[0].mxu0
    %v2055 = vpop.f32.mrb[0].mxu0
    %v2056 = vadd.f32 %v308, %v2055
    %v2057 = vpop.f32.mrb[0].mxu0
    %2058 = vmatprep.mubr.bf16.mxu0 0
    %2059 = vmatmul.mubr.bf16.gmra.mrb[0].mxu0 %v1219
    %v2060 = vpop.f32.mrb[0].mxu0
    %v2061 = vadd.f32 %v308, %v2060
    %v2062 = vpop.f32.mrb[0].mxu0
    %v2063 = vpop.f32.mrb[0].mxu0
    %v2064 = vadd.f32 %v308, %v2063
    %v2065 = vpop.f32.mrb[0].mxu0
    %2066 = vmatprep.mubr.bf16.mxu0 0
    %2067 = vmatmul.mubr.bf16.gmra.mrb[0].mxu0 %v1222
    %v2068 = vpop.f32.mrb[0].mxu0
    %v2069 = vadd.f32 %v308, %v2068
    %v2070 = vpop.f32.mrb[0].mxu0
    %v2071 = vpop.f32.mrb[0].mxu0
    %v2072 = vadd.f32 %v308, %v2071
    %v2073 = vpop.f32.mrb[0].mxu0
    %2074 = vmatprep.mubr.bf16.mxu0 0
    %2075 = vmatmul.mubr.bf16.gmra.mrb[0].mxu0 %v1225
    %v2076 = vpop.f32.mrb[0].mxu0
    %v2077 = vadd.f32 %v308, %v2076
    %v2078 = vpop.f32.mrb[0].mxu0
    %v2079 = vpop.f32.mrb[0].mxu0
    %v2080 = vadd.f32 %v308, %v2079
    %v2081 = vpop.f32.mrb[0].mxu0
    %2082 = vmatprep.mubr.bf16.mxu0 0
    %2083 = vmatmul.mubr.bf16.gmra.mrb[0].mxu0 %v1228
    %v2084 = vpop.f32.mrb[0].mxu0
    %v2085 = vadd.f32 %v308, %v2084
    %v2086 = vpop.f32.mrb[0].mxu0
    %v2087 = vpop.f32.mrb[0].mxu0
    %v2088 = vadd.f32 %v308, %v2087
    %v2089 = vpop.f32.mrb[0].mxu0
    %2090 = vmatprep.mubr.bf16.mxu0 0
    %2091 = vmatmul.mubr.bf16.gmra.mrb[0].mxu0 %v1231
    %v2092 = vpop.f32.mrb[0].mxu0
    %v2093 = vadd.f32 %v308, %v2092
    %v2094 = vpop.f32.mrb[0].mxu0
    %v2095 = vpop.f32.mrb[0].mxu0
    %v2096 = vadd.f32 %v308, %v2095
    %v2097 = vpop.f32.mrb[0].mxu0
    %2098 = vmatprep.mubr.bf16.mxu0 0
    %2099 = vmatmul.mubr.bf16.gmra.mrb[0].mxu0 %v1234
    %v2100 = vpop.f32.mrb[0].mxu0
    %v2101 = vadd.f32 %v308, %v2100
    %v2102 = vpop.f32.mrb[0].mxu0
    %v2103 = vpop.f32.mrb[0].mxu0
    %v2104 = vadd.f32 %v308, %v2103
    %v2105 = vpop.f32.mrb[0].mxu0
    %2106 = vmatprep.mubr.bf16.mxu0 0
    %2107 = vmatmul.mubr.bf16.gmra.mrb[0].mxu0 %v1237
    %v2108 = vpop.f32.mrb[0].mxu0
    %v2109 = vadd.f32 %v308, %v2108
    %v2110 = vpop.f32.mrb[0].mxu0
    %v2111 = vpop.f32.mrb[0].mxu0
    %v2112 = vadd.f32 %v308, %v2111
    %v2113 = vpop.f32.mrb[0].mxu0
    %2114 = vmatprep.mubr.bf16.mxu0 0
    %2115 = vmatmul.mubr.bf16.gmra.mrb[0].mxu0 %v1240
    %v2116 = vpop.f32.mrb[0].mxu0
    %v2117 = vadd.f32 %v308, %v2116
    %v2118 = vpop.f32.mrb[0].mxu0
    %v2119 = vpop.f32.mrb[0].mxu0
    %v2120 = vadd.f32 %v308, %v2119
    %v2121 = vpop.f32.mrb[0].mxu0
    %2122 = vmatprep.mubr.bf16.mxu0 0
    %2123 = vmatmul.mubr.bf16.gmra.mrb[0].mxu0 %v1243
    %v2124 = vpop.f32.mrb[0].mxu0
    %v2125 = vadd.f32 %v308, %v2124
    %v2126 = vpop.f32.mrb[0].mxu0
    %v2127 = vpop.f32.mrb[0].mxu0
    %v2128 = vadd.f32 %v308, %v2127
    %v2129 = vpop.f32.mrb[0].mxu0
    %2130 = vmatprep.mubr.bf16.mxu0 0
    %2131 = vmatmul.mubr.bf16.gmra.mrb[0].mxu0 %v1246
    %v2132 = vpop.f32.mrb[0].mxu0
    %v2133 = vadd.f32 %v308, %v2132
    %v2134 = vpop.f32.mrb[0].mxu0
    %v2135 = vpop.f32.mrb[0].mxu0
    %v2136 = vadd.f32 %v308, %v2135
    %v2137 = vpop.f32.mrb[0].mxu0
    %2138 = vmatprep.mubr.bf16.mxu0 0
    %2139 = vmatmul.mubr.bf16.gmra.mrb[0].mxu0 %v1249
    %v2140 = vpop.f32.mrb[0].mxu0
    %v2141 = vadd.f32 %v308, %v2140
    %v2142 = vpop.f32.mrb[0].mxu0
    %v2143 = vpop.f32.mrb[0].mxu0
    %v2144 = vadd.f32 %v308, %v2143
    %v2145 = vpop.f32.mrb[0].mxu0
    %2146 = vmatprep.mubr.bf16.mxu0 0
    %2147 = vmatmul.mubr.bf16.gmra.mrb[0].mxu0 %v1252
    %v2148 = vpop.f32.mrb[0].mxu0
    %v2149 = vadd.f32 %v308, %v2148
    %v2150 = vpop.f32.mrb[0].mxu0
    %v2151 = vpop.f32.mrb[0].mxu0
    %v2152 = vadd.f32 %v308, %v2151
    %v2153 = vpop.f32.mrb[0].mxu0
    %2154 = vmatprep.mubr.bf16.mxu0 0
    %2155 = vmatmul.mubr.bf16.gmra.mrb[0].mxu0 %v1255
    %v2156 = vpop.f32.mrb[0].mxu0
    %v2157 = vadd.f32 %v308, %v2156
    %v2158 = vpop.f32.mrb[0].mxu0
    %v2159 = vpop.f32.mrb[0].mxu0
    %v2160 = vadd.f32 %v308, %v2159
    %v2161 = vpop.f32.mrb[0].mxu0
    %2162 = vmatprep.mubr.bf16.mxu0 0
    %2163 = vmatmul.mubr.bf16.gmra.mrb[0].mxu0 %v1258
    %v2164 = vpop.f32.mrb[0].mxu0
    %v2165 = vadd.f32 %v308, %v2164
    %v2166 = vpop.f32.mrb[0].mxu0
    %v2167 = vpop.f32.mrb[0].mxu0
    %v2168 = vadd.f32 %v308, %v2167
    %v2169 = vpop.f32.mrb[0].mxu0
    %2170 = vmatprep.mubr.bf16.mxu0 0
    %2171 = vmatmul.mubr.bf16.gmra.mrb[0].mxu0 %v1261
    %v2172 = vpop.f32.mrb[0].mxu0
    %v2173 = vadd.f32 %v308, %v2172
    %v2174 = vpop.f32.mrb[0].mxu0
    %v2175 = vpop.f32.mrb[0].mxu0
    %v2176 = vadd.f32 %v308, %v2175
    %v2177 = vpop.f32.mrb[0].mxu0
    %2178 = vmatprep.mubr.bf16.mxu0 0
    %2179 = vmatmul.mubr.bf16.gmra.mrb[0].mxu0 %v1264
    %v2180 = vpop.f32.mrb[0].mxu0
    %v2181 = vadd.f32 %v308, %v2180
    %v2182 = vpop.f32.mrb[0].mxu0
    %v2183 = vpop.f32.mrb[0].mxu0
    %v2184 = vadd.f32 %v308, %v2183
    %v2185 = vpop.f32.mrb[0].mxu0
    %2186 = vmatprep.mubr.bf16.mxu0 0
    %2187 = vmatmul.mubr.bf16.gmra.mrb[0].mxu0 %v1267
    %v2188 = vpop.f32.mrb[0].mxu0
    %v2189 = vadd.f32 %v308, %v2188
    %v2190 = vpop.f32.mrb[0].mxu0
    %v2191 = vpop.f32.mrb[0].mxu0
    %v2192 = vadd.f32 %v308, %v2191
    %v2193 = vpop.f32.mrb[0].mxu0
    %2194 = vmatprep.mubr.bf16.mxu0 0
    %2195 = vmatmul.mubr.bf16.gmra.mrb[0].mxu0 %v1270
    %v2196 = vpop.f32.mrb[0].mxu0
    %v2197 = vadd.f32 %v308, %v2196
    %v2198 = vpop.f32.mrb[0].mxu0
    %v2199 = vpop.f32.mrb[0].mxu0
    %v2200 = vadd.f32 %v308, %v2199
    %v2201 = vpop.f32.mrb[0].mxu0
    %2202 = vmatprep.mubr.bf16.mxu0 0
    %2203 = vmatmul.mubr.bf16.gmra.mrb[0].mxu0 %v1273
    %v2204 = vpop.f32.mrb[0].mxu0
    %v2205 = vadd.f32 %v308, %v2204
    %v2206 = vpop.f32.mrb[0].mxu0
    %v2207 = vpop.f32.mrb[0].mxu0
    %v2208 = vadd.f32 %v308, %v2207
    %v2209 = vpop.f32.mrb[0].mxu0
    %2210 = vmatprep.mubr.bf16.mxu0 0
    %2211 = vmatmul.mubr.bf16.gmra.mrb[0].mxu0 %v1276
    %v2212 = vpop.f32.mrb[0].mxu0
    %v2213 = vadd.f32 %v308, %v2212
    %v2214 = vpop.f32.mrb[0].mxu0
    %v2215 = vpop.f32.mrb[0].mxu0
    %v2216 = vadd.f32 %v308, %v2215
    %v2217 = vpop.f32.mrb[0].mxu0
    %2218 = vmatprep.mubr.bf16.mxu0 0
    %2219 = vmatmul.mubr.bf16.gmra.mrb[0].mxu0 %v1279
    %v2220 = vpop.f32.mrb[0].mxu0
    %v2221 = vadd.f32 %v308, %v2220
    %v2222 = vpop.f32.mrb[0].mxu0
    %v2223 = vpop.f32.mrb[0].mxu0
    %v2224 = vadd.f32 %v308, %v2223
    %v2225 = vpop.f32.mrb[0].mxu0
    %2226 = vmatprep.mubr.bf16.mxu0 0
    %2227 = vmatmul.mubr.bf16.gmra.mrb[0].mxu0 %v1282
    %v2228 = vpop.f32.mrb[0].mxu0
    %v2229 = vadd.f32 %v308, %v2228
    %v2230 = vpop.f32.mrb[0].mxu0
    %v2231 = vpop.f32.mrb[0].mxu0
    %v2232 = vadd.f32 %v308, %v2231
    %v2233 = vpop.f32.mrb[0].mxu0
    %2234 = vmatprep.mubr.bf16.mxu0 0
    %2235 = vmatmul.mubr.bf16.gmra.mrb[0].mxu0 %v1285
    %v2236 = vpop.f32.mrb[0].mxu0
    %v2237 = vadd.f32 %v308, %v2236
    %v2238 = vpop.f32.mrb[0].mxu0
    %v2239 = vpop.f32.mrb[0].mxu0
    %v2240 = vadd.f32 %v308, %v2239
    %v2241 = vpop.f32.mrb[0].mxu0
    %2242 = vmatprep.mubr.bf16.mxu0 0
    %2243 = vmatmul.mubr.bf16.gmra.mrb[0].mxu0 %v1288
    %v2244 = vpop.f32.mrb[0].mxu0
    %v2245 = vadd.f32 %v308, %v2244
    %v2246 = vpop.f32.mrb[0].mxu0
    %v2247 = vpop.f32.mrb[0].mxu0
    %v2248 = vadd.f32 %v308, %v2247
    %v2249 = vpop.f32.mrb[0].mxu0
    %2250 = vmatprep.mubr.bf16.mxu0 0
    %2251 = vmatmul.mubr.bf16.gmra.mrb[0].mxu0 %v1291
    %v2252 = vpop.f32.mrb[0].mxu0
    %v2253 = vadd.f32 %v308, %v2252
    %v2254 = vpop.f32.mrb[0].mxu0
    %v2255 = vpop.f32.mrb[0].mxu0
    %v2256 = vadd.f32 %v308, %v2255
    %v2257 = vpop.f32.mrb[0].mxu0
    %2258 = vmatprep.mubr.bf16.mxu0 0
    %2259 = vmatmul.mubr.bf16.gmra.mrb[0].mxu0 %v1294
    %v2260 = vpop.f32.mrb[0].mxu0
    %v2261 = vadd.f32 %v308, %v2260
    %v2262 = vpop.f32.mrb[0].mxu0
    %v2263 = vpop.f32.mrb[0].mxu0
    %v2264 = vadd.f32 %v308, %v2263
    %v2265 = vpop.f32.mrb[0].mxu0
    %2266 = vmatprep.mubr.bf16.mxu0 0
    %2267 = vmatmul.mubr.bf16.gmra.mrb[0].mxu0 %v1297
    %v2268 = vpop.f32.mrb[0].mxu0
    %v2269 = vadd.f32 %v308, %v2268
    %v2270 = vpop.f32.mrb[0].mxu0
    %v2271 = vpop.f32.mrb[0].mxu0
    %v2272 = vadd.f32 %v308, %v2271
    %v2273 = vpop.f32.mrb[0].mxu0
    %2274 = vmatprep.mubr.bf16.mxu0 0
    %2275 = vmatmul.mubr.bf16.gmra.mrb[0].mxu0 %v1300
    %v2276 = vpop.f32.mrb[0].mxu0
    %v2277 = vadd.f32 %v308, %v2276
    %v2278 = vpop.f32.mrb[0].mxu0
    %v2279 = vpop.f32.mrb[0].mxu0
    %v2280 = vadd.f32 %v308, %v2279
    %v2281 = vpop.f32.mrb[0].mxu0
    %2282 = vmatprep.mubr.bf16.mxu0 0
    %2283 = vmatmul.mubr.bf16.gmra.mrb[0].mxu0 %v1303
    %v2284 = vpop.f32.mrb[0].mxu0
    %v2285 = vadd.f32 %v308, %v2284
    %v2286 = vpop.f32.mrb[0].mxu0
    %v2287 = vpop.f32.mrb[0].mxu0
    %v2288 = vadd.f32 %v308, %v2287
    %v2289 = vpop.f32.mrb[0].mxu0
    %2290 = vmatprep.mubr.bf16.mxu0 0
    %2291 = vmatmul.mubr.bf16.gmra.mrb[0].mxu0 %v1306
    %v2292 = vpop.f32.mrb[0].mxu0
    %v2293 = vadd.f32 %v308, %v2292
    %v2294 = vpop.f32.mrb[0].mxu0
    %v2295 = vpop.f32.mrb[0].mxu0
    %v2296 = vadd.f32 %v308, %v2295
    %v2297 = vpop.f32.mrb[0].mxu0
    %2298 = vmatprep.mubr.bf16.mxu0 0
    %2299 = vmatmul.mubr.bf16.gmra.mrb[0].mxu0 %v1309
    %v2300 = vpop.f32.mrb[0].mxu0
    %v2301 = vadd.f32 %v308, %v2300
    %v2302 = vpop.f32.mrb[0].mxu0
    %v2303 = vpop.f32.mrb[0].mxu0
    %v2304 = vadd.f32 %v308, %v2303
    %v2305 = vpop.f32.mrb[0].mxu0
    %2306 = vmatprep.mubr.bf16.mxu0 0
    %2307 = vmatmul.mubr.bf16.gmra.mrb[0].mxu0 %v1312
    %v2308 = vpop.f32.mrb[0].mxu0
    %v2309 = vadd.f32 %v308, %v2308
    %v2310 = vpop.f32.mrb[0].mxu0
    %v2311 = vpop.f32.mrb[0].mxu0
    %v2312 = vadd.f32 %v308, %v2311
    %v2313 = vpop.f32.mrb[0].mxu0
    %2314 = vmatprep.mubr.bf16.mxu0 0
    %2315 = vmatmul.mubr.bf16.gmra.mrb[0].mxu0 %v1315
    %v2316 = vpop.f32.mrb[0].mxu0
    %v2317 = vadd.f32 %v308, %v2316
    %v2318 = vpop.f32.mrb[0].mxu0
    %v2319 = vpop.f32.mrb[0].mxu0
    %v2320 = vadd.f32 %v308, %v2319
    %v2321 = vpop.f32.mrb[0].mxu0
    %2322 = vmatprep.mubr.bf16.mxu0 0
    %2323 = vmatmul.mubr.bf16.gmra.mrb[0].mxu0 %v1318
    %v2324 = vpop.f32.mrb[0].mxu0
    %v2325 = vadd.f32 %v308, %v2324
    %v2326 = vpop.f32.mrb[0].mxu0
    %v2327 = vpop.f32.mrb[0].mxu0
    %v2328 = vadd.f32 %v308, %v2327
    %v2329 = vpop.f32.mrb[0].mxu0
    %2330 = vmatprep.mubr.bf16.mxu0 0
    %2331 = vmatmul.mubr.bf16.gmra.mrb[0].mxu0 %v1321
    %v2332 = vpop.f32.mrb[0].mxu0
    %v2333 = vadd.f32 %v308, %v2332
    %v2334 = vpop.f32.mrb[0].mxu0
    %v2335 = vpop.f32.mrb[0].mxu0
    %v2336 = vadd.f32 %v308, %v2335
    %v2337 = vpop.f32.mrb[0].mxu0
    %2338 = vmatprep.mubr.bf16.mxu0 0
    %2339 = vmatmul.mubr.bf16.gmra.mrb[0].mxu0 %v1324
    %v2340 = vpop.f32.mrb[0].mxu0
    %v2341 = vadd.f32 %v308, %v2340
    %v2342 = vpop.f32.mrb[0].mxu0
    %v2343 = vpop.f32.mrb[0].mxu0
    %v2344 = vadd.f32 %v308, %v2343
    %v2345 = vpop.f32.mrb[0].mxu0
    %2346 = vmatprep.mubr.bf16.mxu0 0
    %2347 = vmatmul.mubr.bf16.gmra.mrb[0].mxu0 %v1327
    %v2348 = vpop.f32.mrb[0].mxu0
    %v2349 = vadd.f32 %v308, %v2348
    %v2350 = vpop.f32.mrb[0].mxu0
    %v2351 = vpop.f32.mrb[0].mxu0
    %v2352 = vadd.f32 %v308, %v2351
    %v2353 = vpop.f32.mrb[0].mxu0
    %2354 = vmatprep.mubr.bf16.mxu0 0
    %2355 = vmatmul.mubr.bf16.gmra.mrb[0].mxu0 %v1330
    %v2356 = vpop.f32.mrb[0].mxu0
    %v2357 = vadd.f32 %v308, %v2356
    %v2358 = vpop.f32.mrb[0].mxu0
    %v2359 = vpop.f32.mrb[0].mxu0
    %v2360 = vadd.f32 %v308, %v2359
    %v2361 = vpop.f32.mrb[0].mxu0
    %2362 = vmatprep.mubr.bf16.mxu0 0
    %2363 = vmatmul.mubr.bf16.gmra.mrb[0].mxu0 %v1333
    %v2364 = vpop.f32.mrb[0].mxu0
    %v2365 = vadd.f32 %v308, %v2364
    %v2366 = vpop.f32.mrb[0].mxu0
    %v2367 = vpop.f32.mrb[0].mxu0
    %v2368 = vadd.f32 %v308, %v2367
    %v2369 = vpop.f32.mrb[0].mxu0
    %2370 = vmatprep.mubr.bf16.mxu0 0
    %2371 = vmatmul.mubr.bf16.gmra.mrb[0].mxu0 %v1336
    %v2372 = vpop.f32.mrb[0].mxu0
    %v2373 = vadd.f32 %v308, %v2372
    %v2374 = vpop.f32.mrb[0].mxu0
    %v2375 = vpop.f32.mrb[0].mxu0
    %v2376 = vadd.f32 %v308, %v2375
    %v2377 = vpop.f32.mrb[0].mxu0
    %2378 = vmatprep.mubr.bf16.mxu0 0
    %2379 = vmatmul.mubr.bf16.gmra.mrb[0].mxu0 %v1339
    %v2380 = vpop.f32.mrb[0].mxu0
    %v2381 = vadd.f32 %v308, %v2380
    %v2382 = vpop.f32.mrb[0].mxu0
    %v2383 = vpop.f32.mrb[0].mxu0
    %v2384 = vadd.f32 %v308, %v2383
    %v2385 = vpop.f32.mrb[0].mxu0
    %2386 = vmatprep.mubr.bf16.mxu0 0
    %2387 = vmatmul.mubr.bf16.gmra.mrb[0].mxu0 %v1342
    %v2388 = vpop.f32.mrb[0].mxu0
    %v2389 = vadd.f32 %v308, %v2388
    %v2390 = vpop.f32.mrb[0].mxu0
    %v2391 = vpop.f32.mrb[0].mxu0
    %v2392 = vadd.f32 %v308, %v2391
    %v2393 = vpop.f32.mrb[0].mxu0
    %2394 = vmatprep.mubr.bf16.mxu0 0
    %2395 = vmatmul.mubr.bf16.gmra.mrb[0].mxu0 %v1345
    %v2396 = vpop.f32.mrb[0].mxu0
    %v2397 = vadd.f32 %v308, %v2396
    %v2398 = vpop.f32.mrb[0].mxu0
    %v2399 = vpop.f32.mrb[0].mxu0
    %v2400 = vadd.f32 %v308, %v2399
    %v2401 = vpop.f32.mrb[0].mxu0
    %2402 = vmatprep.mubr.bf16.mxu0 0
    %2403 = vmatmul.mubr.bf16.gmra.mrb[0].mxu0 %v1348
    %v2404 = vpop.f32.mrb[0].mxu0
    %v2405 = vadd.f32 %v308, %v2404
    %v2406 = vpop.f32.mrb[0].mxu0
    %v2407 = vpop.f32.mrb[0].mxu0
    %v2408 = vadd.f32 %v308, %v2407
    %v2409 = vpop.f32.mrb[0].mxu0
    %2410 = vdwg.mxu0
    %v2411 = vmax.f32 %v1389, 0.0
    %v2412 = vmax.f32 %v1392, 0.0
    %v2413 = vmax.f32 %v1397, 0.0
    %v2414 = vmax.f32 %v1400, 0.0
    %v2415 = vmax.f32 %v1405, 0.0
    %v2416 = vmax.f32 %v1408, 0.0
    %v2417 = vmax.f32 %v1413, 0.0
    %v2418 = vmax.f32 %v1416, 0.0
    %v2419 = vmax.f32 %v1421, 0.0
    %v2420 = vmax.f32 %v1424, 0.0
    %v2421 = vmax.f32 %v1429, 0.0
    %v2422 = vmax.f32 %v1432, 0.0
    %v2423 = vmax.f32 %v1437, 0.0
    %v2424 = vmax.f32 %v1440, 0.0
    %v2425 = vmax.f32 %v1445, 0.0
    %v2426 = vmax.f32 %v1448, 0.0
    %v2427 = vmax.f32 %v1453, 0.0
    %v2428 = vmax.f32 %v1456, 0.0
    %v2429 = vmax.f32 %v1461, 0.0
    %v2430 = vmax.f32 %v1464, 0.0
    %v2431 = vmax.f32 %v1469, 0.0
    %v2432 = vmax.f32 %v1472, 0.0
    %v2433 = vmax.f32 %v1477, 0.0
    %v2434 = vmax.f32 %v1480, 0.0
    %v2435 = vmax.f32 %v1485, 0.0
    %v2436 = vmax.f32 %v1488, 0.0
    %v2437 = vmax.f32 %v1493, 0.0
    %v2438 = vmax.f32 %v1496, 0.0
    %v2439 = vmax.f32 %v1501, 0.0
    %v2440 = vmax.f32 %v1504, 0.0
    %v2441 = vmax.f32 %v1509, 0.0
    %v2442 = vmax.f32 %v1512, 0.0
    %v2443 = vmax.f32 %v1517, 0.0
    %v2444 = vmax.f32 %v1520, 0.0
    %v2445 = vmax.f32 %v1525, 0.0
    %v2446 = vmax.f32 %v1528, 0.0
    %v2447 = vmax.f32 %v1533, 0.0
    %v2448 = vmax.f32 %v1536, 0.0
    %v2449 = vmax.f32 %v1541, 0.0
    %v2450 = vmax.f32 %v1544, 0.0
    %v2451 = vmax.f32 %v1549, 0.0
    %v2452 = vmax.f32 %v1552, 0.0
    %v2453 = vmax.f32 %v1557, 0.0
    %v2454 = vmax.f32 %v1560, 0.0
    %v2455 = vmax.f32 %v1565, 0.0
    %v2456 = vmax.f32 %v1568, 0.0
    %v2457 = vmax.f32 %v1573, 0.0
    %v2458 = vmax.f32 %v1576, 0.0
    %v2459 = vmax.f32 %v1581, 0.0
    %v2460 = vmax.f32 %v1584, 0.0
    %v2461 = vmax.f32 %v1589, 0.0
    %v2462 = vmax.f32 %v1592, 0.0
    %v2463 = vmax.f32 %v1597, 0.0
    %v2464 = vmax.f32 %v1600, 0.0
    %v2465 = vmax.f32 %v1605, 0.0
    %v2466 = vmax.f32 %v1608, 0.0
    %v2467 = vmax.f32 %v1613, 0.0
    %v2468 = vmax.f32 %v1616, 0.0
    %v2469 = vmax.f32 %v1621, 0.0
    %v2470 = vmax.f32 %v1624, 0.0
    %v2471 = vmax.f32 %v1629, 0.0
    %v2472 = vmax.f32 %v1632, 0.0
    %v2473 = vmax.f32 %v1637, 0.0
    %v2474 = vmax.f32 %v1640, 0.0
    %v2475 = vmax.f32 %v1645, 0.0
    %v2476 = vmax.f32 %v1648, 0.0
    %v2477 = vmax.f32 %v1653, 0.0
    %v2478 = vmax.f32 %v1656, 0.0
    %v2479 = vmax.f32 %v1661, 0.0
    %v2480 = vmax.f32 %v1664, 0.0
    %v2481 = vmax.f32 %v1669, 0.0
    %v2482 = vmax.f32 %v1672, 0.0
    %v2483 = vmax.f32 %v1677, 0.0
    %v2484 = vmax.f32 %v1680, 0.0
    %v2485 = vmax.f32 %v1685, 0.0
    %v2486 = vmax.f32 %v1688, 0.0
    %v2487 = vmax.f32 %v1693, 0.0
    %v2488 = vmax.f32 %v1696, 0.0
    %v2489 = vmax.f32 %v1701, 0.0
    %v2490 = vmax.f32 %v1704, 0.0
    %v2491 = vmax.f32 %v1709, 0.0
    %v2492 = vmax.f32 %v1712, 0.0
    %v2493 = vmax.f32 %v1717, 0.0
    %v2494 = vmax.f32 %v1720, 0.0
    %v2495 = vmax.f32 %v1725, 0.0
    %v2496 = vmax.f32 %v1728, 0.0
    %v2497 = vmax.f32 %v1733, 0.0
    %v2498 = vmax.f32 %v1736, 0.0
    %v2499 = vmax.f32 %v1741, 0.0
    %v2500 = vmax.f32 %v1744, 0.0
    %v2501 = vmax.f32 %v1749, 0.0
    %v2502 = vmax.f32 %v1752, 0.0
    %v2503 = vmax.f32 %v1757, 0.0
    %v2504 = vmax.f32 %v1760, 0.0
    %v2505 = vmax.f32 %v1765, 0.0
    %v2506 = vmax.f32 %v1768, 0.0
    %v2507 = vmax.f32 %v1773, 0.0
    %v2508 = vmax.f32 %v1776, 0.0
    %v2509 = vmax.f32 %v1781, 0.0
    %v2510 = vmax.f32 %v1784, 0.0
    %v2511 = vmax.f32 %v1789, 0.0
    %v2512 = vmax.f32 %v1792, 0.0
    %v2513 = vmax.f32 %v1797, 0.0
    %v2514 = vmax.f32 %v1800, 0.0
    %v2515 = vmax.f32 %v1805, 0.0
    %v2516 = vmax.f32 %v1808, 0.0
    %v2517 = vmax.f32 %v1813, 0.0
    %v2518 = vmax.f32 %v1816, 0.0
    %v2519 = vmax.f32 %v1821, 0.0
    %v2520 = vmax.f32 %v1824, 0.0
    %v2521 = vmax.f32 %v1829, 0.0
    %v2522 = vmax.f32 %v1832, 0.0
    %v2523 = vmax.f32 %v1837, 0.0
    %v2524 = vmax.f32 %v1840, 0.0
    %v2525 = vmax.f32 %v1845, 0.0
    %v2526 = vmax.f32 %v1848, 0.0
    %v2527 = vmax.f32 %v1853, 0.0
    %v2528 = vmax.f32 %v1856, 0.0
    %v2529 = vmax.f32 %v1861, 0.0
    %v2530 = vmax.f32 %v1864, 0.0
    %v2531 = vmax.f32 %v1869, 0.0
    %v2532 = vmax.f32 %v1872, 0.0
    %v2533 = vmax.f32 %v1877, 0.0
    %v2534 = vmax.f32 %v1880, 0.0
    %v2535 = vmax.f32 %v1885, 0.0
    %v2536 = vmax.f32 %v1888, 0.0
    %v2537 = vmax.f32 %v1893, 0.0
    %v2538 = vmax.f32 %v1896, 0.0
    %v2539 = vmax.f32 %v1901, 0.0
    %v2540 = vmax.f32 %v1904, 0.0
    %v2541 = vmax.f32 %v1909, 0.0
    %v2542 = vmax.f32 %v1912, 0.0
    %v2543 = vmax.f32 %v1917, 0.0
    %v2544 = vmax.f32 %v1920, 0.0
    %v2545 = vmax.f32 %v1925, 0.0
    %v2546 = vmax.f32 %v1928, 0.0
    %v2547 = vmax.f32 %v1933, 0.0
    %v2548 = vmax.f32 %v1936, 0.0
    %v2549 = vmax.f32 %v1941, 0.0
    %v2550 = vmax.f32 %v1944, 0.0
    %v2551 = vmax.f32 %v1949, 0.0
    %v2552 = vmax.f32 %v1952, 0.0
    %v2553 = vmax.f32 %v1957, 0.0
    %v2554 = vmax.f32 %v1960, 0.0
    %v2555 = vmax.f32 %v1965, 0.0
    %v2556 = vmax.f32 %v1968, 0.0
    %v2557 = vmax.f32 %v1973, 0.0
    %v2558 = vmax.f32 %v1976, 0.0
    %v2559 = vmax.f32 %v1981, 0.0
    %v2560 = vmax.f32 %v1984, 0.0
    %v2561 = vmax.f32 %v1989, 0.0
    %v2562 = vmax.f32 %v1992, 0.0
    %v2563 = vmax.f32 %v1997, 0.0
    %v2564 = vmax.f32 %v2000, 0.0
    %v2565 = vmax.f32 %v2005, 0.0
    %v2566 = vmax.f32 %v2008, 0.0
    %v2567 = vmax.f32 %v2013, 0.0
    %v2568 = vmax.f32 %v2016, 0.0
    %v2569 = vmax.f32 %v2021, 0.0
    %v2570 = vmax.f32 %v2024, 0.0
    %v2571 = vmax.f32 %v2029, 0.0
    %v2572 = vmax.f32 %v2032, 0.0
    %v2573 = vmax.f32 %v2037, 0.0
    %v2574 = vmax.f32 %v2040, 0.0
    %v2575 = vmax.f32 %v2045, 0.0
    %v2576 = vmax.f32 %v2048, 0.0
    %v2577 = vmax.f32 %v2053, 0.0
    %v2578 = vmax.f32 %v2056, 0.0
    %v2579 = vmax.f32 %v2061, 0.0
    %v2580 = vmax.f32 %v2064, 0.0
    %v2581 = vmax.f32 %v2069, 0.0
    %v2582 = vmax.f32 %v2072, 0.0
    %v2583 = vmax.f32 %v2077, 0.0
    %v2584 = vmax.f32 %v2080, 0.0
    %v2585 = vmax.f32 %v2085, 0.0
    %v2586 = vmax.f32 %v2088, 0.0
    %v2587 = vmax.f32 %v2093, 0.0
    %v2588 = vmax.f32 %v2096, 0.0
    %v2589 = vmax.f32 %v2101, 0.0
    %v2590 = vmax.f32 %v2104, 0.0
    %v2591 = vmax.f32 %v2109, 0.0
    %v2592 = vmax.f32 %v2112, 0.0
    %v2593 = vmax.f32 %v2117, 0.0
    %v2594 = vmax.f32 %v2120, 0.0
    %v2595 = vmax.f32 %v2125, 0.0
    %v2596 = vmax.f32 %v2128, 0.0
    %v2597 = vmax.f32 %v2133, 0.0
    %v2598 = vmax.f32 %v2136, 0.0
    %v2599 = vmax.f32 %v2141, 0.0
    %v2600 = vmax.f32 %v2144, 0.0
    %v2601 = vmax.f32 %v2149, 0.0
    %v2602 = vmax.f32 %v2152, 0.0
    %v2603 = vmax.f32 %v2157, 0.0
    %v2604 = vmax.f32 %v2160, 0.0
    %v2605 = vmax.f32 %v2165, 0.0
    %v2606 = vmax.f32 %v2168, 0.0
    %v2607 = vmax.f32 %v2173, 0.0
    %v2608 = vmax.f32 %v2176, 0.0
    %v2609 = vmax.f32 %v2181, 0.0
    %v2610 = vmax.f32 %v2184, 0.0
    %v2611 = vmax.f32 %v2189, 0.0
    %v2612 = vmax.f32 %v2192, 0.0
    %v2613 = vmax.f32 %v2197, 0.0
    %v2614 = vmax.f32 %v2200, 0.0
    %v2615 = vmax.f32 %v2205, 0.0
    %v2616 = vmax.f32 %v2208, 0.0
    %v2617 = vmax.f32 %v2213, 0.0
    %v2618 = vmax.f32 %v2216, 0.0
    %v2619 = vmax.f32 %v2221, 0.0
    %v2620 = vmax.f32 %v2224, 0.0
    %v2621 = vmax.f32 %v2229, 0.0
    %v2622 = vmax.f32 %v2232, 0.0
    %v2623 = vmax.f32 %v2237, 0.0
    %v2624 = vmax.f32 %v2240, 0.0
    %v2625 = vmax.f32 %v2245, 0.0
    %v2626 = vmax.f32 %v2248, 0.0
    %v2627 = vmax.f32 %v2253, 0.0
    %v2628 = vmax.f32 %v2256, 0.0
    %v2629 = vmax.f32 %v2261, 0.0
    %v2630 = vmax.f32 %v2264, 0.0
    %v2631 = vmax.f32 %v2269, 0.0
    %v2632 = vmax.f32 %v2272, 0.0
    %v2633 = vmax.f32 %v2277, 0.0
    %v2634 = vmax.f32 %v2280, 0.0
    %v2635 = vmax.f32 %v2285, 0.0
    %v2636 = vmax.f32 %v2288, 0.0
    %v2637 = vmax.f32 %v2293, 0.0
    %v2638 = vmax.f32 %v2296, 0.0
    %v2639 = vmax.f32 %v2301, 0.0
    %v2640 = vmax.f32 %v2304, 0.0
    %v2641 = vmax.f32 %v2309, 0.0
    %v2642 = vmax.f32 %v2312, 0.0
    %v2643 = vmax.f32 %v2317, 0.0
    %v2644 = vmax.f32 %v2320, 0.0
    %v2645 = vmax.f32 %v2325, 0.0
    %v2646 = vmax.f32 %v2328, 0.0
    %v2647 = vmax.f32 %v2333, 0.0
    %v2648 = vmax.f32 %v2336, 0.0
    %v2649 = vmax.f32 %v2341, 0.0
    %v2650 = vmax.f32 %v2344, 0.0
    %v2651 = vmax.f32 %v2349, 0.0
    %v2652 = vmax.f32 %v2352, 0.0
    %v2653 = vmax.f32 %v2357, 0.0
    %v2654 = vmax.f32 %v2360, 0.0
    %v2655 = vmax.f32 %v2365, 0.0
    %v2656 = vmax.f32 %v2368, 0.0
    %v2657 = vmax.f32 %v2373, 0.0
    %v2658 = vmax.f32 %v2376, 0.0
    %v2659 = vmax.f32 %v2381, 0.0
    %v2660 = vmax.f32 %v2384, 0.0
    %v2661 = vmax.f32 %v2389, 0.0
    %v2662 = vmax.f32 %v2392, 0.0
    %v2663 = vmax.f32 %v2397, 0.0
    %v2664 = vmax.f32 %v2400, 0.0
    %v2665 = vmax.f32 %v2405, 0.0
    %v2666 = vmax.f32 %v2408, 0.0
    %v2667 = vld [vmem:[#allocation2] sm:$0xff]
    %v2668 = vld [vmem:[%s3] sm:$0xff]
    %v2669 = vld [vmem:[%s3 + $0x8] sm:$0xff]
    %v2670 = vld [vmem:[%s3 + $0x10] sm:$0xff]
    %v2671 = vld [vmem:[%s3 + $0x18] sm:$0xff]
    %v2672 = vld [vmem:[%s3 + $0x20] sm:$0xff]
    %v2673 = vld [vmem:[%s3 + $0x28] sm:$0xff]
    %v2674 = vld [vmem:[%s3 + $0x30] sm:$0xff]
    %v2675 = vld [vmem:[%s3 + $0x38] sm:$0xff]
    %v2676 = vld [vmem:[%s3 + $0x40] sm:$0xff]
    %v2677 = vld [vmem:[%s3 + $0x48] sm:$0xff]
    %v2678 = vld [vmem:[%s3 + $0x50] sm:$0xff]
    %v2679 = vld [vmem:[%s3 + $0x58] sm:$0xff]
    %v2680 = vld [vmem:[%s3 + $0x60] sm:$0xff]
    %v2681 = vld [vmem:[%s3 + $0x68] sm:$0xff]
    %v2682 = vld [vmem:[%s3 + $0x70] sm:$0xff]
    %v2683 = vld [vmem:[%s3 + $0x78] sm:$0xff]
    %2684 = vmatprep.subr.mxu0 0.0
    %2685 = vmatpush1.msra.mxu0 %v2411
    %2686 = vmatprep.subr.mxu0 0.0
    %2687 = vmatpush1.msra.mxu0 %v2412
    %2688 = vmatprep.subr.mxu0 0.0
    %2689 = vmatpush1.msra.mxu0 %v2413
    %2690 = vmatprep.subr.mxu0 0.0
    %2691 = vmatpush1.msra.mxu0 %v2414
    %2692 = vmatprep.subr.mxu0 0.0
    %2693 = vmatpush1.msra.mxu0 %v2415
    %2694 = vmatprep.subr.mxu0 0.0
    %2695 = vmatpush1.msra.mxu0 %v2416
    %2696 = vmatprep.subr.mxu0 0.0
    %2697 = vmatpush1.msra.mxu0 %v2417
    %2698 = vmatprep.subr.mxu0 0.0
    %2699 = vmatpush1.msra.mxu0 %v2418
    %2700 = vmatprep.subr.mxu0 0.0
    %2701 = vmatpush1.msra.mxu0 %v2419
    %2702 = vmatprep.subr.mxu0 0.0
    %2703 = vmatpush1.msra.mxu0 %v2420
    %2704 = vmatprep.subr.mxu0 0.0
    %2705 = vmatpush1.msra.mxu0 %v2421
    %2706 = vmatprep.subr.mxu0 0.0
    %2707 = vmatpush1.msra.mxu0 %v2422
    %2708 = vmatprep.subr.mxu0 0.0
    %2709 = vmatpush1.msra.mxu0 %v2423
    %2710 = vmatprep.subr.mxu0 0.0
    %2711 = vmatpush1.msra.mxu0 %v2424
    %2712 = vmatprep.subr.mxu0 0.0
    %2713 = vmatpush1.msra.mxu0 %v2425
    %2714 = vmatprep.subr.mxu0 0.0
    %2715 = vmatpush1.msra.mxu0 %v2426
    %2716 = vmatprep.subr.mxu0 0.0
    %2717 = vmatpush1.msra.mxu0 %v2427
    %2718 = vmatprep.subr.mxu0 0.0
    %2719 = vmatpush1.msra.mxu0 %v2428
    %2720 = vmatprep.subr.mxu0 0.0
    %2721 = vmatpush1.msra.mxu0 %v2429
    %2722 = vmatprep.subr.mxu0 0.0
    %2723 = vmatpush1.msra.mxu0 %v2430
    %2724 = vmatprep.subr.mxu0 0.0
    %2725 = vmatpush1.msra.mxu0 %v2431
    %2726 = vmatprep.subr.mxu0 0.0
    %2727 = vmatpush1.msra.mxu0 %v2432
    %2728 = vmatprep.subr.mxu0 0.0
    %2729 = vmatpush1.msra.mxu0 %v2433
    %2730 = vmatprep.subr.mxu0 0.0
    %2731 = vmatpush1.msra.mxu0 %v2434
    %2732 = vmatprep.subr.mxu0 0.0
    %2733 = vmatpush1.msra.mxu0 %v2435
    %2734 = vmatprep.subr.mxu0 0.0
    %2735 = vmatpush1.msra.mxu0 %v2436
    %2736 = vmatprep.subr.mxu0 0.0
    %2737 = vmatpush1.msra.mxu0 %v2437
    %2738 = vmatprep.subr.mxu0 0.0
    %2739 = vmatpush1.msra.mxu0 %v2438
    %2740 = vmatprep.subr.mxu0 0.0
    %2741 = vmatpush1.msra.mxu0 %v2439
    %2742 = vmatprep.subr.mxu0 0.0
    %2743 = vmatpush1.msra.mxu0 %v2440
    %2744 = vmatprep.subr.mxu0 0.0
    %2745 = vmatpush1.msra.mxu0 %v2441
    %2746 = vmatprep.subr.mxu0 0.0
    %2747 = vmatpush1.msra.mxu0 %v2442
    %2748 = vmatprep.mubr.f32.mxu0 %v2669
    %2749 = vmatmul.mubr.f32.gmra.mrb[0].mxu0 %v2668
    %v2750 = vpop.f32.mrb[0].mxu0
    %v2751 = vadd.f32 0.0, %v2750
    %v2752 = vpop.f32.mrb[0].mxu0
    %2753 = vdwg.mxu0
    %2754 = vmatprep.subr.mxu0 0.0
    %2755 = vmatpush1.msra.mxu0 %v2443
    %2756 = vmatprep.subr.mxu0 0.0
    %2757 = vmatpush1.msra.mxu0 %v2444
    %2758 = vmatprep.subr.mxu0 0.0
    %2759 = vmatpush1.msra.mxu0 %v2445
    %2760 = vmatprep.subr.mxu0 0.0
    %2761 = vmatpush1.msra.mxu0 %v2446
    %2762 = vmatprep.subr.mxu0 0.0
    %2763 = vmatpush1.msra.mxu0 %v2447
    %2764 = vmatprep.subr.mxu0 0.0
    %2765 = vmatpush1.msra.mxu0 %v2448
    %2766 = vmatprep.subr.mxu0 0.0
    %2767 = vmatpush1.msra.mxu0 %v2449
    %2768 = vmatprep.subr.mxu0 0.0
    %2769 = vmatpush1.msra.mxu0 %v2450
    %2770 = vmatprep.subr.mxu0 0.0
    %2771 = vmatpush1.msra.mxu0 %v2451
    %2772 = vmatprep.subr.mxu0 0.0
    %2773 = vmatpush1.msra.mxu0 %v2452
    %2774 = vmatprep.subr.mxu0 0.0
    %2775 = vmatpush1.msra.mxu0 %v2453
    %2776 = vmatprep.subr.mxu0 0.0
    %2777 = vmatpush1.msra.mxu0 %v2454
    %2778 = vmatprep.subr.mxu0 0.0
    %2779 = vmatpush1.msra.mxu0 %v2455
    %2780 = vmatprep.subr.mxu0 0.0
    %2781 = vmatpush1.msra.mxu0 %v2456
    %2782 = vmatprep.subr.mxu0 0.0
    %2783 = vmatpush1.msra.mxu0 %v2457
    %2784 = vmatprep.subr.mxu0 0.0
    %2785 = vmatpush1.msra.mxu0 %v2458
    %2786 = vmatprep.subr.mxu0 0.0
    %2787 = vmatpush1.msra.mxu0 %v2459
    %2788 = vmatprep.subr.mxu0 0.0
    %2789 = vmatpush1.msra.mxu0 %v2460
    %2790 = vmatprep.subr.mxu0 0.0
    %2791 = vmatpush1.msra.mxu0 %v2461
    %2792 = vmatprep.subr.mxu0 0.0
    %2793 = vmatpush1.msra.mxu0 %v2462
    %2794 = vmatprep.subr.mxu0 0.0
    %2795 = vmatpush1.msra.mxu0 %v2463
    %2796 = vmatprep.subr.mxu0 0.0
    %2797 = vmatpush1.msra.mxu0 %v2464
    %2798 = vmatprep.subr.mxu0 0.0
    %2799 = vmatpush1.msra.mxu0 %v2465
    %2800 = vmatprep.subr.mxu0 0.0
    %2801 = vmatpush1.msra.mxu0 %v2466
    %2802 = vmatprep.subr.mxu0 0.0
    %2803 = vmatpush1.msra.mxu0 %v2467
    %2804 = vmatprep.subr.mxu0 0.0
    %2805 = vmatpush1.msra.mxu0 %v2468
    %2806 = vmatprep.subr.mxu0 0.0
    %2807 = vmatpush1.msra.mxu0 %v2469
    %2808 = vmatprep.subr.mxu0 0.0
    %2809 = vmatpush1.msra.mxu0 %v2470
    %2810 = vmatprep.subr.mxu0 0.0
    %2811 = vmatpush1.msra.mxu0 %v2471
    %2812 = vmatprep.subr.mxu0 0.0
    %2813 = vmatpush1.msra.mxu0 %v2472
    %2814 = vmatprep.subr.mxu0 0.0
    %2815 = vmatpush1.msra.mxu0 %v2473
    %2816 = vmatprep.subr.mxu0 0.0
    %2817 = vmatpush1.msra.mxu0 %v2474
    %2818 = vmatprep.mubr.f32.mxu0 %v2671
    %2819 = vmatmul.mubr.f32.gmra.mrb[0].mxu0 %v2670
    %v2820 = vpop.f32.mrb[0].mxu0
    %v2821 = vadd.f32 %v2751, %v2820
    %v2822 = vpop.f32.mrb[0].mxu0
    %2823 = vdwg.mxu0
    %2824 = vmatprep.subr.mxu0 0.0
    %2825 = vmatpush1.msra.mxu0 %v2475
    %2826 = vmatprep.subr.mxu0 0.0
    %2827 = vmatpush1.msra.mxu0 %v2476
    %2828 = vmatprep.subr.mxu0 0.0
    %2829 = vmatpush1.msra.mxu0 %v2477
    %2830 = vmatprep.subr.mxu0 0.0
    %2831 = vmatpush1.msra.mxu0 %v2478
    %2832 = vmatprep.subr.mxu0 0.0
    %2833 = vmatpush1.msra.mxu0 %v2479
    %2834 = vmatprep.subr.mxu0 0.0
    %2835 = vmatpush1.msra.mxu0 %v2480
    %2836 = vmatprep.subr.mxu0 0.0
    %2837 = vmatpush1.msra.mxu0 %v2481
    %2838 = vmatprep.subr.mxu0 0.0
    %2839 = vmatpush1.msra.mxu0 %v2482
    %2840 = vmatprep.subr.mxu0 0.0
    %2841 = vmatpush1.msra.mxu0 %v2483
    %2842 = vmatprep.subr.mxu0 0.0
    %2843 = vmatpush1.msra.mxu0 %v2484
    %2844 = vmatprep.subr.mxu0 0.0
    %2845 = vmatpush1.msra.mxu0 %v2485
    %2846 = vmatprep.subr.mxu0 0.0
    %2847 = vmatpush1.msra.mxu0 %v2486
    %2848 = vmatprep.subr.mxu0 0.0
    %2849 = vmatpush1.msra.mxu0 %v2487
    %2850 = vmatprep.subr.mxu0 0.0
    %2851 = vmatpush1.msra.mxu0 %v2488
    %2852 = vmatprep.subr.mxu0 0.0
    %2853 = vmatpush1.msra.mxu0 %v2489
    %2854 = vmatprep.subr.mxu0 0.0
    %2855 = vmatpush1.msra.mxu0 %v2490
    %2856 = vmatprep.subr.mxu0 0.0
    %2857 = vmatpush1.msra.mxu0 %v2491
    %2858 = vmatprep.subr.mxu0 0.0
    %2859 = vmatpush1.msra.mxu0 %v2492
    %2860 = vmatprep.subr.mxu0 0.0
    %2861 = vmatpush1.msra.mxu0 %v2493
    %2862 = vmatprep.subr.mxu0 0.0
    %2863 = vmatpush1.msra.mxu0 %v2494
    %2864 = vmatprep.subr.mxu0 0.0
    %2865 = vmatpush1.msra.mxu0 %v2495
    %2866 = vmatprep.subr.mxu0 0.0
    %2867 = vmatpush1.msra.mxu0 %v2496
    %2868 = vmatprep.subr.mxu0 0.0
    %2869 = vmatpush1.msra.mxu0 %v2497
    %2870 = vmatprep.subr.mxu0 0.0
    %2871 = vmatpush1.msra.mxu0 %v2498
    %2872 = vmatprep.subr.mxu0 0.0
    %2873 = vmatpush1.msra.mxu0 %v2499
    %2874 = vmatprep.subr.mxu0 0.0
    %2875 = vmatpush1.msra.mxu0 %v2500
    %2876 = vmatprep.subr.mxu0 0.0
    %2877 = vmatpush1.msra.mxu0 %v2501
    %2878 = vmatprep.subr.mxu0 0.0
    %2879 = vmatpush1.msra.mxu0 %v2502
    %2880 = vmatprep.subr.mxu0 0.0
    %2881 = vmatpush1.msra.mxu0 %v2503
    %2882 = vmatprep.subr.mxu0 0.0
    %2883 = vmatpush1.msra.mxu0 %v2504
    %2884 = vmatprep.subr.mxu0 0.0
    %2885 = vmatpush1.msra.mxu0 %v2505
    %2886 = vmatprep.subr.mxu0 0.0
    %2887 = vmatpush1.msra.mxu0 %v2506
    %2888 = vmatprep.mubr.f32.mxu0 %v2673
    %2889 = vmatmul.mubr.f32.gmra.mrb[0].mxu0 %v2672
    %v2890 = vpop.f32.mrb[0].mxu0
    %v2891 = vadd.f32 %v2821, %v2890
    %v2892 = vpop.f32.mrb[0].mxu0
    %2893 = vdwg.mxu0
    %2894 = vmatprep.subr.mxu0 0.0
    %2895 = vmatpush1.msra.mxu0 %v2507
    %2896 = vmatprep.subr.mxu0 0.0
    %2897 = vmatpush1.msra.mxu0 %v2508
    %2898 = vmatprep.subr.mxu0 0.0
    %2899 = vmatpush1.msra.mxu0 %v2509
    %2900 = vmatprep.subr.mxu0 0.0
    %2901 = vmatpush1.msra.mxu0 %v2510
    %2902 = vmatprep.subr.mxu0 0.0
    %2903 = vmatpush1.msra.mxu0 %v2511
    %2904 = vmatprep.subr.mxu0 0.0
    %2905 = vmatpush1.msra.mxu0 %v2512
    %2906 = vmatprep.subr.mxu0 0.0
    %2907 = vmatpush1.msra.mxu0 %v2513
    %2908 = vmatprep.subr.mxu0 0.0
    %2909 = vmatpush1.msra.mxu0 %v2514
    %2910 = vmatprep.subr.mxu0 0.0
    %2911 = vmatpush1.msra.mxu0 %v2515
    %2912 = vmatprep.subr.mxu0 0.0
    %2913 = vmatpush1.msra.mxu0 %v2516
    %2914 = vmatprep.subr.mxu0 0.0
    %2915 = vmatpush1.msra.mxu0 %v2517
    %2916 = vmatprep.subr.mxu0 0.0
    %2917 = vmatpush1.msra.mxu0 %v2518
    %2918 = vmatprep.subr.mxu0 0.0
    %2919 = vmatpush1.msra.mxu0 %v2519
    %2920 = vmatprep.subr.mxu0 0.0
    %2921 = vmatpush1.msra.mxu0 %v2520
    %2922 = vmatprep.subr.mxu0 0.0
    %2923 = vmatpush1.msra.mxu0 %v2521
    %2924 = vmatprep.subr.mxu0 0.0
    %2925 = vmatpush1.msra.mxu0 %v2522
    %2926 = vmatprep.subr.mxu0 0.0
    %2927 = vmatpush1.msra.mxu0 %v2523
    %2928 = vmatprep.subr.mxu0 0.0
    %2929 = vmatpush1.msra.mxu0 %v2524
    %2930 = vmatprep.subr.mxu0 0.0
    %2931 = vmatpush1.msra.mxu0 %v2525
    %2932 = vmatprep.subr.mxu0 0.0
    %2933 = vmatpush1.msra.mxu0 %v2526
    %2934 = vmatprep.subr.mxu0 0.0
    %2935 = vmatpush1.msra.mxu0 %v2527
    %2936 = vmatprep.subr.mxu0 0.0
    %2937 = vmatpush1.msra.mxu0 %v2528
    %2938 = vmatprep.subr.mxu0 0.0
    %2939 = vmatpush1.msra.mxu0 %v2529
    %2940 = vmatprep.subr.mxu0 0.0
    %2941 = vmatpush1.msra.mxu0 %v2530
    %2942 = vmatprep.subr.mxu0 0.0
    %2943 = vmatpush1.msra.mxu0 %v2531
    %2944 = vmatprep.subr.mxu0 0.0
    %2945 = vmatpush1.msra.mxu0 %v2532
    %2946 = vmatprep.subr.mxu0 0.0
    %2947 = vmatpush1.msra.mxu0 %v2533
    %2948 = vmatprep.subr.mxu0 0.0
    %2949 = vmatpush1.msra.mxu0 %v2534
    %2950 = vmatprep.subr.mxu0 0.0
    %2951 = vmatpush1.msra.mxu0 %v2535
    %2952 = vmatprep.subr.mxu0 0.0
    %2953 = vmatpush1.msra.mxu0 %v2536
    %2954 = vmatprep.subr.mxu0 0.0
    %2955 = vmatpush1.msra.mxu0 %v2537
    %2956 = vmatprep.subr.mxu0 0.0
    %2957 = vmatpush1.msra.mxu0 %v2538
    %2958 = vmatprep.mubr.f32.mxu0 %v2675
    %2959 = vmatmul.mubr.f32.gmra.mrb[0].mxu0 %v2674
    %v2960 = vpop.f32.mrb[0].mxu0
    %v2961 = vadd.f32 %v2891, %v2960
    %v2962 = vpop.f32.mrb[0].mxu0
    %2963 = vdwg.mxu0
    %2964 = vmatprep.subr.mxu0 0.0
    %2965 = vmatpush1.msra.mxu0 %v2539
    %2966 = vmatprep.subr.mxu0 0.0
    %2967 = vmatpush1.msra.mxu0 %v2540
    %2968 = vmatprep.subr.mxu0 0.0
    %2969 = vmatpush1.msra.mxu0 %v2541
    %2970 = vmatprep.subr.mxu0 0.0
    %2971 = vmatpush1.msra.mxu0 %v2542
    %2972 = vmatprep.subr.mxu0 0.0
    %2973 = vmatpush1.msra.mxu0 %v2543
    %2974 = vmatprep.subr.mxu0 0.0
    %2975 = vmatpush1.msra.mxu0 %v2544
    %2976 = vmatprep.subr.mxu0 0.0
    %2977 = vmatpush1.msra.mxu0 %v2545
    %2978 = vmatprep.subr.mxu0 0.0
    %2979 = vmatpush1.msra.mxu0 %v2546
    %2980 = vmatprep.subr.mxu0 0.0
    %2981 = vmatpush1.msra.mxu0 %v2547
    %2982 = vmatprep.subr.mxu0 0.0
    %2983 = vmatpush1.msra.mxu0 %v2548
    %2984 = vmatprep.subr.mxu0 0.0
    %2985 = vmatpush1.msra.mxu0 %v2549
    %2986 = vmatprep.subr.mxu0 0.0
    %2987 = vmatpush1.msra.mxu0 %v2550
    %2988 = vmatprep.subr.mxu0 0.0
    %2989 = vmatpush1.msra.mxu0 %v2551
    %2990 = vmatprep.subr.mxu0 0.0
    %2991 = vmatpush1.msra.mxu0 %v2552
    %2992 = vmatprep.subr.mxu0 0.0
    %2993 = vmatpush1.msra.mxu0 %v2553
    %2994 = vmatprep.subr.mxu0 0.0
    %2995 = vmatpush1.msra.mxu0 %v2554
    %2996 = vmatprep.subr.mxu0 0.0
    %2997 = vmatpush1.msra.mxu0 %v2555
    %2998 = vmatprep.subr.mxu0 0.0
    %2999 = vmatpush1.msra.mxu0 %v2556
    %3000 = vmatprep.subr.mxu0 0.0
    %3001 = vmatpush1.msra.mxu0 %v2557
    %3002 = vmatprep.subr.mxu0 0.0
    %3003 = vmatpush1.msra.mxu0 %v2558
    %3004 = vmatprep.subr.mxu0 0.0
    %3005 = vmatpush1.msra.mxu0 %v2559
    %3006 = vmatprep.subr.mxu0 0.0
    %3007 = vmatpush1.msra.mxu0 %v2560
    %3008 = vmatprep.subr.mxu0 0.0
    %3009 = vmatpush1.msra.mxu0 %v2561
    %3010 = vmatprep.subr.mxu0 0.0
    %3011 = vmatpush1.msra.mxu0 %v2562
    %3012 = vmatprep.subr.mxu0 0.0
    %3013 = vmatpush1.msra.mxu0 %v2563
    %3014 = vmatprep.subr.mxu0 0.0
    %3015 = vmatpush1.msra.mxu0 %v2564
    %3016 = vmatprep.subr.mxu0 0.0
    %3017 = vmatpush1.msra.mxu0 %v2565
    %3018 = vmatprep.subr.mxu0 0.0
    %3019 = vmatpush1.msra.mxu0 %v2566
    %3020 = vmatprep.subr.mxu0 0.0
    %3021 = vmatpush1.msra.mxu0 %v2567
    %3022 = vmatprep.subr.mxu0 0.0
    %3023 = vmatpush1.msra.mxu0 %v2568
    %3024 = vmatprep.subr.mxu0 0.0
    %3025 = vmatpush1.msra.mxu0 %v2569
    %3026 = vmatprep.subr.mxu0 0.0
    %3027 = vmatpush1.msra.mxu0 %v2570
    %3028 = vmatprep.mubr.f32.mxu0 %v2677
    %3029 = vmatmul.mubr.f32.gmra.mrb[0].mxu0 %v2676
    %v3030 = vpop.f32.mrb[0].mxu0
    %v3031 = vadd.f32 %v2961, %v3030
    %v3032 = vpop.f32.mrb[0].mxu0
    %3033 = vdwg.mxu0
    %3034 = vmatprep.subr.mxu0 0.0
    %3035 = vmatpush1.msra.mxu0 %v2571
    %3036 = vmatprep.subr.mxu0 0.0
    %3037 = vmatpush1.msra.mxu0 %v2572
    %3038 = vmatprep.subr.mxu0 0.0
    %3039 = vmatpush1.msra.mxu0 %v2573
    %3040 = vmatprep.subr.mxu0 0.0
    %3041 = vmatpush1.msra.mxu0 %v2574
    %3042 = vmatprep.subr.mxu0 0.0
    %3043 = vmatpush1.msra.mxu0 %v2575
    %3044 = vmatprep.subr.mxu0 0.0
    %3045 = vmatpush1.msra.mxu0 %v2576
    %3046 = vmatprep.subr.mxu0 0.0
    %3047 = vmatpush1.msra.mxu0 %v2577
    %3048 = vmatprep.subr.mxu0 0.0
    %3049 = vmatpush1.msra.mxu0 %v2578
    %3050 = vmatprep.subr.mxu0 0.0
    %3051 = vmatpush1.msra.mxu0 %v2579
    %3052 = vmatprep.subr.mxu0 0.0
    %3053 = vmatpush1.msra.mxu0 %v2580
    %3054 = vmatprep.subr.mxu0 0.0
    %3055 = vmatpush1.msra.mxu0 %v2581
    %3056 = vmatprep.subr.mxu0 0.0
    %3057 = vmatpush1.msra.mxu0 %v2582
    %3058 = vmatprep.subr.mxu0 0.0
    %3059 = vmatpush1.msra.mxu0 %v2583
    %3060 = vmatprep.subr.mxu0 0.0
    %3061 = vmatpush1.msra.mxu0 %v2584
    %3062 = vmatprep.subr.mxu0 0.0
    %3063 = vmatpush1.msra.mxu0 %v2585
    %3064 = vmatprep.subr.mxu0 0.0
    %3065 = vmatpush1.msra.mxu0 %v2586
    %3066 = vmatprep.subr.mxu0 0.0
    %3067 = vmatpush1.msra.mxu0 %v2587
    %3068 = vmatprep.subr.mxu0 0.0
    %3069 = vmatpush1.msra.mxu0 %v2588
    %3070 = vmatprep.subr.mxu0 0.0
    %3071 = vmatpush1.msra.mxu0 %v2589
    %3072 = vmatprep.subr.mxu0 0.0
    %3073 = vmatpush1.msra.mxu0 %v2590
    %3074 = vmatprep.subr.mxu0 0.0
    %3075 = vmatpush1.msra.mxu0 %v2591
    %3076 = vmatprep.subr.mxu0 0.0
    %3077 = vmatpush1.msra.mxu0 %v2592
    %3078 = vmatprep.subr.mxu0 0.0
    %3079 = vmatpush1.msra.mxu0 %v2593
    %3080 = vmatprep.subr.mxu0 0.0
    %3081 = vmatpush1.msra.mxu0 %v2594
    %3082 = vmatprep.subr.mxu0 0.0
    %3083 = vmatpush1.msra.mxu0 %v2595
    %3084 = vmatprep.subr.mxu0 0.0
    %3085 = vmatpush1.msra.mxu0 %v2596
    %3086 = vmatprep.subr.mxu0 0.0
    %3087 = vmatpush1.msra.mxu0 %v2597
    %3088 = vmatprep.subr.mxu0 0.0
    %3089 = vmatpush1.msra.mxu0 %v2598
    %3090 = vmatprep.subr.mxu0 0.0
    %3091 = vmatpush1.msra.mxu0 %v2599
    %3092 = vmatprep.subr.mxu0 0.0
    %3093 = vmatpush1.msra.mxu0 %v2600
    %3094 = vmatprep.subr.mxu0 0.0
    %3095 = vmatpush1.msra.mxu0 %v2601
    %3096 = vmatprep.subr.mxu0 0.0
    %3097 = vmatpush1.msra.mxu0 %v2602
    %3098 = vmatprep.mubr.f32.mxu0 %v2679
    %3099 = vmatmul.mubr.f32.gmra.mrb[0].mxu0 %v2678
    %v3100 = vpop.f32.mrb[0].mxu0
    %v3101 = vadd.f32 %v3031, %v3100
    %v3102 = vpop.f32.mrb[0].mxu0
    %3103 = vdwg.mxu0
    %3104 = vmatprep.subr.mxu0 0.0
    %3105 = vmatpush1.msra.mxu0 %v2603
    %3106 = vmatprep.subr.mxu0 0.0
    %3107 = vmatpush1.msra.mxu0 %v2604
    %3108 = vmatprep.subr.mxu0 0.0
    %3109 = vmatpush1.msra.mxu0 %v2605
    %3110 = vmatprep.subr.mxu0 0.0
    %3111 = vmatpush1.msra.mxu0 %v2606
    %3112 = vmatprep.subr.mxu0 0.0
    %3113 = vmatpush1.msra.mxu0 %v2607
    %3114 = vmatprep.subr.mxu0 0.0
    %3115 = vmatpush1.msra.mxu0 %v2608
    %3116 = vmatprep.subr.mxu0 0.0
    %3117 = vmatpush1.msra.mxu0 %v2609
    %3118 = vmatprep.subr.mxu0 0.0
    %3119 = vmatpush1.msra.mxu0 %v2610
    %3120 = vmatprep.subr.mxu0 0.0
    %3121 = vmatpush1.msra.mxu0 %v2611
    %3122 = vmatprep.subr.mxu0 0.0
    %3123 = vmatpush1.msra.mxu0 %v2612
    %3124 = vmatprep.subr.mxu0 0.0
    %3125 = vmatpush1.msra.mxu0 %v2613
    %3126 = vmatprep.subr.mxu0 0.0
    %3127 = vmatpush1.msra.mxu0 %v2614
    %3128 = vmatprep.subr.mxu0 0.0
    %3129 = vmatpush1.msra.mxu0 %v2615
    %3130 = vmatprep.subr.mxu0 0.0
    %3131 = vmatpush1.msra.mxu0 %v2616
    %3132 = vmatprep.subr.mxu0 0.0
    %3133 = vmatpush1.msra.mxu0 %v2617
    %3134 = vmatprep.subr.mxu0 0.0
    %3135 = vmatpush1.msra.mxu0 %v2618
    %3136 = vmatprep.subr.mxu0 0.0
    %3137 = vmatpush1.msra.mxu0 %v2619
    %3138 = vmatprep.subr.mxu0 0.0
    %3139 = vmatpush1.msra.mxu0 %v2620
    %3140 = vmatprep.subr.mxu0 0.0
    %3141 = vmatpush1.msra.mxu0 %v2621
    %3142 = vmatprep.subr.mxu0 0.0
    %3143 = vmatpush1.msra.mxu0 %v2622
    %3144 = vmatprep.subr.mxu0 0.0
    %3145 = vmatpush1.msra.mxu0 %v2623
    %3146 = vmatprep.subr.mxu0 0.0
    %3147 = vmatpush1.msra.mxu0 %v2624
    %3148 = vmatprep.subr.mxu0 0.0
    %3149 = vmatpush1.msra.mxu0 %v2625
    %3150 = vmatprep.subr.mxu0 0.0
    %3151 = vmatpush1.msra.mxu0 %v2626
    %3152 = vmatprep.subr.mxu0 0.0
    %3153 = vmatpush1.msra.mxu0 %v2627
    %3154 = vmatprep.subr.mxu0 0.0
    %3155 = vmatpush1.msra.mxu0 %v2628
    %3156 = vmatprep.subr.mxu0 0.0
    %3157 = vmatpush1.msra.mxu0 %v2629
    %3158 = vmatprep.subr.mxu0 0.0
    %3159 = vmatpush1.msra.mxu0 %v2630
    %3160 = vmatprep.subr.mxu0 0.0
    %3161 = vmatpush1.msra.mxu0 %v2631
    %3162 = vmatprep.subr.mxu0 0.0
    %3163 = vmatpush1.msra.mxu0 %v2632
    %3164 = vmatprep.subr.mxu0 0.0
    %3165 = vmatpush1.msra.mxu0 %v2633
    %3166 = vmatprep.subr.mxu0 0.0
    %3167 = vmatpush1.msra.mxu0 %v2634
    %3168 = vmatprep.mubr.f32.mxu0 %v2681
    %3169 = vmatmul.mubr.f32.gmra.mrb[0].mxu0 %v2680
    %v3170 = vpop.f32.mrb[0].mxu0
    %v3171 = vadd.f32 %v3101, %v3170
    %v3172 = vpop.f32.mrb[0].mxu0
    %3173 = vdwg.mxu0
    %3174 = vmatprep.subr.mxu0 0.0
    %3175 = vmatpush1.msra.mxu0 %v2635
    %3176 = vmatprep.subr.mxu0 0.0
    %3177 = vmatpush1.msra.mxu0 %v2636
    %3178 = vmatprep.subr.mxu0 0.0
    %3179 = vmatpush1.msra.mxu0 %v2637
    %3180 = vmatprep.subr.mxu0 0.0
    %3181 = vmatpush1.msra.mxu0 %v2638
    %3182 = vmatprep.subr.mxu0 0.0
    %3183 = vmatpush1.msra.mxu0 %v2639
    %3184 = vmatprep.subr.mxu0 0.0
    %3185 = vmatpush1.msra.mxu0 %v2640
    %3186 = vmatprep.subr.mxu0 0.0
    %3187 = vmatpush1.msra.mxu0 %v2641
    %3188 = vmatprep.subr.mxu0 0.0
    %3189 = vmatpush1.msra.mxu0 %v2642
    %3190 = vmatprep.subr.mxu0 0.0
    %3191 = vmatpush1.msra.mxu0 %v2643
    %3192 = vmatprep.subr.mxu0 0.0
    %3193 = vmatpush1.msra.mxu0 %v2644
    %3194 = vmatprep.subr.mxu0 0.0
    %3195 = vmatpush1.msra.mxu0 %v2645
    %3196 = vmatprep.subr.mxu0 0.0
    %3197 = vmatpush1.msra.mxu0 %v2646
    %3198 = vmatprep.subr.mxu0 0.0
    %3199 = vmatpush1.msra.mxu0 %v2647
    %3200 = vmatprep.subr.mxu0 0.0
    %3201 = vmatpush1.msra.mxu0 %v2648
    %3202 = vmatprep.subr.mxu0 0.0
    %3203 = vmatpush1.msra.mxu0 %v2649
    %3204 = vmatprep.subr.mxu0 0.0
    %3205 = vmatpush1.msra.mxu0 %v2650
    %3206 = vmatprep.subr.mxu0 0.0
    %3207 = vmatpush1.msra.mxu0 %v2651
    %3208 = vmatprep.subr.mxu0 0.0
    %3209 = vmatpush1.msra.mxu0 %v2652
    %3210 = vmatprep.subr.mxu0 0.0
    %3211 = vmatpush1.msra.mxu0 %v2653
    %3212 = vmatprep.subr.mxu0 0.0
    %3213 = vmatpush1.msra.mxu0 %v2654
    %3214 = vmatprep.subr.mxu0 0.0
    %3215 = vmatpush1.msra.mxu0 %v2655
    %3216 = vmatprep.subr.mxu0 0.0
    %3217 = vmatpush1.msra.mxu0 %v2656
    %3218 = vmatprep.subr.mxu0 0.0
    %3219 = vmatpush1.msra.mxu0 %v2657
    %3220 = vmatprep.subr.mxu0 0.0
    %3221 = vmatpush1.msra.mxu0 %v2658
    %3222 = vmatprep.subr.mxu0 0.0
    %3223 = vmatpush1.msra.mxu0 %v2659
    %3224 = vmatprep.subr.mxu0 0.0
    %3225 = vmatpush1.msra.mxu0 %v2660
    %3226 = vmatprep.subr.mxu0 0.0
    %3227 = vmatpush1.msra.mxu0 %v2661
    %3228 = vmatprep.subr.mxu0 0.0
    %3229 = vmatpush1.msra.mxu0 %v2662
    %3230 = vmatprep.subr.mxu0 0.0
    %3231 = vmatpush1.msra.mxu0 %v2663
    %3232 = vmatprep.subr.mxu0 0.0
    %3233 = vmatpush1.msra.mxu0 %v2664
    %3234 = vmatprep.subr.mxu0 0.0
    %3235 = vmatpush1.msra.mxu0 %v2665
    %3236 = vmatprep.subr.mxu0 0.0
    %3237 = vmatpush1.msra.mxu0 %v2666
    %3238 = vmatprep.mubr.f32.mxu0 %v2683
    %3239 = vmatmul.mubr.f32.gmra.mrb[0].mxu0 %v2682
    %v3240 = vpop.f32.mrb[0].mxu0
    %v3241 = vadd.f32 %v3171, %v3240
    %v3242 = vpop.f32.mrb[0].mxu0
    %3243 = vdwg.mxu0
    %v3244 = vadd.f32 %v2667, %v3241
    %3245 = vst [vmem:[#allocation2] sm:$0xff] %v3244
    // Predicated region
    $region42: #{tpu_custom_call.1} parent=1 // pred_check
      %p3246 = pneg %p37
    $region43: #{tpu_custom_call.1} parent=1 // pred_check_branch
      %3248 = sbr.rel (%p3246) target = $region45
    $region44: #{tpu_custom_call.1} parent=1 // pred_region
      %v3249 = vld [vmem:[#allocation2] sm:$0xff]
      %v3250 = vmul.f32 %v3249, 0.00390625
      %v3251 = vpack.c.bf16 %v3250, %v3250
      %v3252 = vld [vmem:[%s4] sm:$0xf]
      %v3253 = vld [vmem:[%s4 + $0x4] sm:$0xf]
      %v3254 = vld [vmem:[%s4 + $0x8] sm:$0xf]
      %v3255 = vld [vmem:[%s4 + $0xc] sm:$0xf]
      %v3256 = vld [vmem:[%s4 + $0x10] sm:$0xf]
      %v3257 = vld [vmem:[%s4 + $0x14] sm:$0xf]
      %v3258 = vld [vmem:[%s4 + $0x18] sm:$0xf]
      %v3259 = vld [vmem:[%s4 + $0x1c] sm:$0xf]
      %v3260 = vld [vmem:[%s4 + $0x20] sm:$0xf]
      %v3261 = vld [vmem:[%s4 + $0x24] sm:$0xf]
      %v3262 = vld [vmem:[%s4 + $0x28] sm:$0xf]
      %v3263 = vld [vmem:[%s4 + $0x2c] sm:$0xf]
      %v3264 = vld [vmem:[%s4 + $0x30] sm:$0xf]
      %v3265 = vld [vmem:[%s4 + $0x34] sm:$0xf]
      %v3266 = vld [vmem:[%s4 + $0x38] sm:$0xf]
      %v3267 = vld [vmem:[%s4 + $0x3c] sm:$0xf]
      %v3268 = vld [vmem:[%s5] sm:$0x1]
      %v3270 = vlaneseq
      %v3271 = vshrl.u32 %v3270, 7
      %v3272 = vsub.s32 0, %v3271
      %v3273 = vrot.slane %v3268, %v3272
      %v3291 = vunpack.c.l.b16 %v3252
      %v3292 = vunpack.c.l.b16 %v3253
      %v3293 = vunpack.c.l.b16 %v3254
      %v3294 = vunpack.c.l.b16 %v3255
      %v3295 = vunpack.c.l.b16 %v3256
      %v3296 = vunpack.c.l.b16 %v3257
      %v3297 = vunpack.c.l.b16 %v3258
      %v3298 = vunpack.c.l.b16 %v3259
      %v3299 = vunpack.c.l.b16 %v3260
      %v3300 = vunpack.c.l.b16 %v3261
      %v3301 = vunpack.c.l.b16 %v3262
      %v3302 = vunpack.c.l.b16 %v3263
      %v3303 = vunpack.c.l.b16 %v3264
      %v3304 = vunpack.c.l.b16 %v3265
      %v3305 = vunpack.c.l.b16 %v3266
      %v3306 = vunpack.c.l.b16 %v3267
      %v3307 = vpack.c.b16 %v3292, %v3291
      %v3308 = vpack.c.b16 %v3294, %v3293
      %v3309 = vpack.c.b16 %v3296, %v3295
      %v3310 = vpack.c.b16 %v3298, %v3297
      %v3311 = vpack.c.b16 %v3300, %v3299
      %v3312 = vpack.c.b16 %v3302, %v3301
      %v3313 = vpack.c.b16 %v3304, %v3303
      %v3314 = vpack.c.b16 %v3306, %v3305
      %3323 = vmatprep.subr.bf16.mxu0 0
      %3324 = vmatpush1.bf16.msra.mxu0 %v3307
      %3325 = vmatprep.subr.bf16.mxu0 0
      %3326 = vmatpush1.bf16.msra.mxu0 %v3308
      %3327 = vmatprep.subr.bf16.mxu0 0
      %3328 = vmatpush1.bf16.msra.mxu0 %v3309
      %3329 = vmatprep.subr.bf16.mxu0 0
      %3330 = vmatpush1.bf16.msra.mxu0 %v3310
      %3331 = vmatprep.subr.bf16.mxu0 0
      %3332 = vmatpush1.bf16.msra.mxu0 %v3311
      %3333 = vmatprep.subr.bf16.mxu0 0
      %3334 = vmatpush1.bf16.msra.mxu0 %v3312
      %3335 = vmatprep.subr.bf16.mxu0 0
      %3336 = vmatpush1.bf16.msra.mxu0 %v3313
      %3337 = vmatprep.subr.bf16.mxu0 0
      %3338 = vmatpush1.bf16.msra.mxu0 %v3314
      %3339 = vmatprep.subr.bf16.mxu0 0
      %3340 = vmatpush1.bf16.msra.mxu0 0
      %3341 = vmatprep.subr.bf16.mxu0 0
      %3342 = vmatpush1.bf16.msra.mxu0 0
      %3343 = vmatprep.subr.bf16.mxu0 0
      %3344 = vmatpush1.bf16.msra.mxu0 0
      %3345 = vmatprep.subr.bf16.mxu0 0
      %3346 = vmatpush1.bf16.msra.mxu0 0
      %3347 = vmatprep.subr.bf16.mxu0 0
      %3348 = vmatpush1.bf16.msra.mxu0 0
      %3349 = vmatprep.subr.bf16.mxu0 0
      %3350 = vmatpush1.bf16.msra.mxu0 0
      %3351 = vmatprep.subr.bf16.mxu0 0
      %3352 = vmatpush1.bf16.msra.mxu0 0
      %3353 = vmatprep.subr.bf16.mxu0 0
      %3354 = vmatpush1.bf16.msra.mxu0 0
      %3355 = vmatprep.mubr.bf16.mxu0 0
      %3356 = vmatmul.mubr.bf16.gmra.mrb[0].mxu0 %v3251
      %v3357 = vpop.f32.mrb[0].mxu0
      %v3358 = vadd.f32 %v3273, %v3357
      %v3359 = vpop.f32.mrb[0].mxu0
      %v3360 = vpop.f32.mrb[0].mxu0
      %v3361 = vpop.f32.mrb[0].mxu0
      %3362 = vdwg.mxu0
      %3363 = vst [vmem:[#allocation3] sm:$0xff] %v3358
      %v3364 = vld [vmem:[%s6] sm:$0xff]
      %v3365 = vld [vmem:[%s7] sm:$0xff]
      %v3366 = vld [vmem:[%s7 + $0x8] sm:$0xff]
      %v3367 = vld [vmem:[%s7 + $0x10] sm:$0xff]
      %v3368 = vld [vmem:[%s7 + $0x18] sm:$0xff]
      %v3369 = vld [vmem:[%s7 + $0x20] sm:$0xff]
      %v3370 = vld [vmem:[%s7 + $0x28] sm:$0xff]
      %v3371 = vld [vmem:[%s7 + $0x30] sm:$0xff]
      %v3372 = vld [vmem:[%s7 + $0x38] sm:$0xff]
      %v3373 = vld [vmem:[%s7 + $0x40] sm:$0xff]
      %v3374 = vld [vmem:[%s7 + $0x48] sm:$0xff]
      %v3375 = vld [vmem:[%s7 + $0x50] sm:$0xff]
      %v3376 = vld [vmem:[%s7 + $0x58] sm:$0xff]
      %v3377 = vld [vmem:[%s7 + $0x60] sm:$0xff]
      %v3378 = vld [vmem:[%s7 + $0x68] sm:$0xff]
      %v3379 = vld [vmem:[%s7 + $0x70] sm:$0xff]
      %v3380 = vld [vmem:[%s7 + $0x78] sm:$0xff]
      %3381 = vmatprep.subr.mxu0 0.0
      %3382 = vmatpush1.msra.mxu0 %v3365
      %3383 = vmatprep.subr.mxu0 0.0
      %3384 = vmatpush1.msra.mxu0 %v3366
      %3385 = vmatprep.subr.mxu0 0.0
      %3386 = vmatpush1.msra.mxu0 %v3367
      %3387 = vmatprep.subr.mxu0 0.0
      %3388 = vmatpush1.msra.mxu0 %v3368
      %3389 = vmatprep.subr.mxu0 0.0
      %3390 = vmatpush1.msra.mxu0 %v3369
      %3391 = vmatprep.subr.mxu0 0.0
      %3392 = vmatpush1.msra.mxu0 %v3370
      %3393 = vmatprep.subr.mxu0 0.0
      %3394 = vmatpush1.msra.mxu0 %v3371
      %3395 = vmatprep.subr.mxu0 0.0
      %3396 = vmatpush1.msra.mxu0 %v3372
      %3397 = vmatprep.subr.mxu0 0.0
      %3398 = vmatpush1.msra.mxu0 %v3373
      %3399 = vmatprep.subr.mxu0 0.0
      %3400 = vmatpush1.msra.mxu0 %v3374
      %3401 = vmatprep.subr.mxu0 0.0
      %3402 = vmatpush1.msra.mxu0 %v3375
      %3403 = vmatprep.subr.mxu0 0.0
      %3404 = vmatpush1.msra.mxu0 %v3376
      %3405 = vmatprep.subr.mxu0 0.0
      %3406 = vmatpush1.msra.mxu0 %v3377
      %3407 = vmatprep.subr.mxu0 0.0
      %3408 = vmatpush1.msra.mxu0 %v3378
      %3409 = vmatprep.subr.mxu0 0.0
      %3410 = vmatpush1.msra.mxu0 %v3379
      %3411 = vmatprep.subr.mxu0 0.0
      %3412 = vmatpush1.msra.mxu0 %v3380
      %3413 = vmatprep.subr.mxu0 0.0
      %3414 = vmatpush1.msra.mxu0 0.0
      %3415 = vmatprep.subr.mxu0 0.0
      %3416 = vmatpush1.msra.mxu0 0.0
      %3417 = vmatprep.subr.mxu0 0.0
      %3418 = vmatpush1.msra.mxu0 0.0
      %3419 = vmatprep.subr.mxu0 0.0
      %3420 = vmatpush1.msra.mxu0 0.0
      %3421 = vmatprep.subr.mxu0 0.0
      %3422 = vmatpush1.msra.mxu0 0.0
      %3423 = vmatprep.subr.mxu0 0.0
      %3424 = vmatpush1.msra.mxu0 0.0
      %3425 = vmatprep.subr.mxu0 0.0
      %3426 = vmatpush1.msra.mxu0 0.0
      %3427 = vmatprep.subr.mxu0 0.0
      %3428 = vmatpush1.msra.mxu0 0.0
      %3429 = vmatprep.subr.mxu0 0.0
      %3430 = vmatpush1.msra.mxu0 0.0
      %3431 = vmatprep.subr.mxu0 0.0
      %3432 = vmatpush1.msra.mxu0 0.0
      %3433 = vmatprep.subr.mxu0 0.0
      %3434 = vmatpush1.msra.mxu0 0.0
      %3435 = vmatprep.subr.mxu0 0.0
      %3436 = vmatpush1.msra.mxu0 0.0
      %3437 = vmatprep.subr.mxu0 0.0
      %3438 = vmatpush1.msra.mxu0 0.0
      %3439 = vmatprep.subr.mxu0 0.0
      %3440 = vmatpush1.msra.mxu0 0.0
      %3441 = vmatprep.subr.mxu0 0.0
      %3442 = vmatpush1.msra.mxu0 0.0
      %3443 = vmatprep.subr.mxu0 0.0
      %3444 = vmatpush1.msra.mxu0 0.0
      %3445 = vmatprep.mubr.f32.mxu0 0.0
      %3446 = vmatmul.mubr.f32.gmra.mrb[0].mxu0 %v3364
      %v3447 = vpop.f32.mrb[0].mxu0
      %v3448 = vadd.f32 0.0, %v3447
      %v3449 = vpop.f32.mrb[0].mxu0
      %3450 = vdwg.mxu0
      %v3451 = vmul.f32 %v3448, 0.125
      %v3452 = vld [vmem:[%s8] sm:$0x1]
      %v3454 = vlaneseq
      %v3455 = vshrl.u32 %v3454, 7
      %v3456 = vsub.s32 0, %v3455
      %v3457 = vrot.slane %v3452, %v3456
      %v3459 = vadd.f32 %v3451, %v3457
      %v3460 = vmul.f32 %v3459, %v3459
      %3461 = vadd.xlane.f32.xlu0 %v3460
      %v3462 = vpop.xlane.xlu0 %3461
      %v3463 = vmax.f32 %v3462, 1e-24
      %v3464 = vrsqrt.pop %v3463
      %v3465 = vmul.f32 %v3459, %v3464
      %3466 = vst [vmem:[#allocation5] sm:$0xff] %v3465
    $region45: #{tpu_custom_call.1} parent=1 // pred_fallthru
      _
    // Predicated region
    $region46: #{tpu_custom_call.1} parent=1 // pred_check
      _
    $region47: #{tpu_custom_call.1} parent=1 // pred_check_branch
      %3468 = sbr.rel (0) target = $region49
    $region48: #{tpu_custom_call.1} parent=1 // pred_region
      %s3470 = ssub.s32 128, 128
      %3471 = vsyncadd [#allocation4], %s3470
      %s3473 = sshll.u32 [#allocation3], 4
      %s3474 = int_to_ptr.vmem [resolvable:$true] %s3473
      %3476 = dma.vmem_to_hbm [thread:$0]  %s3474, 128, %s9, [#allocation4]
    $region49: #{tpu_custom_call.1} parent=1 // pred_fallthru
      _
    // Predicated region
    $region50: #{tpu_custom_call.1} parent=1 // pred_check
      _
    $region51: #{tpu_custom_call.1} parent=1 // pred_check_branch
      %3478 = sbr.rel (0) target = $region53
    $region52: #{tpu_custom_call.1} parent=1 // pred_region
      %s3480 = ssub.s32 128, 128
      %3481 = vsyncadd [#allocation6], %s3480
      %s3483 = sshll.u32 [#allocation5], 4
      %s3484 = int_to_ptr.vmem [resolvable:$true] %s3483
      %3486 = dma.vmem_to_hbm [thread:$0]  %s3484, 128, %s10, [#allocation6]
    $region53: #{tpu_custom_call.1} parent=1 // pred_fallthru
      _
    // Predicated region
    $region54: #{tpu_custom_call.1} parent=1 // pred_check
      _
    $region55: #{tpu_custom_call.1} parent=1 // pred_check_branch
      %3488 = sbr.rel (0) target = $region57
    $region56: #{tpu_custom_call.1} parent=1 // pred_region
      %3489 = dma.done [#allocation4], 128
    $region57: #{tpu_custom_call.1} parent=1 // pred_fallthru
      _
    // Predicated region
    $region58: #{tpu_custom_call.1} parent=1 // pred_check
      _
    $region59: #{tpu_custom_call.1} parent=1 // pred_check_branch
      %3491 = sbr.rel (0) target = $region61
    $region60: #{tpu_custom_call.1} parent=1 // pred_region
      %3492 = dma.done [#allocation6], 128
    $region61: #{tpu_custom_call.1} parent=1 // pred_fallthru
      _
    %3493 = vsyncpa [#allocation4], 1
    %3494 = vsyncpa [#allocation6], 1

</llo_original>
